<compile_context>
chip_gen: v5e
topology: v5e:2x2
jax: 0.10.0
libtpu: 0.0.40
codegen_flags: <defaults>
</compile_context>

<pallas_src>
import math

import numpy as np

import jax
import jax.numpy as jnp
from jax.experimental import pallas as pl
from jax.experimental.pallas import tpu as pltpu


# ----------------------------------------------------------------------------
# Host-side weight preprocessing: fold the conv width-padding into per-dy
# "banded" matrices so each conv layer is a few lane-dense matmuls.
# ----------------------------------------------------------------------------

def _band_from_conv3x3(w_hwio, W):
    """(3,3,Cin,Cout) HWIO -> (3, W*Cin, W*Cout) banded matrices (pad=1)."""
    w = np.asarray(w_hwio, np.float32)
    _, _, cin, cout = w.shape
    band = np.zeros((3, W * cin, W * cout), np.float32)
    for dy in range(3):
        for dx in range(3):
            for xo in range(W):
                xin = xo + dx - 1
                if 0 <= xin < W:
                    band[dy, xin * cin:(xin + 1) * cin,
                         xo * cout:(xo + 1) * cout] = w[dy, dx]
    return band


def _band_from_conv4x4_s2(w_hwio, W):
    """(4,4,Cin,Cout) HWIO -> (4, W*Cin, (W//2)*Cout) banded (stride 2, pad 1)."""
    w = np.asarray(w_hwio, np.float32)
    _, _, cin, cout = w.shape
    wo = W // 2
    band = np.zeros((4, W * cin, wo * cout), np.float32)
    for dy in range(4):
        for dx in range(4):
            for xo in range(wo):
                xin = 2 * xo + dx - 1
                if 0 <= xin < W:
                    band[dy, xin * cin:(xin + 1) * cin,
                         xo * cout:(xo + 1) * cout] = w[dy, dx]
    return band


def _row_select_s2(H):
    """(4, H//2, H+2) 0/1 matrices: S[dy, yo, r] = [r == 2*yo + dy]."""
    ho, hp = H // 2, H + 2
    sel = np.zeros((4, ho, hp), np.float32)
    for dy in range(4):
        for yo in range(ho):
            sel[dy, yo, 2 * yo + dy] = 1.0
    return sel


def _bias_row(b, W):
    """(C,) bias -> (1, W*C) lane-pattern row (lane = x*C + c)."""
    return np.tile(np.asarray(b, np.float32), W)[None, :]


def prepare_weights(params, H, W):
    """Convert HWIO conv params to the banded / lane-row form the kernel uses."""
    C = params["head_b"].shape[0]
    bf16, f32 = jnp.bfloat16, jnp.float32

    wh = jnp.asarray(_band_from_conv3x3(params["head_w"], W), bf16)
    bh = jnp.asarray(_bias_row(params["head_b"], W), f32)

    w0 = params["conv0_w"]                      # (3,3,2C,C); concat = x ++ state
    w0x = jnp.asarray(_band_from_conv3x3(w0[:, :, :C, :], W), bf16)
    w0s = jnp.asarray(_band_from_conv3x3(w0[:, :, C:, :], W), bf16)
    b0 = jnp.asarray(_bias_row(params["conv0_b"], W), f32)

    wbs, bbs = [], []
    for blk in params["blocks"]:
        wbs.append(_band_from_conv3x3(blk["c1_w"], W))
        wbs.append(_band_from_conv3x3(blk["c2_w"], W))
        bbs.append(_bias_row(blk["c1_b"], W)[0])
        bbs.append(_bias_row(blk["c2_b"], W)[0])
    wb = jnp.asarray(np.concatenate(wbs, axis=0), bf16)   # (2*nb*3, W*C, W*C)
    bb = jnp.asarray(np.stack(bbs, axis=0), f32)          # (2*nb, W*C)

    wd = jnp.asarray(_band_from_conv4x4_s2(params["down_w"], W), bf16)
    sd = jnp.asarray(_row_select_s2(H), bf16)

    return (wh, bh, w0x, w0s, b0, wb, bb, wd, sd)


# ----------------------------------------------------------------------------
# Fused Pallas kernel
# ----------------------------------------------------------------------------

def _make_fused_kernel(H, W, Cin, C, num_block):
    Hp = H + 2
    Lx, Lf, Ld = W * Cin, W * C, (W // 2) * C
    bf16, f32 = jnp.bfloat16, jnp.float32

    def kernel(x_ref, prev_ref, wh_ref, bh_ref, w0x_ref, w0s_ref, b0_ref,
               wb_ref, bb_ref, wd_ref, sd_ref,
               state_ref, down_ref,
               px, ps, pa, pb):
        # Zero the padded scratch (keeps the 1-row halos at zero).
        for buf in (px, ps, pa, pb):
            buf[...] = jnp.zeros_like(buf)

        # Stage inputs into row-padded, lane-dense scratch (rows 1..H valid).
        px[1:1 + H, :] = x_ref[0]          # (H, W*Cin)
        ps[1:1 + H, :] = prev_ref[0]       # (H, W*C)

        def conv3(taps, bias):
            # Bias folded into the accumulator init; 3 lane-dense MXU matmuls
            # per input (bf16 operands, f32 accumulation).
            acc = jnp.broadcast_to(bias, (H, Lf)).astype(f32)
            for pad, wfn in taps:
                for dy in range(3):
                    acc = acc + jnp.dot(pad[dy:dy + H, :].astype(bf16),
                                        wfn(dy),
                                        preferred_element_type=f32)
            return acc

        # ---- ConvLayer 3x3 (Cin->C) + LeakyReLU(0.2) applied twice (slope .04)
        h = conv3([(px, lambda dy: wh_ref[dy])], bh_ref[...])
        h = jnp.where(h >= 0.0, h, 0.04 * h)
        pa[1:1 + H, :] = h

        # ---- trunk conv0 on cat([h, prev_state], C): sum of two banded convs
        feat = conv3([(pa, lambda dy: w0x_ref[dy]),
                      (ps, lambda dy: w0s_ref[dy])], b0_ref[...])
        feat = jnp.where(feat >= 0.0, feat, 0.1 * feat)     # LeakyReLU(0.1)
        pb[1:1 + H, :] = feat

        # ---- num_block x ResidualBlockNoBN: x + conv2(relu(conv1(x)))
        for i in range(num_block):
            k1, k2 = 3 * (2 * i), 3 * (2 * i + 1)
            t = conv3([(pb, lambda dy, k1=k1: wb_ref[k1 + dy])], bb_ref[2 * i])
            t = jnp.maximum(t, 0.0)
            pa[1:1 + H, :] = t
            o = conv3([(pa, lambda dy, k2=k2: wb_ref[k2 + dy])],
                      bb_ref[2 * i + 1])
            feat = feat + o                 # identity add stays in f32
            pb[1:1 + H, :] = feat

        # ---- recurrent state output (full-res trunk features), lane-dense store
        state_ref[0] = feat.astype(state_ref.dtype)

        # ---- down conv 4x4 / stride 2 / pad 1 / no bias
        dacc = jnp.zeros((H // 2, Ld), f32)
        full = pb[...].astype(bf16)         # padded trunk output (Hp, W*C)
        for dy in range(4):
            # stride-2 row gather expressed as a 0/1 matmul on the MXU
            rows = jnp.dot(sd_ref[dy], full, preferred_element_type=f32)
            dacc = dacc + jnp.dot(rows.astype(bf16), wd_ref[dy],
                                  preferred_element_type=f32)
        down_ref[0] = dacc.astype(down_ref.dtype)

    return kernel


def make_forward(N, H, W, in_channels, out_channels, num_block,
                 dtype=jnp.float32):
    C = out_channels
    Hp = H + 2
    Lx, Lf, Ld = W * in_channels, W * C, (W // 2) * C

    kernel = _make_fused_kernel(H, W, in_channels, C, num_block)

    in_specs = [
        pl.BlockSpec((1, H, Lx), lambda n: (n, 0, 0)),            # x
        pl.BlockSpec((1, H, Lf), lambda n: (n, 0, 0)),            # prev_state
        pl.BlockSpec((3, Lx, Lf), lambda n: (0, 0, 0)),           # head bands
        pl.BlockSpec((1, Lf), lambda n: (0, 0)),                  # head bias row
        pl.BlockSpec((3, Lf, Lf), lambda n: (0, 0, 0)),           # conv0 (x part)
        pl.BlockSpec((3, Lf, Lf), lambda n: (0, 0, 0)),           # conv0 (state)
        pl.BlockSpec((1, Lf), lambda n: (0, 0)),                  # conv0 bias row
        pl.BlockSpec((2 * num_block * 3, Lf, Lf), lambda n: (0, 0, 0)),  # blocks
        pl.BlockSpec((2 * num_block, Lf), lambda n: (0, 0)),      # block biases
        pl.BlockSpec((4, Lf, Ld), lambda n: (0, 0, 0)),           # down bands
        pl.BlockSpec((4, H // 2, Hp), lambda n: (0, 0, 0)),       # row select
    ]
    out_specs = (
        pl.BlockSpec((1, H, Lf), lambda n: (n, 0, 0)),            # state
        pl.BlockSpec((1, H // 2, Ld), lambda n: (n, 0, 0)),       # downsampled
    )
    out_shape = (
        jax.ShapeDtypeStruct((N, H, Lf), dtype),
        jax.ShapeDtypeStruct((N, H // 2, Ld), dtype),
    )
    scratch_shapes = [
        pltpu.VMEM((Hp, Lx), jnp.float32),    # padded head input
        pltpu.VMEM((Hp, Lf), jnp.float32),    # padded prev_state
        pltpu.VMEM((Hp, Lf), jnp.float32),    # ping feature buffer
        pltpu.VMEM((Hp, Lf), jnp.float32),    # pong feature buffer
    ]

    call = pl.pallas_call(
        kernel,
        out_shape=out_shape,
        grid=(N,),
        in_specs=in_specs,
        out_specs=out_specs,
        scratch_shapes=scratch_shapes,
        compiler_params=pltpu.CompilerParams(
            dimension_semantics=("parallel",),
            vmem_limit_bytes=32 * 1024 * 1024),
    )

    @jax.jit
    def _run(x_nchw, prev_nchw, weights):
        x = jnp.transpose(x_nchw, (0, 2, 3, 1)).reshape(N, H, Lx)
        prev = jnp.transpose(prev_nchw, (0, 2, 3, 1)).reshape(N, H, Lf)
        state_f, down_f = call(x, prev, *weights)
        state = jnp.transpose(state_f.reshape(N, H, W, C), (0, 3, 1, 2))
        down = jnp.transpose(down_f.reshape(N, H // 2, W // 2, C), (0, 3, 1, 2))
        return down, state

    def forward(x_nchw, prev_state_nchw, weights):
        if prev_state_nchw is None:
            prev_state_nchw = jnp.zeros((N, C, H, W), dtype)
        return _run(x_nchw, prev_state_nchw, weights)

    return forward


# ----------------------------------------------------------------------------
# Parameter construction (mirrors the PyTorch module's init scheme)
# ----------------------------------------------------------------------------

def init_params(key, in_channels, out_channels, num_block):
    C = out_channels
    keys = iter(jax.random.split(key, 6 + 2 * num_block))

    def conv_default(kw_key, kb_key, kh, kw, cin, cout, bias=True):
        fan_in = cin * kh * kw
        bound = 1.0 / math.sqrt(fan_in)   # kaiming_uniform(a=sqrt(5)) bound
        w = jax.random.uniform(kw_key, (kh, kw, cin, cout), jnp.float32,
                               -bound, bound)
        b = (jax.random.uniform(kb_key, (cout,), jnp.float32, -bound, bound)
             if bias else None)
        return w, b

    def kaiming_normal_scaled(k, cin, cout, scale):
        std = math.sqrt(2.0 / (cin * 9)) * scale
        return std * jax.random.normal(k, (3, 3, cin, cout), jnp.float32)

    head_w, head_b = conv_default(next(keys), next(keys), 3, 3, in_channels, C)
    conv0_w, conv0_b = conv_default(next(keys), next(keys), 3, 3, 2 * C, C)
    blocks = []
    for _ in range(num_block):          # default_init_weights(scale=0.1), bias=0
        blocks.append({
            "c1_w": kaiming_normal_scaled(next(keys), C, C, 0.1),
            "c1_b": jnp.zeros((C,), jnp.float32),
            "c2_w": kaiming_normal_scaled(next(keys), C, C, 0.1),
            "c2_b": jnp.zeros((C,), jnp.float32),
        })
    down_w, _ = conv_default(next(keys), next(keys), 4, 4, C, C, bias=False)
    return {"head_w": head_w, "head_b": head_b,
            "conv0_w": conv0_w, "conv0_b": conv0_b,
            "blocks": blocks, "down_w": down_w}


# ----------------------------------------------------------------------------
# Pure-JAX reference (for a correctness sanity check)
# ----------------------------------------------------------------------------

def _reference_forward(x_nchw, prev_nchw, params):
    hi = jax.lax.Precision.HIGHEST

    def conv(x, w, b=None, stride=1, pad=1):
        out = jax.lax.conv_general_dilated(
            x, w, (stride, stride), [(pad, pad), (pad, pad)],
            dimension_numbers=("NHWC", "HWIO", "NHWC"), precision=hi)
        return out if b is None else out + b

    lrelu = lambda v, s: jnp.where(v >= 0, v, s * v)

    x = jnp.transpose(x_nchw, (0, 2, 3, 1))
    prev = jnp.transpose(prev_nchw, (0, 2, 3, 1))

    h = lrelu(conv(x, params["head_w"], params["head_b"]), 0.2)
    h = lrelu(h, 0.2)
    f = jnp.concatenate([h, prev], axis=-1)
    f = lrelu(conv(f, params["conv0_w"], params["conv0_b"]), 0.1)
    for blk in params["blocks"]:
        t = jax.nn.relu(conv(f, blk["c1_w"], blk["c1_b"]))
        f = f + conv(t, blk["c2_w"], blk["c2_b"])
    state = f
    down = conv(f, params["down_w"], None, stride=2, pad=1)
    return (jnp.transpose(down, (0, 3, 1, 2)),
            jnp.transpose(state, (0, 3, 1, 2)))


if __name__ == "__main__":
    key = jax.random.PRNGKey(0)
    k_x, k_p = jax.random.split(key)

    # Small shapes consistent with the module ("out_channels = 2*in_channels").
    N, Cin, H, W = 2, 4, 16, 16
    Cout = 2 * Cin
    num_block = 2

    x = jax.random.normal(k_x, (N, Cin, H, W), jnp.float32)
    params = init_params(k_p, Cin, Cout, num_block)
    weights = prepare_weights(params, H, W)

    forward = make_forward(N, H, W, Cin, Cout, num_block)
    down, state = forward(x, None, weights)          # prev_state=None -> zeros
    jax.block_until_ready((down, state))

    assert down.shape == (N, Cout, H // 2, W // 2), down.shape
    assert state.shape == (N, Cout, H, W), state.shape

    # Sanity check against a pure-JAX reference (loose tol: bf16 matmul inputs).
    zeros_state = jnp.zeros((N, Cout, H, W), jnp.float32)
    ref_down, ref_state = _reference_forward(x, zeros_state, params)
    np.testing.assert_allclose(np.asarray(down), np.asarray(ref_down),
                               rtol=5e-2, atol=2e-2)
    np.testing.assert_allclose(np.asarray(state), np.asarray(ref_state),
                               rtol=5e-2, atol=2e-2)

    print("KERNEL_OK")
</pallas_src>

<mosaic_0001>
module attributes {stable_mosaic.version = 11 : i64} {
  func.func @kernel(%arg0: i32, %arg1: memref<1x16x64xf32, #tpu.memory_space<vmem>>, %arg2: memref<1x16x128xf32, #tpu.memory_space<vmem>>, %arg3: memref<3x64x128xbf16, #tpu.memory_space<vmem>>, %arg4: memref<1x128xf32, #tpu.memory_space<vmem>>, %arg5: memref<3x128x128xbf16, #tpu.memory_space<vmem>>, %arg6: memref<3x128x128xbf16, #tpu.memory_space<vmem>>, %arg7: memref<1x128xf32, #tpu.memory_space<vmem>>, %arg8: memref<12x128x128xbf16, #tpu.memory_space<vmem>>, %arg9: memref<4x128xf32, #tpu.memory_space<vmem>>, %arg10: memref<4x128x64xbf16, #tpu.memory_space<vmem>>, %arg11: memref<4x8x18xbf16, #tpu.memory_space<vmem>>, %arg12: memref<1x16x128xf32, #tpu.memory_space<vmem>>, %arg13: memref<1x8x64xf32, #tpu.memory_space<vmem>>, %arg14: memref<18x64xf32, #tpu.memory_space<vmem>>, %arg15: memref<18x128xf32, #tpu.memory_space<vmem>>, %arg16: memref<18x128xf32, #tpu.memory_space<vmem>>, %arg17: memref<18x128xf32, #tpu.memory_space<vmem>>) attributes {dimension_semantics = [#tpu.dimension_semantics<parallel>], iteration_bounds = array<i64: 2>, scalar_prefetch = 0 : i64, scratch_operands = 4 : i64, tpu.core_type = #tpu.core_type<tc>, window_params = [{transform_indices = @transform_0, window_bounds = array<i64: 1, 16, 64>}, {transform_indices = @transform_1, window_bounds = array<i64: 1, 16, 128>}, {pipeline_mode = #tpu.pipeline_mode<synchronous>, transform_indices = @transform_2, window_bounds = array<i64: 3, 64, 128>}, {pipeline_mode = #tpu.pipeline_mode<synchronous>, transform_indices = @transform_3, window_bounds = array<i64: 1, 128>}, {pipeline_mode = #tpu.pipeline_mode<synchronous>, transform_indices = @transform_4, window_bounds = array<i64: 3, 128, 128>}, {pipeline_mode = #tpu.pipeline_mode<synchronous>, transform_indices = @transform_5, window_bounds = array<i64: 3, 128, 128>}, {pipeline_mode = #tpu.pipeline_mode<synchronous>, transform_indices = @transform_6, window_bounds = array<i64: 1, 128>}, {pipeline_mode = #tpu.pipeline_mode<synchronous>, transform_indices = @transform_7, window_bounds = array<i64: 12, 128, 128>}, {pipeline_mode = #tpu.pipeline_mode<synchronous>, transform_indices = @transform_8, window_bounds = array<i64: 4, 128>}, {pipeline_mode = #tpu.pipeline_mode<synchronous>, transform_indices = @transform_9, window_bounds = array<i64: 4, 128, 64>}, {pipeline_mode = #tpu.pipeline_mode<synchronous>, transform_indices = @transform_10, window_bounds = array<i64: 4, 8, 18>}, {transform_indices = @transform_11, window_bounds = array<i64: 1, 16, 128>}, {transform_indices = @transform_12, window_bounds = array<i64: 1, 8, 64>}]} {
    %cst = arith.constant 0.000000e+00 : f32
    %0 = vector.broadcast %cst : f32 to vector<18x64xf32>
    %c0 = arith.constant 0 : index
    %c0_0 = arith.constant 0 : index
    %1 = vector.load %arg14[%c0, %c0_0] : memref<18x64xf32, #tpu.memory_space<vmem>>, vector<18x64xf32>
    tpu.vector_store %arg14[%c0, %c0_0], %0 {strides = array<i32>} : memref<18x64xf32, #tpu.memory_space<vmem>>, vector<18x64xf32>,
    %cst_1 = arith.constant 0.000000e+00 : f32
    %2 = vector.broadcast %cst_1 : f32 to vector<18x128xf32>
    %c0_2 = arith.constant 0 : index
    %c0_3 = arith.constant 0 : index
    %3 = vector.load %arg15[%c0_2, %c0_3] : memref<18x128xf32, #tpu.memory_space<vmem>>, vector<18x128xf32>
    tpu.vector_store %arg15[%c0_2, %c0_3], %2 {strides = array<i32>} : memref<18x128xf32, #tpu.memory_space<vmem>>, vector<18x128xf32>,
    %cst_4 = arith.constant 0.000000e+00 : f32
    %4 = vector.broadcast %cst_4 : f32 to vector<18x128xf32>
    %c0_5 = arith.constant 0 : index
    %c0_6 = arith.constant 0 : index
    %5 = vector.load %arg16[%c0_5, %c0_6] : memref<18x128xf32, #tpu.memory_space<vmem>>, vector<18x128xf32>
    tpu.vector_store %arg16[%c0_5, %c0_6], %4 {strides = array<i32>} : memref<18x128xf32, #tpu.memory_space<vmem>>, vector<18x128xf32>,
    %cst_7 = arith.constant 0.000000e+00 : f32
    %6 = vector.broadcast %cst_7 : f32 to vector<18x128xf32>
    %c0_8 = arith.constant 0 : index
    %c0_9 = arith.constant 0 : index
    %7 = vector.load %arg17[%c0_8, %c0_9] : memref<18x128xf32, #tpu.memory_space<vmem>>, vector<18x128xf32>
    tpu.vector_store %arg17[%c0_8, %c0_9], %6 {strides = array<i32>} : memref<18x128xf32, #tpu.memory_space<vmem>>, vector<18x128xf32>,
    %c0_10 = arith.constant 0 : index
    %c0_11 = arith.constant 0 : index
    %c0_12 = arith.constant 0 : index
    %8 = vector.load %arg1[%c0_10, %c0_11, %c0_12] : memref<1x16x64xf32, #tpu.memory_space<vmem>>, vector<1x16x64xf32>
    %9 = vector.shape_cast %8 : vector<1x16x64xf32> to vector<16x64xf32>
    %c1 = arith.constant 1 : index
    %c0_13 = arith.constant 0 : index
    %10 = vector.load %arg14[%c1, %c0_13] : memref<18x64xf32, #tpu.memory_space<vmem>>, vector<16x64xf32>
    tpu.vector_store %arg14[%c1, %c0_13], %9 {strides = array<i32>} : memref<18x64xf32, #tpu.memory_space<vmem>>, vector<16x64xf32>,
    %c0_14 = arith.constant 0 : index
    %c0_15 = arith.constant 0 : index
    %c0_16 = arith.constant 0 : index
    %11 = vector.load %arg2[%c0_14, %c0_15, %c0_16] : memref<1x16x128xf32, #tpu.memory_space<vmem>>, vector<1x16x128xf32>
    %12 = vector.shape_cast %11 : vector<1x16x128xf32> to vector<16x128xf32>
    %c1_17 = arith.constant 1 : index
    %c0_18 = arith.constant 0 : index
    %13 = vector.load %arg15[%c1_17, %c0_18] : memref<18x128xf32, #tpu.memory_space<vmem>>, vector<16x128xf32>
    tpu.vector_store %arg15[%c1_17, %c0_18], %12 {strides = array<i32>} : memref<18x128xf32, #tpu.memory_space<vmem>>, vector<16x128xf32>,
    %c0_19 = arith.constant 0 : index
    %c0_20 = arith.constant 0 : index
    %14 = vector.load %arg4[%c0_19, %c0_20] : memref<1x128xf32, #tpu.memory_space<vmem>>, vector<1x128xf32>
    %15 = vector.shape_cast %14 : vector<1x128xf32> to vector<1x128xf32>
    %16 = vector.broadcast %15 : vector<1x128xf32> to vector<16x128xf32>
    %c0_21 = arith.constant 0 : index
    %c0_22 = arith.constant 0 : index
    %17 = vector.load %arg14[%c0_21, %c0_22] : memref<18x64xf32, #tpu.memory_space<vmem>>, vector<16x64xf32>
    %18 = arith.truncf %17 : vector<16x64xf32> to vector<16x64xbf16>
    %c0_23 = arith.constant 0 : index
    %c0_24 = arith.constant 0 : index
    %c0_25 = arith.constant 0 : index
    %19 = vector.load %arg3[%c0_23, %c0_24, %c0_25] : memref<3x64x128xbf16, #tpu.memory_space<vmem>>, vector<1x64x128xbf16>
    %20 = vector.shape_cast %19 : vector<1x64x128xbf16> to vector<64x128xbf16>
    %cst_26 = arith.constant dense<0.000000e+00> : vector<16x128xf32>
    %21 = tpu.matmul %18, %20, %cst_26 {dimension_numbers = #tpu.dot_dimension_numbers<[1], [0], [0], [1], [0, 0, 1, 1], [], []>} : vector<16x64xbf16>, vector<64x128xbf16>, vector<16x128xf32> -> vector<16x128xf32>
    %22 = arith.addf %16, %21 : vector<16x128xf32>
    %c1_27 = arith.constant 1 : index
    %c0_28 = arith.constant 0 : index
    %23 = vector.load %arg14[%c1_27, %c0_28] : memref<18x64xf32, #tpu.memory_space<vmem>>, vector<16x64xf32>
    %24 = arith.truncf %23 : vector<16x64xf32> to vector<16x64xbf16>
    %c1_29 = arith.constant 1 : index
    %c0_30 = arith.constant 0 : index
    %c0_31 = arith.constant 0 : index
    %25 = vector.load %arg3[%c1_29, %c0_30, %c0_31] : memref<3x64x128xbf16, #tpu.memory_space<vmem>>, vector<1x64x128xbf16>
    %26 = vector.shape_cast %25 : vector<1x64x128xbf16> to vector<64x128xbf16>
    %cst_32 = arith.constant dense<0.000000e+00> : vector<16x128xf32>
    %27 = tpu.matmul %24, %26, %cst_32 {dimension_numbers = #tpu.dot_dimension_numbers<[1], [0], [0], [1], [0, 0, 1, 1], [], []>} : vector<16x64xbf16>, vector<64x128xbf16>, vector<16x128xf32> -> vector<16x128xf32>
    %28 = arith.addf %22, %27 : vector<16x128xf32>
    %c2 = arith.constant 2 : index
    %c0_33 = arith.constant 0 : index
    %29 = vector.load %arg14[%c2, %c0_33] : memref<18x64xf32, #tpu.memory_space<vmem>>, vector<16x64xf32>
    %30 = arith.truncf %29 : vector<16x64xf32> to vector<16x64xbf16>
    %c2_34 = arith.constant 2 : index
    %c0_35 = arith.constant 0 : index
    %c0_36 = arith.constant 0 : index
    %31 = vector.load %arg3[%c2_34, %c0_35, %c0_36] : memref<3x64x128xbf16, #tpu.memory_space<vmem>>, vector<1x64x128xbf16>
    %32 = vector.shape_cast %31 : vector<1x64x128xbf16> to vector<64x128xbf16>
    %cst_37 = arith.constant dense<0.000000e+00> : vector<16x128xf32>
    %33 = tpu.matmul %30, %32, %cst_37 {dimension_numbers = #tpu.dot_dimension_numbers<[1], [0], [0], [1], [0, 0, 1, 1], [], []>} : vector<16x64xbf16>, vector<64x128xbf16>, vector<16x128xf32> -> vector<16x128xf32>
    %34 = arith.addf %28, %33 : vector<16x128xf32>
    %cst_38 = arith.constant 0.000000e+00 : f32
    %35 = vector.broadcast %cst_38 : f32 to vector<16x128xf32>
    %36 = arith.cmpf oge, %34, %35 : vector<16x128xf32>
    %cst_39 = arith.constant 4.000000e-02 : f32
    %37 = vector.broadcast %cst_39 : f32 to vector<16x128xf32>
    %38 = arith.mulf %37, %34 : vector<16x128xf32>
    %39 = arith.select %36, %34, %38 : vector<16x128xi1>, vector<16x128xf32>
    %c1_40 = arith.constant 1 : index
    %c0_41 = arith.constant 0 : index
    %40 = vector.load %arg16[%c1_40, %c0_41] : memref<18x128xf32, #tpu.memory_space<vmem>>, vector<16x128xf32>
    tpu.vector_store %arg16[%c1_40, %c0_41], %39 {strides = array<i32>} : memref<18x128xf32, #tpu.memory_space<vmem>>, vector<16x128xf32>,
    %c0_42 = arith.constant 0 : index
    %c0_43 = arith.constant 0 : index
    %41 = vector.load %arg7[%c0_42, %c0_43] : memref<1x128xf32, #tpu.memory_space<vmem>>, vector<1x128xf32>
    %42 = vector.shape_cast %41 : vector<1x128xf32> to vector<1x128xf32>
    %43 = vector.broadcast %42 : vector<1x128xf32> to vector<16x128xf32>
    %c0_44 = arith.constant 0 : index
    %c0_45 = arith.constant 0 : index
    %44 = vector.load %arg16[%c0_44, %c0_45] : memref<18x128xf32, #tpu.memory_space<vmem>>, vector<16x128xf32>
    %45 = arith.truncf %44 : vector<16x128xf32> to vector<16x128xbf16>
    %c0_46 = arith.constant 0 : index
    %c0_47 = arith.constant 0 : index
    %c0_48 = arith.constant 0 : index
    %46 = vector.load %arg5[%c0_46, %c0_47, %c0_48] : memref<3x128x128xbf16, #tpu.memory_space<vmem>>, vector<1x128x128xbf16>
    %47 = vector.shape_cast %46 : vector<1x128x128xbf16> to vector<128x128xbf16>
    %cst_49 = arith.constant dense<0.000000e+00> : vector<16x128xf32>
    %48 = tpu.matmul %45, %47, %cst_49 {dimension_numbers = #tpu.dot_dimension_numbers<[1], [0], [0], [1], [0, 0, 1, 1], [], []>} : vector<16x128xbf16>, vector<128x128xbf16>, vector<16x128xf32> -> vector<16x128xf32>
    %49 = arith.addf %43, %48 : vector<16x128xf32>
    %c1_50 = arith.constant 1 : index
    %c0_51 = arith.constant 0 : index
    %50 = vector.load %arg16[%c1_50, %c0_51] : memref<18x128xf32, #tpu.memory_space<vmem>>, vector<16x128xf32>
    %51 = arith.truncf %50 : vector<16x128xf32> to vector<16x128xbf16>
    %c1_52 = arith.constant 1 : index
    %c0_53 = arith.constant 0 : index
    %c0_54 = arith.constant 0 : index
    %52 = vector.load %arg5[%c1_52, %c0_53, %c0_54] : memref<3x128x128xbf16, #tpu.memory_space<vmem>>, vector<1x128x128xbf16>
    %53 = vector.shape_cast %52 : vector<1x128x128xbf16> to vector<128x128xbf16>
    %cst_55 = arith.constant dense<0.000000e+00> : vector<16x128xf32>
    %54 = tpu.matmul %51, %53, %cst_55 {dimension_numbers = #tpu.dot_dimension_numbers<[1], [0], [0], [1], [0, 0, 1, 1], [], []>} : vector<16x128xbf16>, vector<128x128xbf16>, vector<16x128xf32> -> vector<16x128xf32>
    %55 = arith.addf %49, %54 : vector<16x128xf32>
    %c2_56 = arith.constant 2 : index
    %c0_57 = arith.constant 0 : index
    %56 = vector.load %arg16[%c2_56, %c0_57] : memref<18x128xf32, #tpu.memory_space<vmem>>, vector<16x128xf32>
    %57 = arith.truncf %56 : vector<16x128xf32> to vector<16x128xbf16>
    %c2_58 = arith.constant 2 : index
    %c0_59 = arith.constant 0 : index
    %c0_60 = arith.constant 0 : index
    %58 = vector.load %arg5[%c2_58, %c0_59, %c0_60] : memref<3x128x128xbf16, #tpu.memory_space<vmem>>, vector<1x128x128xbf16>
    %59 = vector.shape_cast %58 : vector<1x128x128xbf16> to vector<128x128xbf16>
    %cst_61 = arith.constant dense<0.000000e+00> : vector<16x128xf32>
    %60 = tpu.matmul %57, %59, %cst_61 {dimension_numbers = #tpu.dot_dimension_numbers<[1], [0], [0], [1], [0, 0, 1, 1], [], []>} : vector<16x128xbf16>, vector<128x128xbf16>, vector<16x128xf32> -> vector<16x128xf32>
    %61 = arith.addf %55, %60 : vector<16x128xf32>
    %c0_62 = arith.constant 0 : index
    %c0_63 = arith.constant 0 : index
    %62 = vector.load %arg15[%c0_62, %c0_63] : memref<18x128xf32, #tpu.memory_space<vmem>>, vector<16x128xf32>
    %63 = arith.truncf %62 : vector<16x128xf32> to vector<16x128xbf16>
    %c0_64 = arith.constant 0 : index
    %c0_65 = arith.constant 0 : index
    %c0_66 = arith.constant 0 : index
    %64 = vector.load %arg6[%c0_64, %c0_65, %c0_66] : memref<3x128x128xbf16, #tpu.memory_space<vmem>>, vector<1x128x128xbf16>
    %65 = vector.shape_cast %64 : vector<1x128x128xbf16> to vector<128x128xbf16>
    %cst_67 = arith.constant dense<0.000000e+00> : vector<16x128xf32>
    %66 = tpu.matmul %63, %65, %cst_67 {dimension_numbers = #tpu.dot_dimension_numbers<[1], [0], [0], [1], [0, 0, 1, 1], [], []>} : vector<16x128xbf16>, vector<128x128xbf16>, vector<16x128xf32> -> vector<16x128xf32>
    %67 = arith.addf %61, %66 : vector<16x128xf32>
    %c1_68 = arith.constant 1 : index
    %c0_69 = arith.constant 0 : index
    %68 = vector.load %arg15[%c1_68, %c0_69] : memref<18x128xf32, #tpu.memory_space<vmem>>, vector<16x128xf32>
    %69 = arith.truncf %68 : vector<16x128xf32> to vector<16x128xbf16>
    %c1_70 = arith.constant 1 : index
    %c0_71 = arith.constant 0 : index
    %c0_72 = arith.constant 0 : index
    %70 = vector.load %arg6[%c1_70, %c0_71, %c0_72] : memref<3x128x128xbf16, #tpu.memory_space<vmem>>, vector<1x128x128xbf16>
    %71 = vector.shape_cast %70 : vector<1x128x128xbf16> to vector<128x128xbf16>
    %cst_73 = arith.constant dense<0.000000e+00> : vector<16x128xf32>
    %72 = tpu.matmul %69, %71, %cst_73 {dimension_numbers = #tpu.dot_dimension_numbers<[1], [0], [0], [1], [0, 0, 1, 1], [], []>} : vector<16x128xbf16>, vector<128x128xbf16>, vector<16x128xf32> -> vector<16x128xf32>
    %73 = arith.addf %67, %72 : vector<16x128xf32>
    %c2_74 = arith.constant 2 : index
    %c0_75 = arith.constant 0 : index
    %74 = vector.load %arg15[%c2_74, %c0_75] : memref<18x128xf32, #tpu.memory_space<vmem>>, vector<16x128xf32>
    %75 = arith.truncf %74 : vector<16x128xf32> to vector<16x128xbf16>
    %c2_76 = arith.constant 2 : index
    %c0_77 = arith.constant 0 : index
    %c0_78 = arith.constant 0 : index
    %76 = vector.load %arg6[%c2_76, %c0_77, %c0_78] : memref<3x128x128xbf16, #tpu.memory_space<vmem>>, vector<1x128x128xbf16>
    %77 = vector.shape_cast %76 : vector<1x128x128xbf16> to vector<128x128xbf16>
    %cst_79 = arith.constant dense<0.000000e+00> : vector<16x128xf32>
    %78 = tpu.matmul %75, %77, %cst_79 {dimension_numbers = #tpu.dot_dimension_numbers<[1], [0], [0], [1], [0, 0, 1, 1], [], []>} : vector<16x128xbf16>, vector<128x128xbf16>, vector<16x128xf32> -> vector<16x128xf32>
    %79 = arith.addf %73, %78 : vector<16x128xf32>
    %cst_80 = arith.constant 0.000000e+00 : f32
    %80 = vector.broadcast %cst_80 : f32 to vector<16x128xf32>
    %81 = arith.cmpf oge, %79, %80 : vector<16x128xf32>
    %cst_81 = arith.constant 1.000000e-01 : f32
    %82 = vector.broadcast %cst_81 : f32 to vector<16x128xf32>
    %83 = arith.mulf %82, %79 : vector<16x128xf32>
    %84 = arith.select %81, %79, %83 : vector<16x128xi1>, vector<16x128xf32>
    %c1_82 = arith.constant 1 : index
    %c0_83 = arith.constant 0 : index
    %85 = vector.load %arg17[%c1_82, %c0_83] : memref<18x128xf32, #tpu.memory_space<vmem>>, vector<16x128xf32>
    tpu.vector_store %arg17[%c1_82, %c0_83], %84 {strides = array<i32>} : memref<18x128xf32, #tpu.memory_space<vmem>>, vector<16x128xf32>,
    %c0_84 = arith.constant 0 : index
    %c0_85 = arith.constant 0 : index
    %86 = vector.load %arg9[%c0_84, %c0_85] : memref<4x128xf32, #tpu.memory_space<vmem>>, vector<1x128xf32>
    %87 = vector.shape_cast %86 : vector<1x128xf32> to vector<128xf32>
    %88 = vector.shape_cast %87 : vector<128xf32> to vector<1x128xf32>
    %89 = vector.broadcast %88 : vector<1x128xf32> to vector<16x128xf32>
    %c0_86 = arith.constant 0 : index
    %c0_87 = arith.constant 0 : index
    %90 = vector.load %arg17[%c0_86, %c0_87] : memref<18x128xf32, #tpu.memory_space<vmem>>, vector<16x128xf32>
    %91 = arith.truncf %90 : vector<16x128xf32> to vector<16x128xbf16>
    %c0_88 = arith.constant 0 : index
    %c0_89 = arith.constant 0 : index
    %c0_90 = arith.constant 0 : index
    %92 = vector.load %arg8[%c0_88, %c0_89, %c0_90] : memref<12x128x128xbf16, #tpu.memory_space<vmem>>, vector<1x128x128xbf16>
    %93 = vector.shape_cast %92 : vector<1x128x128xbf16> to vector<128x128xbf16>
    %cst_91 = arith.constant dense<0.000000e+00> : vector<16x128xf32>
    %94 = tpu.matmul %91, %93, %cst_91 {dimension_numbers = #tpu.dot_dimension_numbers<[1], [0], [0], [1], [0, 0, 1, 1], [], []>} : vector<16x128xbf16>, vector<128x128xbf16>, vector<16x128xf32> -> vector<16x128xf32>
    %95 = arith.addf %89, %94 : vector<16x128xf32>
    %c1_92 = arith.constant 1 : index
    %c0_93 = arith.constant 0 : index
    %96 = vector.load %arg17[%c1_92, %c0_93] : memref<18x128xf32, #tpu.memory_space<vmem>>, vector<16x128xf32>
    %97 = arith.truncf %96 : vector<16x128xf32> to vector<16x128xbf16>
    %c1_94 = arith.constant 1 : index
    %c0_95 = arith.constant 0 : index
    %c0_96 = arith.constant 0 : index
    %98 = vector.load %arg8[%c1_94, %c0_95, %c0_96] : memref<12x128x128xbf16, #tpu.memory_space<vmem>>, vector<1x128x128xbf16>
    %99 = vector.shape_cast %98 : vector<1x128x128xbf16> to vector<128x128xbf16>
    %cst_97 = arith.constant dense<0.000000e+00> : vector<16x128xf32>
    %100 = tpu.matmul %97, %99, %cst_97 {dimension_numbers = #tpu.dot_dimension_numbers<[1], [0], [0], [1], [0, 0, 1, 1], [], []>} : vector<16x128xbf16>, vector<128x128xbf16>, vector<16x128xf32> -> vector<16x128xf32>
    %101 = arith.addf %95, %100 : vector<16x128xf32>
    %c2_98 = arith.constant 2 : index
    %c0_99 = arith.constant 0 : index
    %102 = vector.load %arg17[%c2_98, %c0_99] : memref<18x128xf32, #tpu.memory_space<vmem>>, vector<16x128xf32>
    %103 = arith.truncf %102 : vector<16x128xf32> to vector<16x128xbf16>
    %c2_100 = arith.constant 2 : index
    %c0_101 = arith.constant 0 : index
    %c0_102 = arith.constant 0 : index
    %104 = vector.load %arg8[%c2_100, %c0_101, %c0_102] : memref<12x128x128xbf16, #tpu.memory_space<vmem>>, vector<1x128x128xbf16>
    %105 = vector.shape_cast %104 : vector<1x128x128xbf16> to vector<128x128xbf16>
    %cst_103 = arith.constant dense<0.000000e+00> : vector<16x128xf32>
    %106 = tpu.matmul %103, %105, %cst_103 {dimension_numbers = #tpu.dot_dimension_numbers<[1], [0], [0], [1], [0, 0, 1, 1], [], []>} : vector<16x128xbf16>, vector<128x128xbf16>, vector<16x128xf32> -> vector<16x128xf32>
    %107 = arith.addf %101, %106 : vector<16x128xf32>
    %cst_104 = arith.constant 0.000000e+00 : f32
    %108 = vector.broadcast %cst_104 : f32 to vector<16x128xf32>
    %109 = arith.maximumf %107, %108 : vector<16x128xf32>
    %c1_105 = arith.constant 1 : index
    %c0_106 = arith.constant 0 : index
    %110 = vector.load %arg16[%c1_105, %c0_106] : memref<18x128xf32, #tpu.memory_space<vmem>>, vector<16x128xf32>
    tpu.vector_store %arg16[%c1_105, %c0_106], %109 {strides = array<i32>} : memref<18x128xf32, #tpu.memory_space<vmem>>, vector<16x128xf32>,
    %c1_107 = arith.constant 1 : index
    %c0_108 = arith.constant 0 : index
    %111 = vector.load %arg9[%c1_107, %c0_108] : memref<4x128xf32, #tpu.memory_space<vmem>>, vector<1x128xf32>
    %112 = vector.shape_cast %111 : vector<1x128xf32> to vector<128xf32>
    %113 = vector.shape_cast %112 : vector<128xf32> to vector<1x128xf32>
    %114 = vector.broadcast %113 : vector<1x128xf32> to vector<16x128xf32>
    %c0_109 = arith.constant 0 : index
    %c0_110 = arith.constant 0 : index
    %115 = vector.load %arg16[%c0_109, %c0_110] : memref<18x128xf32, #tpu.memory_space<vmem>>, vector<16x128xf32>
    %116 = arith.truncf %115 : vector<16x128xf32> to vector<16x128xbf16>
    %c3 = arith.constant 3 : index
    %c0_111 = arith.constant 0 : index
    %c0_112 = arith.constant 0 : index
    %117 = vector.load %arg8[%c3, %c0_111, %c0_112] : memref<12x128x128xbf16, #tpu.memory_space<vmem>>, vector<1x128x128xbf16>
    %118 = vector.shape_cast %117 : vector<1x128x128xbf16> to vector<128x128xbf16>
    %cst_113 = arith.constant dense<0.000000e+00> : vector<16x128xf32>
    %119 = tpu.matmul %116, %118, %cst_113 {dimension_numbers = #tpu.dot_dimension_numbers<[1], [0], [0], [1], [0, 0, 1, 1], [], []>} : vector<16x128xbf16>, vector<128x128xbf16>, vector<16x128xf32> -> vector<16x128xf32>
    %120 = arith.addf %114, %119 : vector<16x128xf32>
    %c1_114 = arith.constant 1 : index
    %c0_115 = arith.constant 0 : index
    %121 = vector.load %arg16[%c1_114, %c0_115] : memref<18x128xf32, #tpu.memory_space<vmem>>, vector<16x128xf32>
    %122 = arith.truncf %121 : vector<16x128xf32> to vector<16x128xbf16>
    %c4 = arith.constant 4 : index
    %c0_116 = arith.constant 0 : index
    %c0_117 = arith.constant 0 : index
    %123 = vector.load %arg8[%c4, %c0_116, %c0_117] : memref<12x128x128xbf16, #tpu.memory_space<vmem>>, vector<1x128x128xbf16>
    %124 = vector.shape_cast %123 : vector<1x128x128xbf16> to vector<128x128xbf16>
    %cst_118 = arith.constant dense<0.000000e+00> : vector<16x128xf32>
    %125 = tpu.matmul %122, %124, %cst_118 {dimension_numbers = #tpu.dot_dimension_numbers<[1], [0], [0], [1], [0, 0, 1, 1], [], []>} : vector<16x128xbf16>, vector<128x128xbf16>, vector<16x128xf32> -> vector<16x128xf32>
    %126 = arith.addf %120, %125 : vector<16x128xf32>
    %c2_119 = arith.constant 2 : index
    %c0_120 = arith.constant 0 : index
    %127 = vector.load %arg16[%c2_119, %c0_120] : memref<18x128xf32, #tpu.memory_space<vmem>>, vector<16x128xf32>
    %128 = arith.truncf %127 : vector<16x128xf32> to vector<16x128xbf16>
    %c5 = arith.constant 5 : index
    %c0_121 = arith.constant 0 : index
    %c0_122 = arith.constant 0 : index
    %129 = vector.load %arg8[%c5, %c0_121, %c0_122] : memref<12x128x128xbf16, #tpu.memory_space<vmem>>, vector<1x128x128xbf16>
    %130 = vector.shape_cast %129 : vector<1x128x128xbf16> to vector<128x128xbf16>
    %cst_123 = arith.constant dense<0.000000e+00> : vector<16x128xf32>
    %131 = tpu.matmul %128, %130, %cst_123 {dimension_numbers = #tpu.dot_dimension_numbers<[1], [0], [0], [1], [0, 0, 1, 1], [], []>} : vector<16x128xbf16>, vector<128x128xbf16>, vector<16x128xf32> -> vector<16x128xf32>
    %132 = arith.addf %126, %131 : vector<16x128xf32>
    %133 = arith.addf %84, %132 : vector<16x128xf32>
    %c1_124 = arith.constant 1 : index
    %c0_125 = arith.constant 0 : index
    %134 = vector.load %arg17[%c1_124, %c0_125] : memref<18x128xf32, #tpu.memory_space<vmem>>, vector<16x128xf32>
    tpu.vector_store %arg17[%c1_124, %c0_125], %133 {strides = array<i32>} : memref<18x128xf32, #tpu.memory_space<vmem>>, vector<16x128xf32>,
    %c2_126 = arith.constant 2 : index
    %c0_127 = arith.constant 0 : index
    %135 = vector.load %arg9[%c2_126, %c0_127] : memref<4x128xf32, #tpu.memory_space<vmem>>, vector<1x128xf32>
    %136 = vector.shape_cast %135 : vector<1x128xf32> to vector<128xf32>
    %137 = vector.shape_cast %136 : vector<128xf32> to vector<1x128xf32>
    %138 = vector.broadcast %137 : vector<1x128xf32> to vector<16x128xf32>
    %c0_128 = arith.constant 0 : index
    %c0_129 = arith.constant 0 : index
    %139 = vector.load %arg17[%c0_128, %c0_129] : memref<18x128xf32, #tpu.memory_space<vmem>>, vector<16x128xf32>
    %140 = arith.truncf %139 : vector<16x128xf32> to vector<16x128xbf16>
    %c6 = arith.constant 6 : index
    %c0_130 = arith.constant 0 : index
    %c0_131 = arith.constant 0 : index
    %141 = vector.load %arg8[%c6, %c0_130, %c0_131] : memref<12x128x128xbf16, #tpu.memory_space<vmem>>, vector<1x128x128xbf16>
    %142 = vector.shape_cast %141 : vector<1x128x128xbf16> to vector<128x128xbf16>
    %cst_132 = arith.constant dense<0.000000e+00> : vector<16x128xf32>
    %143 = tpu.matmul %140, %142, %cst_132 {dimension_numbers = #tpu.dot_dimension_numbers<[1], [0], [0], [1], [0, 0, 1, 1], [], []>} : vector<16x128xbf16>, vector<128x128xbf16>, vector<16x128xf32> -> vector<16x128xf32>
    %144 = arith.addf %138, %143 : vector<16x128xf32>
    %c1_133 = arith.constant 1 : index
    %c0_134 = arith.constant 0 : index
    %145 = vector.load %arg17[%c1_133, %c0_134] : memref<18x128xf32, #tpu.memory_space<vmem>>, vector<16x128xf32>
    %146 = arith.truncf %145 : vector<16x128xf32> to vector<16x128xbf16>
    %c7 = arith.constant 7 : index
    %c0_135 = arith.constant 0 : index
    %c0_136 = arith.constant 0 : index
    %147 = vector.load %arg8[%c7, %c0_135, %c0_136] : memref<12x128x128xbf16, #tpu.memory_space<vmem>>, vector<1x128x128xbf16>
    %148 = vector.shape_cast %147 : vector<1x128x128xbf16> to vector<128x128xbf16>
    %cst_137 = arith.constant dense<0.000000e+00> : vector<16x128xf32>
    %149 = tpu.matmul %146, %148, %cst_137 {dimension_numbers = #tpu.dot_dimension_numbers<[1], [0], [0], [1], [0, 0, 1, 1], [], []>} : vector<16x128xbf16>, vector<128x128xbf16>, vector<16x128xf32> -> vector<16x128xf32>
    %150 = arith.addf %144, %149 : vector<16x128xf32>
    %c2_138 = arith.constant 2 : index
    %c0_139 = arith.constant 0 : index
    %151 = vector.load %arg17[%c2_138, %c0_139] : memref<18x128xf32, #tpu.memory_space<vmem>>, vector<16x128xf32>
    %152 = arith.truncf %151 : vector<16x128xf32> to vector<16x128xbf16>
    %c8 = arith.constant 8 : index
    %c0_140 = arith.constant 0 : index
    %c0_141 = arith.constant 0 : index
    %153 = vector.load %arg8[%c8, %c0_140, %c0_141] : memref<12x128x128xbf16, #tpu.memory_space<vmem>>, vector<1x128x128xbf16>
    %154 = vector.shape_cast %153 : vector<1x128x128xbf16> to vector<128x128xbf16>
    %cst_142 = arith.constant dense<0.000000e+00> : vector<16x128xf32>
    %155 = tpu.matmul %152, %154, %cst_142 {dimension_numbers = #tpu.dot_dimension_numbers<[1], [0], [0], [1], [0, 0, 1, 1], [], []>} : vector<16x128xbf16>, vector<128x128xbf16>, vector<16x128xf32> -> vector<16x128xf32>
    %156 = arith.addf %150, %155 : vector<16x128xf32>
    %cst_143 = arith.constant 0.000000e+00 : f32
    %157 = vector.broadcast %cst_143 : f32 to vector<16x128xf32>
    %158 = arith.maximumf %156, %157 : vector<16x128xf32>
    %c1_144 = arith.constant 1 : index
    %c0_145 = arith.constant 0 : index
    %159 = vector.load %arg16[%c1_144, %c0_145] : memref<18x128xf32, #tpu.memory_space<vmem>>, vector<16x128xf32>
    tpu.vector_store %arg16[%c1_144, %c0_145], %158 {strides = array<i32>} : memref<18x128xf32, #tpu.memory_space<vmem>>, vector<16x128xf32>,
    %c3_146 = arith.constant 3 : index
    %c0_147 = arith.constant 0 : index
    %160 = vector.load %arg9[%c3_146, %c0_147] : memref<4x128xf32, #tpu.memory_space<vmem>>, vector<1x128xf32>
    %161 = vector.shape_cast %160 : vector<1x128xf32> to vector<128xf32>
    %162 = vector.shape_cast %161 : vector<128xf32> to vector<1x128xf32>
    %163 = vector.broadcast %162 : vector<1x128xf32> to vector<16x128xf32>
    %c0_148 = arith.constant 0 : index
    %c0_149 = arith.constant 0 : index
    %164 = vector.load %arg16[%c0_148, %c0_149] : memref<18x128xf32, #tpu.memory_space<vmem>>, vector<16x128xf32>
    %165 = arith.truncf %164 : vector<16x128xf32> to vector<16x128xbf16>
    %c9 = arith.constant 9 : index
    %c0_150 = arith.constant 0 : index
    %c0_151 = arith.constant 0 : index
    %166 = vector.load %arg8[%c9, %c0_150, %c0_151] : memref<12x128x128xbf16, #tpu.memory_space<vmem>>, vector<1x128x128xbf16>
    %167 = vector.shape_cast %166 : vector<1x128x128xbf16> to vector<128x128xbf16>
    %cst_152 = arith.constant dense<0.000000e+00> : vector<16x128xf32>
    %168 = tpu.matmul %165, %167, %cst_152 {dimension_numbers = #tpu.dot_dimension_numbers<[1], [0], [0], [1], [0, 0, 1, 1], [], []>} : vector<16x128xbf16>, vector<128x128xbf16>, vector<16x128xf32> -> vector<16x128xf32>
    %169 = arith.addf %163, %168 : vector<16x128xf32>
    %c1_153 = arith.constant 1 : index
    %c0_154 = arith.constant 0 : index
    %170 = vector.load %arg16[%c1_153, %c0_154] : memref<18x128xf32, #tpu.memory_space<vmem>>, vector<16x128xf32>
    %171 = arith.truncf %170 : vector<16x128xf32> to vector<16x128xbf16>
    %c10 = arith.constant 10 : index
    %c0_155 = arith.constant 0 : index
    %c0_156 = arith.constant 0 : index
    %172 = vector.load %arg8[%c10, %c0_155, %c0_156] : memref<12x128x128xbf16, #tpu.memory_space<vmem>>, vector<1x128x128xbf16>
    %173 = vector.shape_cast %172 : vector<1x128x128xbf16> to vector<128x128xbf16>
    %cst_157 = arith.constant dense<0.000000e+00> : vector<16x128xf32>
    %174 = tpu.matmul %171, %173, %cst_157 {dimension_numbers = #tpu.dot_dimension_numbers<[1], [0], [0], [1], [0, 0, 1, 1], [], []>} : vector<16x128xbf16>, vector<128x128xbf16>, vector<16x128xf32> -> vector<16x128xf32>
    %175 = arith.addf %169, %174 : vector<16x128xf32>
    %c2_158 = arith.constant 2 : index
    %c0_159 = arith.constant 0 : index
    %176 = vector.load %arg16[%c2_158, %c0_159] : memref<18x128xf32, #tpu.memory_space<vmem>>, vector<16x128xf32>
    %177 = arith.truncf %176 : vector<16x128xf32> to vector<16x128xbf16>
    %c11 = arith.constant 11 : index
    %c0_160 = arith.constant 0 : index
    %c0_161 = arith.constant 0 : index
    %178 = vector.load %arg8[%c11, %c0_160, %c0_161] : memref<12x128x128xbf16, #tpu.memory_space<vmem>>, vector<1x128x128xbf16>
    %179 = vector.shape_cast %178 : vector<1x128x128xbf16> to vector<128x128xbf16>
    %cst_162 = arith.constant dense<0.000000e+00> : vector<16x128xf32>
    %180 = tpu.matmul %177, %179, %cst_162 {dimension_numbers = #tpu.dot_dimension_numbers<[1], [0], [0], [1], [0, 0, 1, 1], [], []>} : vector<16x128xbf16>, vector<128x128xbf16>, vector<16x128xf32> -> vector<16x128xf32>
    %181 = arith.addf %175, %180 : vector<16x128xf32>
    %182 = arith.addf %133, %181 : vector<16x128xf32>
    %c1_163 = arith.constant 1 : index
    %c0_164 = arith.constant 0 : index
    %183 = vector.load %arg17[%c1_163, %c0_164] : memref<18x128xf32, #tpu.memory_space<vmem>>, vector<16x128xf32>
    tpu.vector_store %arg17[%c1_163, %c0_164], %182 {strides = array<i32>} : memref<18x128xf32, #tpu.memory_space<vmem>>, vector<16x128xf32>,
    %c0_165 = arith.constant 0 : index
    %c0_166 = arith.constant 0 : index
    %c0_167 = arith.constant 0 : index
    %184 = vector.load %arg12[%c0_165, %c0_166, %c0_167] : memref<1x16x128xf32, #tpu.memory_space<vmem>>, vector<1x16x128xf32>
    %185 = vector.shape_cast %184 : vector<1x16x128xf32> to vector<16x128xf32>
    %186 = vector.shape_cast %182 : vector<16x128xf32> to vector<1x16x128xf32>
    tpu.vector_store %arg12[%c0_165, %c0_166, %c0_167], %186 {strides = array<i32>} : memref<1x16x128xf32, #tpu.memory_space<vmem>>, vector<1x16x128xf32>,
    %cst_168 = arith.constant 0.000000e+00 : f32
    %187 = vector.broadcast %cst_168 : f32 to vector<8x64xf32>
    %c0_169 = arith.constant 0 : index
    %c0_170 = arith.constant 0 : index
    %188 = vector.load %arg17[%c0_169, %c0_170] : memref<18x128xf32, #tpu.memory_space<vmem>>, vector<18x128xf32>
    %189 = arith.truncf %188 : vector<18x128xf32> to vector<18x128xbf16>
    %c0_171 = arith.constant 0 : index
    %c0_172 = arith.constant 0 : index
    %c0_173 = arith.constant 0 : index
    %190 = vector.load %arg11[%c0_171, %c0_172, %c0_173] : memref<4x8x18xbf16, #tpu.memory_space<vmem>>, vector<1x8x18xbf16>
    %191 = vector.shape_cast %190 : vector<1x8x18xbf16> to vector<8x18xbf16>
    %cst_174 = arith.constant dense<0.000000e+00> : vector<8x128xf32>
    %192 = tpu.matmul %191, %189, %cst_174 {dimension_numbers = #tpu.dot_dimension_numbers<[1], [0], [0], [1], [0, 0, 1, 1], [], []>} : vector<8x18xbf16>, vector<18x128xbf16>, vector<8x128xf32> -> vector<8x128xf32>
    %193 = arith.truncf %192 : vector<8x128xf32> to vector<8x128xbf16>
    %c0_175 = arith.constant 0 : index
    %c0_176 = arith.constant 0 : index
    %c0_177 = arith.constant 0 : index
    %194 = vector.load %arg10[%c0_175, %c0_176, %c0_177] : memref<4x128x64xbf16, #tpu.memory_space<vmem>>, vector<1x128x64xbf16>
    %195 = vector.shape_cast %194 : vector<1x128x64xbf16> to vector<128x64xbf16>
    %cst_178 = arith.constant dense<0.000000e+00> : vector<8x64xf32>
    %196 = tpu.matmul %193, %195, %cst_178 {dimension_numbers = #tpu.dot_dimension_numbers<[1], [0], [0], [1], [0, 0, 1, 1], [], []>} : vector<8x128xbf16>, vector<128x64xbf16>, vector<8x64xf32> -> vector<8x64xf32>
    %197 = arith.addf %187, %196 : vector<8x64xf32>
    %c1_179 = arith.constant 1 : index
    %c0_180 = arith.constant 0 : index
    %c0_181 = arith.constant 0 : index
    %198 = vector.load %arg11[%c1_179, %c0_180, %c0_181] : memref<4x8x18xbf16, #tpu.memory_space<vmem>>, vector<1x8x18xbf16>
    %199 = vector.shape_cast %198 : vector<1x8x18xbf16> to vector<8x18xbf16>
    %cst_182 = arith.constant dense<0.000000e+00> : vector<8x128xf32>
    %200 = tpu.matmul %199, %189, %cst_182 {dimension_numbers = #tpu.dot_dimension_numbers<[1], [0], [0], [1], [0, 0, 1, 1], [], []>} : vector<8x18xbf16>, vector<18x128xbf16>, vector<8x128xf32> -> vector<8x128xf32>
    %201 = arith.truncf %200 : vector<8x128xf32> to vector<8x128xbf16>
    %c1_183 = arith.constant 1 : index
    %c0_184 = arith.constant 0 : index
    %c0_185 = arith.constant 0 : index
    %202 = vector.load %arg10[%c1_183, %c0_184, %c0_185] : memref<4x128x64xbf16, #tpu.memory_space<vmem>>, vector<1x128x64xbf16>
    %203 = vector.shape_cast %202 : vector<1x128x64xbf16> to vector<128x64xbf16>
    %cst_186 = arith.constant dense<0.000000e+00> : vector<8x64xf32>
    %204 = tpu.matmul %201, %203, %cst_186 {dimension_numbers = #tpu.dot_dimension_numbers<[1], [0], [0], [1], [0, 0, 1, 1], [], []>} : vector<8x128xbf16>, vector<128x64xbf16>, vector<8x64xf32> -> vector<8x64xf32>
    %205 = arith.addf %197, %204 : vector<8x64xf32>
    %c2_187 = arith.constant 2 : index
    %c0_188 = arith.constant 0 : index
    %c0_189 = arith.constant 0 : index
    %206 = vector.load %arg11[%c2_187, %c0_188, %c0_189] : memref<4x8x18xbf16, #tpu.memory_space<vmem>>, vector<1x8x18xbf16>
    %207 = vector.shape_cast %206 : vector<1x8x18xbf16> to vector<8x18xbf16>
    %cst_190 = arith.constant dense<0.000000e+00> : vector<8x128xf32>
    %208 = tpu.matmul %207, %189, %cst_190 {dimension_numbers = #tpu.dot_dimension_numbers<[1], [0], [0], [1], [0, 0, 1, 1], [], []>} : vector<8x18xbf16>, vector<18x128xbf16>, vector<8x128xf32> -> vector<8x128xf32>
    %209 = arith.truncf %208 : vector<8x128xf32> to vector<8x128xbf16>
    %c2_191 = arith.constant 2 : index
    %c0_192 = arith.constant 0 : index
    %c0_193 = arith.constant 0 : index
    %210 = vector.load %arg10[%c2_191, %c0_192, %c0_193] : memref<4x128x64xbf16, #tpu.memory_space<vmem>>, vector<1x128x64xbf16>
    %211 = vector.shape_cast %210 : vector<1x128x64xbf16> to vector<128x64xbf16>
    %cst_194 = arith.constant dense<0.000000e+00> : vector<8x64xf32>
    %212 = tpu.matmul %209, %211, %cst_194 {dimension_numbers = #tpu.dot_dimension_numbers<[1], [0], [0], [1], [0, 0, 1, 1], [], []>} : vector<8x128xbf16>, vector<128x64xbf16>, vector<8x64xf32> -> vector<8x64xf32>
    %213 = arith.addf %205, %212 : vector<8x64xf32>
    %c3_195 = arith.constant 3 : index
    %c0_196 = arith.constant 0 : index
    %c0_197 = arith.constant 0 : index
    %214 = vector.load %arg11[%c3_195, %c0_196, %c0_197] : memref<4x8x18xbf16, #tpu.memory_space<vmem>>, vector<1x8x18xbf16>
    %215 = vector.shape_cast %214 : vector<1x8x18xbf16> to vector<8x18xbf16>
    %cst_198 = arith.constant dense<0.000000e+00> : vector<8x128xf32>
    %216 = tpu.matmul %215, %189, %cst_198 {dimension_numbers = #tpu.dot_dimension_numbers<[1], [0], [0], [1], [0, 0, 1, 1], [], []>} : vector<8x18xbf16>, vector<18x128xbf16>, vector<8x128xf32> -> vector<8x128xf32>
    %217 = arith.truncf %216 : vector<8x128xf32> to vector<8x128xbf16>
    %c3_199 = arith.constant 3 : index
    %c0_200 = arith.constant 0 : index
    %c0_201 = arith.constant 0 : index
    %218 = vector.load %arg10[%c3_199, %c0_200, %c0_201] : memref<4x128x64xbf16, #tpu.memory_space<vmem>>, vector<1x128x64xbf16>
    %219 = vector.shape_cast %218 : vector<1x128x64xbf16> to vector<128x64xbf16>
    %cst_202 = arith.constant dense<0.000000e+00> : vector<8x64xf32>
    %220 = tpu.matmul %217, %219, %cst_202 {dimension_numbers = #tpu.dot_dimension_numbers<[1], [0], [0], [1], [0, 0, 1, 1], [], []>} : vector<8x128xbf16>, vector<128x64xbf16>, vector<8x64xf32> -> vector<8x64xf32>
    %221 = arith.addf %213, %220 : vector<8x64xf32>
    %c0_203 = arith.constant 0 : index
    %c0_204 = arith.constant 0 : index
    %c0_205 = arith.constant 0 : index
    %222 = vector.load %arg13[%c0_203, %c0_204, %c0_205] : memref<1x8x64xf32, #tpu.memory_space<vmem>>, vector<1x8x64xf32>
    %223 = vector.shape_cast %222 : vector<1x8x64xf32> to vector<8x64xf32>
    %224 = vector.shape_cast %221 : vector<8x64xf32> to vector<1x8x64xf32>
    tpu.vector_store %arg13[%c0_203, %c0_204, %c0_205], %224 {strides = array<i32>} : memref<1x8x64xf32, #tpu.memory_space<vmem>>, vector<1x8x64xf32>,
    return
  }
  func.func @transform_0(%arg0: i32) -> (i32, i32, i32) {
    %c0_i32 = arith.constant 0 : i32
    %c0_i32_0 = arith.constant 0 : i32
    %c0_i32_1 = arith.constant 0 : i32
    return %arg0, %c0_i32, %c0_i32_0 : i32, i32, i32
  }
  func.func @transform_1(%arg0: i32) -> (i32, i32, i32) {
    %c0_i32 = arith.constant 0 : i32
    %c0_i32_0 = arith.constant 0 : i32
    %c0_i32_1 = arith.constant 0 : i32
    return %arg0, %c0_i32, %c0_i32_0 : i32, i32, i32
  }
  func.func @transform_2(%arg0: i32) -> (i32, i32, i32) {
    %c0_i32 = arith.constant 0 : i32
    %c0_i32_0 = arith.constant 0 : i32
    %c0_i32_1 = arith.constant 0 : i32
    %c0_i32_2 = arith.constant 0 : i32
    return %c0_i32, %c0_i32_0, %c0_i32_1 : i32, i32, i32
  }
  func.func @transform_3(%arg0: i32) -> (i32, i32) {
    %c0_i32 = arith.constant 0 : i32
    %c0_i32_0 = arith.constant 0 : i32
    %c0_i32_1 = arith.constant 0 : i32
    return %c0_i32, %c0_i32_0 : i32, i32
  }
  func.func @transform_4(%arg0: i32) -> (i32, i32, i32) {
    %c0_i32 = arith.constant 0 : i32
    %c0_i32_0 = arith.constant 0 : i32
    %c0_i32_1 = arith.constant 0 : i32
    %c0_i32_2 = arith.constant 0 : i32
    return %c0_i32, %c0_i32_0, %c0_i32_1 : i32, i32, i32
  }
  func.func @transform_5(%arg0: i32) -> (i32, i32, i32) {
    %c0_i32 = arith.constant 0 : i32
    %c0_i32_0 = arith.constant 0 : i32
    %c0_i32_1 = arith.constant 0 : i32
    %c0_i32_2 = arith.constant 0 : i32
    return %c0_i32, %c0_i32_0, %c0_i32_1 : i32, i32, i32
  }
  func.func @transform_6(%arg0: i32) -> (i32, i32) {
    %c0_i32 = arith.constant 0 : i32
    %c0_i32_0 = arith.constant 0 : i32
    %c0_i32_1 = arith.constant 0 : i32
    return %c0_i32, %c0_i32_0 : i32, i32
  }
  func.func @transform_7(%arg0: i32) -> (i32, i32, i32) {
    %c0_i32 = arith.constant 0 : i32
    %c0_i32_0 = arith.constant 0 : i32
    %c0_i32_1 = arith.constant 0 : i32
    %c0_i32_2 = arith.constant 0 : i32
    return %c0_i32, %c0_i32_0, %c0_i32_1 : i32, i32, i32
  }
  func.func @transform_8(%arg0: i32) -> (i32, i32) {
    %c0_i32 = arith.constant 0 : i32
    %c0_i32_0 = arith.constant 0 : i32
    %c0_i32_1 = arith.constant 0 : i32
    return %c0_i32, %c0_i32_0 : i32, i32
  }
  func.func @transform_9(%arg0: i32) -> (i32, i32, i32) {
    %c0_i32 = arith.constant 0 : i32
    %c0_i32_0 = arith.constant 0 : i32
    %c0_i32_1 = arith.constant 0 : i32
    %c0_i32_2 = arith.constant 0 : i32
    return %c0_i32, %c0_i32_0, %c0_i32_1 : i32, i32, i32
  }
  func.func @transform_10(%arg0: i32) -> (i32, i32, i32) {
    %c0_i32 = arith.constant 0 : i32
    %c0_i32_0 = arith.constant 0 : i32
    %c0_i32_1 = arith.constant 0 : i32
    %c0_i32_2 = arith.constant 0 : i32
    return %c0_i32, %c0_i32_0, %c0_i32_1 : i32, i32, i32
  }
  func.func @transform_11(%arg0: i32) -> (i32, i32, i32) {
    %c0_i32 = arith.constant 0 : i32
    %c0_i32_0 = arith.constant 0 : i32
    %c0_i32_1 = arith.constant 0 : i32
    return %arg0, %c0_i32, %c0_i32_0 : i32, i32, i32
  }
  func.func @transform_12(%arg0: i32) -> (i32, i32, i32) {
    %c0_i32 = arith.constant 0 : i32
    %c0_i32_0 = arith.constant 0 : i32
    %c0_i32_1 = arith.constant 0 : i32
    return %arg0, %c0_i32, %c0_i32_0 : i32, i32, i32
  }
}

</mosaic_0001>

<llo_original>
// kernel: _run.1
$region0: #{_run.1}
  #allocation0 [shape = 'u32[]', space=smem, size = 0x4, offset = 0x4, fixed_abs, tag = 'smem constant byte address 0x4 - core index']
  #allocation1 [shape = 'u32[72,128]{1,0:T(1,128)}', space=vmem, size = 0x9000, scoped, tag = 'internal scratch']
  #allocation2 [shape = 'f32[18,64]{1,0:T(8,128)}', space=vmem, size = 0x3000, scoped, tag = 'scratch operand']
  #allocation3 [shape = 'f32[18,128]{1,0:T(8,128)}', space=vmem, size = 0x3000, scoped, tag = 'scratch operand']
  #allocation4 [shape = 'f32[18,128]{1,0:T(8,128)}', space=vmem, size = 0x3000, scoped, tag = 'scratch operand']
  #allocation5 [shape = 'f32[18,128]{1,0:T(8,128)}', space=vmem, size = 0x3000, scoped, tag = 'scratch operand']
  %s0 = inlined_call_operand.vmem [shape: f32[2,16,64], index: 0, kind: input, shape index: {}]
  %s1 = inlined_call_operand.vmem [shape: f32[2,16,128], index: 1, kind: input, shape index: {}]
  %s2 = inlined_call_operand.vmem [shape: bf16[3,64,128], index: 2, kind: input, shape index: {}]
  %s3 = inlined_call_operand.vmem [shape: f32[1,128], index: 3, kind: input, shape index: {}]
  %s4 = inlined_call_operand.vmem [shape: bf16[3,128,128], index: 4, kind: input, shape index: {}]
  %s5 = inlined_call_operand.vmem [shape: bf16[3,128,128], index: 5, kind: input, shape index: {}]
  %s6 = inlined_call_operand.vmem [shape: f32[1,128], index: 6, kind: input, shape index: {}]
  %s7 = inlined_call_operand.hbm [shape: bf16[12,128,128], index: 7, kind: input, shape index: {}]
  %s8 = inlined_call_operand.vmem [shape: f32[4,128], index: 8, kind: input, shape index: {}]
  %s9 = inlined_call_operand.vmem [shape: bf16[4,128,64], index: 9, kind: input, shape index: {}]
  %s10 = inlined_call_operand.vmem [shape: bf16[4,8,18], index: 10, kind: input, shape index: {}]
  %s11 = inlined_call_operand.vmem [shape: f32[2,16,128], index: 11, kind: output, shape index: {0}]
  %s12 = inlined_call_operand.vmem [shape: f32[2,8,64], index: 12, kind: output, shape index: {1}]
  %13 = xla_tuple %s11, %s12
  %s14 = sld [smem:[#allocation0]]
  $region89: #{_run.1} parent=0
    _
  %s16 = ssub.s32 1, %s14
  %s17 = scalar_select 0, %s16, %s14
  $region1: #{_run.1} parent=0
    #allocation6 [shape = 'u8[393216]{0}', space=vmem, size = 0x60000, scoped, tag = 'input window, operand 7, single buffered']
    #allocation7 [shape = 's32[2]{0}', space=sflag, size = 0x8, scoped, tag = 'scoped memory for _run.1']
    %18 = vsyncpa [#allocation7], 0
    loop: start=0, step=1, limit=4
    $region2: #{_run.1} parent=1 // loop_pre_header
      _
    $region3: #{_run.1} parent=1 // loop_header
      %s20 = sphi 0, %s24
      %p21 = scmp.ge.s32.totalorder %s20, 4
      %s30 = sphi 0, %s32
      %s33 = sphi 0, %s30
      %s34 = sphi 0, %s33
      %s50 = sphi 0, %s34
      %s56 = sphi 0, %s58
      %s59 = sphi 0, %s56
      %s60 = sphi 0, %s59
      %s76 = sphi 0, %s60
      %s80 = sphi 0, %s80
      %s82 = sphi 0, %s80
      %s83 = sphi 0, %s82
      %s97 = sphi 0, %s83
      %s101 = sphi 0, %s101
      %s103 = sphi 0, %s101
      %s104 = sphi 0, %s103
      %s118 = sphi 0, %s104
      %s122 = sphi 0, %s122
      %s124 = sphi 0, %s122
      %s125 = sphi 0, %s124
      %s139 = sphi 0, %s125
      %s143 = sphi 0, %s143
      %s145 = sphi 0, %s143
      %s146 = sphi 0, %s145
      %s160 = sphi 0, %s146
      %s164 = sphi 0, %s164
      %s166 = sphi 0, %s164
      %s167 = sphi 0, %s166
      %s181 = sphi 0, %s167
      %s185 = sphi 0, %s185
      %s187 = sphi 0, %s185
      %s188 = sphi 0, %s187
      %s202 = sphi 0, %s188
      %s206 = sphi 0, %s206
      %s208 = sphi 0, %s206
      %s209 = sphi 0, %s208
      %s223 = sphi 0, %s209
      %s227 = sphi 0, %s227
      %s229 = sphi 0, %s227
      %s230 = sphi 0, %s229
      %s244 = sphi 0, %s230
      %s248 = sphi 0, %s248
      %s250 = sphi 0, %s248
      %s251 = sphi 0, %s250
      %s265 = sphi 0, %s251
      %s271 = sphi 0, %s273
      %s274 = sphi 0, %s271
      %s275 = sphi 0, %s274
      %s291 = sphi 0, %s275
      %s297 = sphi 0, %s299
      %s300 = sphi 0, %s297
      %s301 = sphi 0, %s300
      %s317 = sphi 0, %s301
    $region4: #{_run.1} parent=1 // loop_header_branch
      %23 = sbr.rel (%p21) target = $region8
    $region5: #{_run.1} parent=1 // loop_body
      %s25 = ssub.s32 %s20, 1
      %s26 = ssub.s32 %s20, 2
      %s27 = sadd.s32 %s20, 1
      %s28 = ssub.s32 %s20, %s27
      %p29 = scmp.eq.s32.totalorder %s28, 0
      %s31 = sadd.s32 %s30, 1
      %s32 = scalar_select %p29, %s30, %s31
      %p35 = pneg %p29
      %p36 = scmp.eq.s32.totalorder %s20, 1
      %p37 = por %p35, %p36
      %p38 = scmp.ne.s32.totalorder %s30, %s33
      %p39 = scmp.eq.s32.totalorder %s20, 0
      %p40 = por %p38, %p39
      %p41 = scmp.ne.s32.totalorder %s30, %s33
      %p42 = scmp.eq.s32.totalorder %s25, 1
      %p43 = por %p41, %p42
      %p44 = scmp.ne.s32.totalorder %s33, %s34
      %p45 = scmp.eq.s32.totalorder %s25, 0
      %p46 = por %p44, %p45
      %p47 = scmp.ne.s32.totalorder %s33, %s34
      %p48 = scmp.eq.s32.totalorder %s26, 1
      %p49 = por %p47, %p48
      %p51 = scmp.ne.s32.totalorder %s34, %s50
      %p52 = scmp.eq.s32.totalorder %s26, 0
      %p53 = por %p51, %p52
      %s54 = ssub.s32 %s20, %s27
      %p55 = scmp.eq.s32.totalorder %s54, 0
      %s57 = sadd.s32 %s56, 1
      %s58 = scalar_select %p55, %s56, %s57
      %p61 = pneg %p55
      %p62 = scmp.eq.s32.totalorder %s20, 1
      %p63 = por %p61, %p62
      %p64 = scmp.ne.s32.totalorder %s56, %s59
      %p65 = scmp.eq.s32.totalorder %s20, 0
      %p66 = por %p64, %p65
      %p67 = scmp.ne.s32.totalorder %s56, %s59
      %p68 = scmp.eq.s32.totalorder %s25, 1
      %p69 = por %p67, %p68
      %p70 = scmp.ne.s32.totalorder %s59, %s60
      %p71 = scmp.eq.s32.totalorder %s25, 0
      %p72 = por %p70, %p71
      %p73 = scmp.ne.s32.totalorder %s59, %s60
      %p74 = scmp.eq.s32.totalorder %s26, 1
      %p75 = por %p73, %p74
      %p77 = scmp.ne.s32.totalorder %s60, %s76
      %p78 = scmp.eq.s32.totalorder %s26, 0
      %p79 = por %p77, %p78
      %s81 = sadd.s32 %s80, 1
      %p84 = scmp.eq.s32.totalorder %s20, 1
      %p85 = scmp.ne.s32.totalorder %s80, %s82
      %p86 = scmp.eq.s32.totalorder %s20, 0
      %p87 = por %p85, %p86
      %p88 = scmp.ne.s32.totalorder %s80, %s82
      %p89 = scmp.eq.s32.totalorder %s25, 1
      %p90 = por %p88, %p89
      %p91 = scmp.ne.s32.totalorder %s82, %s83
      %p92 = scmp.eq.s32.totalorder %s25, 0
      %p93 = por %p91, %p92
      %p94 = scmp.ne.s32.totalorder %s82, %s83
      %p95 = scmp.eq.s32.totalorder %s26, 1
      %p96 = por %p94, %p95
      %p98 = scmp.ne.s32.totalorder %s83, %s97
      %p99 = scmp.eq.s32.totalorder %s26, 0
      %p100 = por %p98, %p99
      %s102 = sadd.s32 %s101, 1
      %p105 = scmp.eq.s32.totalorder %s20, 1
      %p106 = scmp.ne.s32.totalorder %s101, %s103
      %p107 = scmp.eq.s32.totalorder %s20, 0
      %p108 = por %p106, %p107
      %p109 = scmp.ne.s32.totalorder %s101, %s103
      %p110 = scmp.eq.s32.totalorder %s25, 1
      %p111 = por %p109, %p110
      %p112 = scmp.ne.s32.totalorder %s103, %s104
      %p113 = scmp.eq.s32.totalorder %s25, 0
      %p114 = por %p112, %p113
      %p115 = scmp.ne.s32.totalorder %s103, %s104
      %p116 = scmp.eq.s32.totalorder %s26, 1
      %p117 = por %p115, %p116
      %p119 = scmp.ne.s32.totalorder %s104, %s118
      %p120 = scmp.eq.s32.totalorder %s26, 0
      %p121 = por %p119, %p120
      %s123 = sadd.s32 %s122, 1
      %p126 = scmp.eq.s32.totalorder %s20, 1
      %p127 = scmp.ne.s32.totalorder %s122, %s124
      %p128 = scmp.eq.s32.totalorder %s20, 0
      %p129 = por %p127, %p128
      %p130 = scmp.ne.s32.totalorder %s122, %s124
      %p131 = scmp.eq.s32.totalorder %s25, 1
      %p132 = por %p130, %p131
      %p133 = scmp.ne.s32.totalorder %s124, %s125
      %p134 = scmp.eq.s32.totalorder %s25, 0
      %p135 = por %p133, %p134
      %p136 = scmp.ne.s32.totalorder %s124, %s125
      %p137 = scmp.eq.s32.totalorder %s26, 1
      %p138 = por %p136, %p137
      %p140 = scmp.ne.s32.totalorder %s125, %s139
      %p141 = scmp.eq.s32.totalorder %s26, 0
      %p142 = por %p140, %p141
      %s144 = sadd.s32 %s143, 1
      %p147 = scmp.eq.s32.totalorder %s20, 1
      %p148 = scmp.ne.s32.totalorder %s143, %s145
      %p149 = scmp.eq.s32.totalorder %s20, 0
      %p150 = por %p148, %p149
      %p151 = scmp.ne.s32.totalorder %s143, %s145
      %p152 = scmp.eq.s32.totalorder %s25, 1
      %p153 = por %p151, %p152
      %p154 = scmp.ne.s32.totalorder %s145, %s146
      %p155 = scmp.eq.s32.totalorder %s25, 0
      %p156 = por %p154, %p155
      %p157 = scmp.ne.s32.totalorder %s145, %s146
      %p158 = scmp.eq.s32.totalorder %s26, 1
      %p159 = por %p157, %p158
      %p161 = scmp.ne.s32.totalorder %s146, %s160
      %p162 = scmp.eq.s32.totalorder %s26, 0
      %p163 = por %p161, %p162
      %s165 = sadd.s32 %s164, 1
      %p168 = scmp.eq.s32.totalorder %s20, 1
      %p169 = scmp.ne.s32.totalorder %s164, %s166
      %p170 = scmp.eq.s32.totalorder %s20, 0
      %p171 = por %p169, %p170
      %p172 = scmp.ne.s32.totalorder %s164, %s166
      %p173 = scmp.eq.s32.totalorder %s25, 1
      %p174 = por %p172, %p173
      %p175 = scmp.ne.s32.totalorder %s166, %s167
      %p176 = scmp.eq.s32.totalorder %s25, 0
      %p177 = por %p175, %p176
      %p178 = scmp.ne.s32.totalorder %s166, %s167
      %p179 = scmp.eq.s32.totalorder %s26, 1
      %p180 = por %p178, %p179
      %p182 = scmp.ne.s32.totalorder %s167, %s181
      %p183 = scmp.eq.s32.totalorder %s26, 0
      %p184 = por %p182, %p183
      %s186 = sadd.s32 %s185, 1
      %p189 = scmp.eq.s32.totalorder %s20, 1
      %p190 = scmp.ne.s32.totalorder %s185, %s187
      %p191 = scmp.eq.s32.totalorder %s20, 0
      %p192 = por %p190, %p191
      %p193 = scmp.ne.s32.totalorder %s185, %s187
      %p194 = scmp.eq.s32.totalorder %s25, 1
      %p195 = por %p193, %p194
      %p196 = scmp.ne.s32.totalorder %s187, %s188
      %p197 = scmp.eq.s32.totalorder %s25, 0
      %p198 = por %p196, %p197
      %p199 = scmp.ne.s32.totalorder %s187, %s188
      %p200 = scmp.eq.s32.totalorder %s26, 1
      %p201 = por %p199, %p200
      %p203 = scmp.ne.s32.totalorder %s188, %s202
      %p204 = scmp.eq.s32.totalorder %s26, 0
      %p205 = por %p203, %p204
      %s207 = sadd.s32 %s206, 1
      %p210 = scmp.eq.s32.totalorder %s20, 1
      %p211 = scmp.ne.s32.totalorder %s206, %s208
      %p212 = scmp.eq.s32.totalorder %s20, 0
      %p213 = por %p211, %p212
      %p214 = scmp.ne.s32.totalorder %s206, %s208
      %p215 = scmp.eq.s32.totalorder %s25, 1
      %p216 = por %p214, %p215
      %p217 = scmp.ne.s32.totalorder %s208, %s209
      %p218 = scmp.eq.s32.totalorder %s25, 0
      %p219 = por %p217, %p218
      %p220 = scmp.ne.s32.totalorder %s208, %s209
      %p221 = scmp.eq.s32.totalorder %s26, 1
      %p222 = por %p220, %p221
      %p224 = scmp.ne.s32.totalorder %s209, %s223
      %p225 = scmp.eq.s32.totalorder %s26, 0
      %p226 = por %p224, %p225
      %s228 = sadd.s32 %s227, 1
      %p231 = scmp.eq.s32.totalorder %s20, 1
      %p232 = scmp.ne.s32.totalorder %s227, %s229
      %p233 = scmp.eq.s32.totalorder %s20, 0
      %p234 = por %p232, %p233
      %p235 = scmp.ne.s32.totalorder %s227, %s229
      %p236 = scmp.eq.s32.totalorder %s25, 1
      %p237 = por %p235, %p236
      %p238 = scmp.ne.s32.totalorder %s229, %s230
      %p239 = scmp.eq.s32.totalorder %s25, 0
      %p240 = por %p238, %p239
      %p241 = scmp.ne.s32.totalorder %s229, %s230
      %p242 = scmp.eq.s32.totalorder %s26, 1
      %p243 = por %p241, %p242
      %p245 = scmp.ne.s32.totalorder %s230, %s244
      %p246 = scmp.eq.s32.totalorder %s26, 0
      %p247 = por %p245, %p246
      %s249 = sadd.s32 %s248, 1
      %p252 = scmp.eq.s32.totalorder %s20, 1
      %p253 = scmp.ne.s32.totalorder %s248, %s250
      %p254 = scmp.eq.s32.totalorder %s20, 0
      %p255 = por %p253, %p254
      %p256 = scmp.ne.s32.totalorder %s248, %s250
      %p257 = scmp.eq.s32.totalorder %s25, 1
      %p258 = por %p256, %p257
      %p259 = scmp.ne.s32.totalorder %s250, %s251
      %p260 = scmp.eq.s32.totalorder %s25, 0
      %p261 = por %p259, %p260
      %p262 = scmp.ne.s32.totalorder %s250, %s251
      %p263 = scmp.eq.s32.totalorder %s26, 1
      %p264 = por %p262, %p263
      %p266 = scmp.ne.s32.totalorder %s251, %s265
      %p267 = scmp.eq.s32.totalorder %s26, 0
      %p268 = por %p266, %p267
      %s269 = ssub.s32 %s20, %s27
      %p270 = scmp.eq.s32.totalorder %s269, 0
      %s272 = sadd.s32 %s271, 1
      %s273 = scalar_select %p270, %s271, %s272
      %p276 = pneg %p270
      %p277 = scmp.eq.s32.totalorder %s20, 1
      %p278 = por %p276, %p277
      %p279 = scmp.ne.s32.totalorder %s271, %s274
      %p280 = scmp.eq.s32.totalorder %s20, 0
      %p281 = por %p279, %p280
      %p282 = scmp.ne.s32.totalorder %s271, %s274
      %p283 = scmp.eq.s32.totalorder %s25, 1
      %p284 = por %p282, %p283
      %p285 = scmp.ne.s32.totalorder %s274, %s275
      %p286 = scmp.eq.s32.totalorder %s25, 0
      %p287 = por %p285, %p286
      %p288 = scmp.ne.s32.totalorder %s274, %s275
      %p289 = scmp.eq.s32.totalorder %s26, 1
      %p290 = por %p288, %p289
      %p292 = scmp.ne.s32.totalorder %s275, %s291
      %p293 = scmp.eq.s32.totalorder %s26, 0
      %p294 = por %p292, %p293
      %s295 = ssub.s32 %s20, %s27
      %p296 = scmp.eq.s32.totalorder %s295, 0
      %s298 = sadd.s32 %s297, 1
      %s299 = scalar_select %p296, %s297, %s298
      %p302 = pneg %p296
      %p303 = scmp.eq.s32.totalorder %s20, 1
      %p304 = por %p302, %p303
      %p305 = scmp.ne.s32.totalorder %s297, %s300
      %p306 = scmp.eq.s32.totalorder %s20, 0
      %p307 = por %p305, %p306
      %p308 = scmp.ne.s32.totalorder %s297, %s300
      %p309 = scmp.eq.s32.totalorder %s25, 1
      %p310 = por %p308, %p309
      %p311 = scmp.ne.s32.totalorder %s300, %s301
      %p312 = scmp.eq.s32.totalorder %s25, 0
      %p313 = por %p311, %p312
      %p314 = scmp.ne.s32.totalorder %s300, %s301
      %p315 = scmp.eq.s32.totalorder %s26, 1
      %p316 = por %p314, %p315
      %p318 = scmp.ne.s32.totalorder %s301, %s317
      %p319 = scmp.eq.s32.totalorder %s26, 0
      %p320 = por %p318, %p319
      %p321 = scmp.le.s32.totalorder 1, %s20
      %p322 = scmp.lt.s32.totalorder %s20, 3
      %p323 = pnand %p321, %p322
      %p324 = pneg %p323
      // Predicated region
      $region9: #{_run.1} parent=5 // pred_check
        _
      $region10: #{_run.1} parent=5 // pred_check_branch
        %326 = sbr.rel (%p323) target = $region12
      $region11: #{_run.1} parent=5 // pred_region
        %s327 = ssub.s32 %s20, 1
        // Predicated region
        $region13: #{_run.1} parent=11 // pred_check
          %p328 = pneg %p93
        $region14: #{_run.1} parent=11 // pred_check_branch
          %330 = sbr.rel (%p328) target = $region16
        $region15: #{_run.1} parent=11 // pred_region
          _
        $region16: #{_run.1} parent=11 // pred_fallthru
          _
        // Predicated region
        $region17: #{_run.1} parent=11 // pred_check
          %p331 = pneg %p114
        $region18: #{_run.1} parent=11 // pred_check_branch
          %333 = sbr.rel (%p331) target = $region20
        $region19: #{_run.1} parent=11 // pred_region
          _
        $region20: #{_run.1} parent=11 // pred_fallthru
          _
        // Predicated region
        $region21: #{_run.1} parent=11 // pred_check
          %p334 = pneg %p135
        $region22: #{_run.1} parent=11 // pred_check_branch
          %336 = sbr.rel (%p334) target = $region24
        $region23: #{_run.1} parent=11 // pred_region
          _
        $region24: #{_run.1} parent=11 // pred_fallthru
          _
        // Predicated region
        $region25: #{_run.1} parent=11 // pred_check
          %p337 = pneg %p156
        $region26: #{_run.1} parent=11 // pred_check_branch
          %339 = sbr.rel (%p337) target = $region28
        $region27: #{_run.1} parent=11 // pred_region
          _
        $region28: #{_run.1} parent=11 // pred_fallthru
          _
        // Predicated region
        $region29: #{_run.1} parent=11 // pred_check
          %p340 = pneg %p177
        $region30: #{_run.1} parent=11 // pred_check_branch
          %342 = sbr.rel (%p340) target = $region32
        $region31: #{_run.1} parent=11 // pred_region
          _
        $region32: #{_run.1} parent=11 // pred_fallthru
          _
        // Predicated region
        $region33: #{_run.1} parent=11 // pred_check
          %p343 = pneg %p198
        $region34: #{_run.1} parent=11 // pred_check_branch
          %345 = sbr.rel (%p343) target = $region36
        $region35: #{_run.1} parent=11 // pred_region
          %347 = vsyncadd [#allocation7], 0
          %s348 = sshll.u32 %s7, 4
          %s349 = int_to_ptr.hbm [resolvable:$true] %s348
          %s350 = sshll.u32 [#allocation6], 4
          %s351 = int_to_ptr.vmem [resolvable:$true] %s350
          %356 = dma.hbm_to_vmem [thread:$0]  %s349, 12288, %s351, [#allocation7], 64, 64, 4
        $region36: #{_run.1} parent=11 // pred_fallthru
          _
        // Predicated region
        $region37: #{_run.1} parent=11 // pred_check
          %p357 = pneg %p219
        $region38: #{_run.1} parent=11 // pred_check_branch
          %359 = sbr.rel (%p357) target = $region40
        $region39: #{_run.1} parent=11 // pred_region
          _
        $region40: #{_run.1} parent=11 // pred_fallthru
          _
        // Predicated region
        $region41: #{_run.1} parent=11 // pred_check
          %p360 = pneg %p240
        $region42: #{_run.1} parent=11 // pred_check_branch
          %362 = sbr.rel (%p360) target = $region44
        $region43: #{_run.1} parent=11 // pred_region
          _
        $region44: #{_run.1} parent=11 // pred_fallthru
          _
        // Predicated region
        $region45: #{_run.1} parent=11 // pred_check
          %p363 = pneg %p261
        $region46: #{_run.1} parent=11 // pred_check_branch
          %365 = sbr.rel (%p363) target = $region48
        $region47: #{_run.1} parent=11 // pred_region
          _
        $region48: #{_run.1} parent=11 // pred_fallthru
          _
      $region12: #{_run.1} parent=5 // pred_fallthru
        _
      %p366 = scmp.lt.s32.totalorder %s20, 2
      // Predicated region
      $region49: #{_run.1} parent=5 // pred_check
        %p367 = pneg %p366
      $region50: #{_run.1} parent=5 // pred_check_branch
        %369 = sbr.rel (%p367) target = $region52
      $region51: #{_run.1} parent=5 // pred_region
        // Predicated region
        $region53: #{_run.1} parent=51 // pred_check
          %p370 = pneg %p40
        $region54: #{_run.1} parent=51 // pred_check_branch
          %372 = sbr.rel (%p370) target = $region56
        $region55: #{_run.1} parent=51 // pred_region
          %p373 = scmp.lt.s32.totalorder %s20, 1
          %s374 = scalar_select %p373, %s20, 1
          %s375 = smul.addr %s374, 2
          %s376 = smul.addr %s375, 8
          %s377 = scalar_lea.vmem %s0, %s376
        $region56: #{_run.1} parent=51 // pred_fallthru
          _
        // Predicated region
        $region57: #{_run.1} parent=51 // pred_check
          %p378 = pneg %p66
        $region58: #{_run.1} parent=51 // pred_check_branch
          %380 = sbr.rel (%p378) target = $region60
        $region59: #{_run.1} parent=51 // pred_region
          %p381 = scmp.lt.s32.totalorder %s20, 1
          %s382 = scalar_select %p381, %s20, 1
          %s383 = smul.addr %s382, 2
          %s384 = smul.addr %s383, 8
          %s385 = scalar_lea.vmem %s1, %s384
        $region60: #{_run.1} parent=51 // pred_fallthru
          _
      $region52: #{_run.1} parent=5 // pred_fallthru
        _
      %p386 = scmp.le.s32.totalorder 1, %s20
      %p387 = scmp.lt.s32.totalorder %s20, 3
      %p388 = pnand %p386, %p387
      %p389 = pneg %p388
      // Predicated region
      $region61: #{_run.1} parent=5 // pred_check
        _
      $region62: #{_run.1} parent=5 // pred_check_branch
        %391 = sbr.rel (%p388) target = $region64
      $region63: #{_run.1} parent=5 // pred_region
        %s392 = ssub.s32 %s20, 1
        // Predicated region
        $region65: #{_run.1} parent=63 // pred_check
          %p393 = pneg %p198
        $region66: #{_run.1} parent=63 // pred_check_branch
          %395 = sbr.rel (%p393) target = $region68
        $region67: #{_run.1} parent=63 // pred_region
          %397 = dma.done [#allocation7], 12288
        $region68: #{_run.1} parent=63 // pred_fallthru
          _
        %p398 = scmp.lt.s32.totalorder %s25, 1
        %s399 = scalar_select %p398, %s25, 1
        %s400 = smul.addr %s399, 2
        %s401 = smul.addr %s400, 8
        %s402 = scalar_lea.vmem %s0, %s401
        %p403 = pneg %p46
        %p404 = pneg %p43
        %p405 = scmp.lt.s32.totalorder %s25, 1
        %s406 = scalar_select %p405, %s25, 1
        %s407 = smul.addr %s406, 2
        %s408 = smul.addr %s407, 8
        %s409 = scalar_lea.vmem %s1, %s408
        %p410 = pneg %p72
        %p411 = pneg %p69
        %p412 = pneg %p93
        %p413 = pneg %p90
        %p414 = pneg %p114
        %p415 = pneg %p111
        %p416 = pneg %p135
        %p417 = pneg %p132
        %p418 = pneg %p156
        %p419 = pneg %p153
        %p420 = pneg %p177
        %p421 = pneg %p174
        %p422 = pneg %p198
        %p423 = pneg %p195
        %p424 = pneg %p219
        %p425 = pneg %p216
        %p426 = pneg %p240
        %p427 = pneg %p237
        %p428 = pneg %p261
        %p429 = pneg %p258
        %p430 = pneg %p287
        %p431 = pneg %p284
        %p432 = scmp.lt.s32.totalorder %s25, 1
        %s433 = scalar_select %p432, %s25, 1
        %s434 = smul.addr %s433, 2
        %s435 = smul.addr %s434, 8
        %s436 = scalar_lea.vmem %s11, %s435
        %p437 = pneg %p313
        %p438 = pneg %p310
        %p439 = scmp.lt.s32.totalorder %s25, 1
        %s440 = scalar_select %p439, %s25, 1
        %s441 = smul.addr %s440, 8
        %s442 = scalar_lea.vmem %s12, %s441
        %p443 = scmp.lt.s32.totalorder %s25, 1
        %s444 = scalar_select %p443, %s25, 1
        %s445 = smul.addr %s444, 2
        %s446 = smul.addr %s445, 8
        %s447 = scalar_lea.vmem %s0, %s446
        %p448 = scmp.lt.s32.totalorder %s25, 1
        %s449 = scalar_select %p448, %s25, 1
        %s450 = smul.addr %s449, 2
        %s451 = smul.addr %s450, 8
        %s452 = scalar_lea.vmem %s1, %s451
        %p453 = scmp.lt.s32.totalorder %s25, 1
        %s454 = scalar_select %p453, %s25, 1
        %s455 = smul.addr %s454, 2
        %s456 = smul.addr %s455, 8
        %s457 = scalar_lea.vmem %s11, %s456
        %p458 = scmp.lt.s32.totalorder %s25, 1
        %s459 = scalar_select %p458, %s25, 1
        %s460 = smul.addr %s459, 8
        %s461 = scalar_lea.vmem %s12, %s460
        %vm463 = vcmask 523264
        %464 = vst.msk [vmem:[#allocation2] sm:$0xff] %vm463, 0.0
        %465 = vst.msk [vmem:[#allocation2 + $0x8] sm:$0xff] %vm463, 0.0
        %vm466 = vcmask 517120
        %467 = vst.msk [vmem:[#allocation2 + $0x10] sm:$0x3] %vm466, 0.0
        %468 = vst [vmem:[#allocation3] sm:$0xff] 0.0
        %469 = vst [vmem:[#allocation3 + $0x8] sm:$0xff] 0.0
        %470 = vst [vmem:[#allocation3 + $0x10] sm:$0x3] 0.0
        %471 = vst [vmem:[#allocation4] sm:$0xff] 0.0
        %472 = vst [vmem:[#allocation4 + $0x8] sm:$0xff] 0.0
        %473 = vst [vmem:[#allocation4 + $0x10] sm:$0x3] 0.0
        %474 = vst [vmem:[#allocation5] sm:$0xff] 0.0
        %475 = vst [vmem:[#allocation5 + $0x8] sm:$0xff] 0.0
        %476 = vst [vmem:[#allocation5 + $0x10] sm:$0x3] 0.0
        %v477 = vld [vmem:[%s447] sm:$0xff]
        %v478 = vld [vmem:[%s447 + $0x8] sm:$0xff]
        %479 = vst.msk [vmem:[#allocation2 + $0x1] sm:$0xff] %vm463, %v477
        %480 = vst.msk [vmem:[#allocation2 + $0x9] sm:$0xff] %vm463, %v478
        %v481 = vld [vmem:[%s452] sm:$0xff]
        %v482 = vld [vmem:[%s452 + $0x8] sm:$0xff]
        %483 = vst [vmem:[#allocation3 + $0x1] sm:$0xff] %v481
        %484 = vst [vmem:[#allocation3 + $0x9] sm:$0xff] %v482
        %v485 = vld [vmem:[%s3] sm:$0x1]
        %v487 = vperm.slane %v485, 0
        %v489 = vld [vmem:[#allocation2] sm:$0xff]
        %v490 = vld [vmem:[#allocation2 + $0x8] sm:$0xff]
        %v491 = vpack.c.bf16 %v490, %v489
        %v492 = vld [vmem:[%s2] sm:$0xf]
        %v493 = vld [vmem:[%s2 + $0x4] sm:$0xf]
        %v494 = vld [vmem:[%s2 + $0x8] sm:$0xf]
        %v495 = vld [vmem:[%s2 + $0xc] sm:$0xf]
        %v496 = vld [vmem:[%s2 + $0x10] sm:$0xf]
        %v497 = vld [vmem:[%s2 + $0x14] sm:$0xf]
        %v498 = vld [vmem:[%s2 + $0x18] sm:$0xf]
        %v499 = vld [vmem:[%s2 + $0x1c] sm:$0xf]
        %v508 = vunpack.c.l.b16 %v492
        %v509 = vunpack.c.l.b16 %v493
        %v510 = vunpack.c.l.b16 %v494
        %v511 = vunpack.c.l.b16 %v495
        %v512 = vunpack.c.l.b16 %v496
        %v513 = vunpack.c.l.b16 %v497
        %v514 = vunpack.c.l.b16 %v498
        %v515 = vunpack.c.l.b16 %v499
        %v516 = vpack.c.b16 %v509, %v508
        %v517 = vpack.c.b16 %v511, %v510
        %v518 = vpack.c.b16 %v513, %v512
        %v519 = vpack.c.b16 %v515, %v514
        %v525 = vsel %vm463, %v491, 0
        %527 = vmatpush.bf16.msra.mxu0 0
        %528 = vmatpush.bf16.msra.mxu0 0
        %529 = vmatpush.bf16.msra.mxu0 0
        %530 = vmatpush.bf16.msra.mxu0 0
        %531 = vmatpush.bf16.msra.mxu0 %v519
        %532 = vmatpush.bf16.msra.mxu0 %v518
        %533 = vmatpush.bf16.msra.mxu0 %v517
        %534 = vmatpush.bf16.msra.mxu0 %v516
        %535 = vmatmul.bf16.gmra.mxu0 %v525
        %v536 = vpop.f32.mrf.mxu0
        %v537 = vadd.f32 0.0, %v536
        %v538 = vpop.f32.mrf.mxu0
        %v539 = vadd.f32 0.0, %v538
        %540 = vdwg.mxu0
        %v541 = vadd.f32 %v487, %v537
        %v542 = vadd.f32 %v487, %v539
        %v543 = vld [vmem:[#allocation2 + $0x1] sm:$0xff]
        %v544 = vld [vmem:[#allocation2 + $0x9] sm:$0xff]
        %v545 = vpack.c.bf16 %v544, %v543
        %s546 = scalar_lea.vmem %s2, 32
        %v547 = vld [vmem:[%s546] sm:$0xf]
        %v548 = vld [vmem:[%s546 + $0x4] sm:$0xf]
        %v549 = vld [vmem:[%s546 + $0x8] sm:$0xf]
        %v550 = vld [vmem:[%s546 + $0xc] sm:$0xf]
        %v551 = vld [vmem:[%s546 + $0x10] sm:$0xf]
        %v552 = vld [vmem:[%s546 + $0x14] sm:$0xf]
        %v553 = vld [vmem:[%s546 + $0x18] sm:$0xf]
        %v554 = vld [vmem:[%s546 + $0x1c] sm:$0xf]
        %v563 = vunpack.c.l.b16 %v547
        %v564 = vunpack.c.l.b16 %v548
        %v565 = vunpack.c.l.b16 %v549
        %v566 = vunpack.c.l.b16 %v550
        %v567 = vunpack.c.l.b16 %v551
        %v568 = vunpack.c.l.b16 %v552
        %v569 = vunpack.c.l.b16 %v553
        %v570 = vunpack.c.l.b16 %v554
        %v571 = vpack.c.b16 %v564, %v563
        %v572 = vpack.c.b16 %v566, %v565
        %v573 = vpack.c.b16 %v568, %v567
        %v574 = vpack.c.b16 %v570, %v569
        %v580 = vsel %vm463, %v545, 0
        %582 = vmatpush.bf16.msra.mxu0 0
        %583 = vmatpush.bf16.msra.mxu0 0
        %584 = vmatpush.bf16.msra.mxu0 0
        %585 = vmatpush.bf16.msra.mxu0 0
        %586 = vmatpush.bf16.msra.mxu0 %v574
        %587 = vmatpush.bf16.msra.mxu0 %v573
        %588 = vmatpush.bf16.msra.mxu0 %v572
        %589 = vmatpush.bf16.msra.mxu0 %v571
        %590 = vmatmul.bf16.gmra.mxu0 %v580
        %v591 = vpop.f32.mrf.mxu0
        %v592 = vadd.f32 0.0, %v591
        %v593 = vpop.f32.mrf.mxu0
        %v594 = vadd.f32 0.0, %v593
        %595 = vdwg.mxu0
        %v596 = vadd.f32 %v541, %v592
        %v597 = vadd.f32 %v542, %v594
        %v598 = vld [vmem:[#allocation2 + $0x2] sm:$0xff]
        %v599 = vld [vmem:[#allocation2 + $0xa] sm:$0xff]
        %v600 = vpack.c.bf16 %v599, %v598
        %s601 = scalar_lea.vmem %s2, 64
        %v602 = vld [vmem:[%s601] sm:$0xf]
        %v603 = vld [vmem:[%s601 + $0x4] sm:$0xf]
        %v604 = vld [vmem:[%s601 + $0x8] sm:$0xf]
        %v605 = vld [vmem:[%s601 + $0xc] sm:$0xf]
        %v606 = vld [vmem:[%s601 + $0x10] sm:$0xf]
        %v607 = vld [vmem:[%s601 + $0x14] sm:$0xf]
        %v608 = vld [vmem:[%s601 + $0x18] sm:$0xf]
        %v609 = vld [vmem:[%s601 + $0x1c] sm:$0xf]
        %v618 = vunpack.c.l.b16 %v602
        %v619 = vunpack.c.l.b16 %v603
        %v620 = vunpack.c.l.b16 %v604
        %v621 = vunpack.c.l.b16 %v605
        %v622 = vunpack.c.l.b16 %v606
        %v623 = vunpack.c.l.b16 %v607
        %v624 = vunpack.c.l.b16 %v608
        %v625 = vunpack.c.l.b16 %v609
        %v626 = vpack.c.b16 %v619, %v618
        %v627 = vpack.c.b16 %v621, %v620
        %v628 = vpack.c.b16 %v623, %v622
        %v629 = vpack.c.b16 %v625, %v624
        %v635 = vsel %vm463, %v600, 0
        %637 = vmatpush.bf16.msra.mxu0 0
        %638 = vmatpush.bf16.msra.mxu0 0
        %639 = vmatpush.bf16.msra.mxu0 0
        %640 = vmatpush.bf16.msra.mxu0 0
        %641 = vmatpush.bf16.msra.mxu0 %v629
        %642 = vmatpush.bf16.msra.mxu0 %v628
        %643 = vmatpush.bf16.msra.mxu0 %v627
        %644 = vmatpush.bf16.msra.mxu0 %v626
        %645 = vmatmul.bf16.gmra.mxu0 %v635
        %v646 = vpop.f32.mrf.mxu0
        %v647 = vadd.f32 0.0, %v646
        %v648 = vpop.f32.mrf.mxu0
        %v649 = vadd.f32 0.0, %v648
        %650 = vdwg.mxu0
        %v651 = vadd.f32 %v596, %v647
        %v652 = vadd.f32 %v597, %v649
        %vm653 = vcmp.ge.f32.partialorder %v651, 0.0
        %vm654 = vcmp.ge.f32.partialorder %v652, 0.0
        %v655 = vmul.f32 %v651, 0.04
        %v656 = vmul.f32 %v652, 0.04
        %v657 = vsel %vm653, %v651, %v655
        %v658 = vsel %vm654, %v652, %v656
        %659 = vst [vmem:[#allocation4 + $0x1] sm:$0xff] %v657
        %660 = vst [vmem:[#allocation4 + $0x9] sm:$0xff] %v658
        %v661 = vld [vmem:[%s6] sm:$0x1]
        %v663 = vperm.slane %v661, 0
        %v665 = vld [vmem:[#allocation4] sm:$0xff]
        %v666 = vld [vmem:[#allocation4 + $0x8] sm:$0xff]
        %v667 = vpack.c.bf16 %v666, %v665
        %v668 = vld [vmem:[%s4] sm:$0xf]
        %v669 = vld [vmem:[%s4 + $0x4] sm:$0xf]
        %v670 = vld [vmem:[%s4 + $0x8] sm:$0xf]
        %v671 = vld [vmem:[%s4 + $0xc] sm:$0xf]
        %v672 = vld [vmem:[%s4 + $0x10] sm:$0xf]
        %v673 = vld [vmem:[%s4 + $0x14] sm:$0xf]
        %v674 = vld [vmem:[%s4 + $0x18] sm:$0xf]
        %v675 = vld [vmem:[%s4 + $0x1c] sm:$0xf]
        %v676 = vld [vmem:[%s4 + $0x20] sm:$0xf]
        %v677 = vld [vmem:[%s4 + $0x24] sm:$0xf]
        %v678 = vld [vmem:[%s4 + $0x28] sm:$0xf]
        %v679 = vld [vmem:[%s4 + $0x2c] sm:$0xf]
        %v680 = vld [vmem:[%s4 + $0x30] sm:$0xf]
        %v681 = vld [vmem:[%s4 + $0x34] sm:$0xf]
        %v682 = vld [vmem:[%s4 + $0x38] sm:$0xf]
        %v683 = vld [vmem:[%s4 + $0x3c] sm:$0xf]
        %v700 = vunpack.c.l.b16 %v668
        %v701 = vunpack.c.l.b16 %v669
        %v702 = vunpack.c.l.b16 %v670
        %v703 = vunpack.c.l.b16 %v671
        %v704 = vunpack.c.l.b16 %v672
        %v705 = vunpack.c.l.b16 %v673
        %v706 = vunpack.c.l.b16 %v674
        %v707 = vunpack.c.l.b16 %v675
        %v708 = vunpack.c.l.b16 %v676
        %v709 = vunpack.c.l.b16 %v677
        %v710 = vunpack.c.l.b16 %v678
        %v711 = vunpack.c.l.b16 %v679
        %v712 = vunpack.c.l.b16 %v680
        %v713 = vunpack.c.l.b16 %v681
        %v714 = vunpack.c.l.b16 %v682
        %v715 = vunpack.c.l.b16 %v683
        %v716 = vpack.c.b16 %v701, %v700
        %v717 = vpack.c.b16 %v703, %v702
        %v718 = vpack.c.b16 %v705, %v704
        %v719 = vpack.c.b16 %v707, %v706
        %v720 = vpack.c.b16 %v709, %v708
        %v721 = vpack.c.b16 %v711, %v710
        %v722 = vpack.c.b16 %v713, %v712
        %v723 = vpack.c.b16 %v715, %v714
        %732 = vmatpush.bf16.msra.mxu0 %v723
        %733 = vmatpush.bf16.msra.mxu0 %v722
        %734 = vmatpush.bf16.msra.mxu0 %v721
        %735 = vmatpush.bf16.msra.mxu0 %v720
        %736 = vmatpush.bf16.msra.mxu0 %v719
        %737 = vmatpush.bf16.msra.mxu0 %v718
        %738 = vmatpush.bf16.msra.mxu0 %v717
        %739 = vmatpush.bf16.msra.mxu0 %v716
        %740 = vmatmul.bf16.gmra.mxu0 %v667
        %v741 = vpop.f32.mrf.mxu0
        %v742 = vadd.f32 0.0, %v741
        %v743 = vpop.f32.mrf.mxu0
        %v744 = vadd.f32 0.0, %v743
        %745 = vdwg.mxu0
        %v746 = vadd.f32 %v663, %v742
        %v747 = vadd.f32 %v663, %v744
        %v748 = vld [vmem:[#allocation4 + $0x1] sm:$0xff]
        %v749 = vld [vmem:[#allocation4 + $0x9] sm:$0xff]
        %v750 = vpack.c.bf16 %v749, %v748
        %s751 = scalar_lea.vmem %s4, 64
        %v752 = vld [vmem:[%s751] sm:$0xf]
        %v753 = vld [vmem:[%s751 + $0x4] sm:$0xf]
        %v754 = vld [vmem:[%s751 + $0x8] sm:$0xf]
        %v755 = vld [vmem:[%s751 + $0xc] sm:$0xf]
        %v756 = vld [vmem:[%s751 + $0x10] sm:$0xf]
        %v757 = vld [vmem:[%s751 + $0x14] sm:$0xf]
        %v758 = vld [vmem:[%s751 + $0x18] sm:$0xf]
        %v759 = vld [vmem:[%s751 + $0x1c] sm:$0xf]
        %v760 = vld [vmem:[%s751 + $0x20] sm:$0xf]
        %v761 = vld [vmem:[%s751 + $0x24] sm:$0xf]
        %v762 = vld [vmem:[%s751 + $0x28] sm:$0xf]
        %v763 = vld [vmem:[%s751 + $0x2c] sm:$0xf]
        %v764 = vld [vmem:[%s751 + $0x30] sm:$0xf]
        %v765 = vld [vmem:[%s751 + $0x34] sm:$0xf]
        %v766 = vld [vmem:[%s751 + $0x38] sm:$0xf]
        %v767 = vld [vmem:[%s751 + $0x3c] sm:$0xf]
        %v784 = vunpack.c.l.b16 %v752
        %v785 = vunpack.c.l.b16 %v753
        %v786 = vunpack.c.l.b16 %v754
        %v787 = vunpack.c.l.b16 %v755
        %v788 = vunpack.c.l.b16 %v756
        %v789 = vunpack.c.l.b16 %v757
        %v790 = vunpack.c.l.b16 %v758
        %v791 = vunpack.c.l.b16 %v759
        %v792 = vunpack.c.l.b16 %v760
        %v793 = vunpack.c.l.b16 %v761
        %v794 = vunpack.c.l.b16 %v762
        %v795 = vunpack.c.l.b16 %v763
        %v796 = vunpack.c.l.b16 %v764
        %v797 = vunpack.c.l.b16 %v765
        %v798 = vunpack.c.l.b16 %v766
        %v799 = vunpack.c.l.b16 %v767
        %v800 = vpack.c.b16 %v785, %v784
        %v801 = vpack.c.b16 %v787, %v786
        %v802 = vpack.c.b16 %v789, %v788
        %v803 = vpack.c.b16 %v791, %v790
        %v804 = vpack.c.b16 %v793, %v792
        %v805 = vpack.c.b16 %v795, %v794
        %v806 = vpack.c.b16 %v797, %v796
        %v807 = vpack.c.b16 %v799, %v798
        %816 = vmatpush.bf16.msra.mxu0 %v807
        %817 = vmatpush.bf16.msra.mxu0 %v806
        %818 = vmatpush.bf16.msra.mxu0 %v805
        %819 = vmatpush.bf16.msra.mxu0 %v804
        %820 = vmatpush.bf16.msra.mxu0 %v803
        %821 = vmatpush.bf16.msra.mxu0 %v802
        %822 = vmatpush.bf16.msra.mxu0 %v801
        %823 = vmatpush.bf16.msra.mxu0 %v800
        %824 = vmatmul.bf16.gmra.mxu0 %v750
        %v825 = vpop.f32.mrf.mxu0
        %v826 = vadd.f32 0.0, %v825
        %v827 = vpop.f32.mrf.mxu0
        %v828 = vadd.f32 0.0, %v827
        %829 = vdwg.mxu0
        %v830 = vadd.f32 %v746, %v826
        %v831 = vadd.f32 %v747, %v828
        %v832 = vld [vmem:[#allocation4 + $0x2] sm:$0xff]
        %v833 = vld [vmem:[#allocation4 + $0xa] sm:$0xff]
        %v834 = vpack.c.bf16 %v833, %v832
        %s835 = scalar_lea.vmem %s4, 128
        %v836 = vld [vmem:[%s835] sm:$0xf]
        %v837 = vld [vmem:[%s835 + $0x4] sm:$0xf]
        %v838 = vld [vmem:[%s835 + $0x8] sm:$0xf]
        %v839 = vld [vmem:[%s835 + $0xc] sm:$0xf]
        %v840 = vld [vmem:[%s835 + $0x10] sm:$0xf]
        %v841 = vld [vmem:[%s835 + $0x14] sm:$0xf]
        %v842 = vld [vmem:[%s835 + $0x18] sm:$0xf]
        %v843 = vld [vmem:[%s835 + $0x1c] sm:$0xf]
        %v844 = vld [vmem:[%s835 + $0x20] sm:$0xf]
        %v845 = vld [vmem:[%s835 + $0x24] sm:$0xf]
        %v846 = vld [vmem:[%s835 + $0x28] sm:$0xf]
        %v847 = vld [vmem:[%s835 + $0x2c] sm:$0xf]
        %v848 = vld [vmem:[%s835 + $0x30] sm:$0xf]
        %v849 = vld [vmem:[%s835 + $0x34] sm:$0xf]
        %v850 = vld [vmem:[%s835 + $0x38] sm:$0xf]
        %v851 = vld [vmem:[%s835 + $0x3c] sm:$0xf]
        %v868 = vunpack.c.l.b16 %v836
        %v869 = vunpack.c.l.b16 %v837
        %v870 = vunpack.c.l.b16 %v838
        %v871 = vunpack.c.l.b16 %v839
        %v872 = vunpack.c.l.b16 %v840
        %v873 = vunpack.c.l.b16 %v841
        %v874 = vunpack.c.l.b16 %v842
        %v875 = vunpack.c.l.b16 %v843
        %v876 = vunpack.c.l.b16 %v844
        %v877 = vunpack.c.l.b16 %v845
        %v878 = vunpack.c.l.b16 %v846
        %v879 = vunpack.c.l.b16 %v847
        %v880 = vunpack.c.l.b16 %v848
        %v881 = vunpack.c.l.b16 %v849
        %v882 = vunpack.c.l.b16 %v850
        %v883 = vunpack.c.l.b16 %v851
        %v884 = vpack.c.b16 %v869, %v868
        %v885 = vpack.c.b16 %v871, %v870
        %v886 = vpack.c.b16 %v873, %v872
        %v887 = vpack.c.b16 %v875, %v874
        %v888 = vpack.c.b16 %v877, %v876
        %v889 = vpack.c.b16 %v879, %v878
        %v890 = vpack.c.b16 %v881, %v880
        %v891 = vpack.c.b16 %v883, %v882
        %900 = vmatpush.bf16.msra.mxu0 %v891
        %901 = vmatpush.bf16.msra.mxu0 %v890
        %902 = vmatpush.bf16.msra.mxu0 %v889
        %903 = vmatpush.bf16.msra.mxu0 %v888
        %904 = vmatpush.bf16.msra.mxu0 %v887
        %905 = vmatpush.bf16.msra.mxu0 %v886
        %906 = vmatpush.bf16.msra.mxu0 %v885
        %907 = vmatpush.bf16.msra.mxu0 %v884
        %908 = vmatmul.bf16.gmra.mxu0 %v834
        %v909 = vpop.f32.mrf.mxu0
        %v910 = vadd.f32 0.0, %v909
        %v911 = vpop.f32.mrf.mxu0
        %v912 = vadd.f32 0.0, %v911
        %913 = vdwg.mxu0
        %v914 = vadd.f32 %v830, %v910
        %v915 = vadd.f32 %v831, %v912
        %v916 = vld [vmem:[#allocation3] sm:$0xff]
        %v917 = vld [vmem:[#allocation3 + $0x8] sm:$0xff]
        %v918 = vpack.c.bf16 %v917, %v916
        %v919 = vld [vmem:[%s5] sm:$0xf]
        %v920 = vld [vmem:[%s5 + $0x4] sm:$0xf]
        %v921 = vld [vmem:[%s5 + $0x8] sm:$0xf]
        %v922 = vld [vmem:[%s5 + $0xc] sm:$0xf]
        %v923 = vld [vmem:[%s5 + $0x10] sm:$0xf]
        %v924 = vld [vmem:[%s5 + $0x14] sm:$0xf]
        %v925 = vld [vmem:[%s5 + $0x18] sm:$0xf]
        %v926 = vld [vmem:[%s5 + $0x1c] sm:$0xf]
        %v927 = vld [vmem:[%s5 + $0x20] sm:$0xf]
        %v928 = vld [vmem:[%s5 + $0x24] sm:$0xf]
        %v929 = vld [vmem:[%s5 + $0x28] sm:$0xf]
        %v930 = vld [vmem:[%s5 + $0x2c] sm:$0xf]
        %v931 = vld [vmem:[%s5 + $0x30] sm:$0xf]
        %v932 = vld [vmem:[%s5 + $0x34] sm:$0xf]
        %v933 = vld [vmem:[%s5 + $0x38] sm:$0xf]
        %v934 = vld [vmem:[%s5 + $0x3c] sm:$0xf]
        %v951 = vunpack.c.l.b16 %v919
        %v952 = vunpack.c.l.b16 %v920
        %v953 = vunpack.c.l.b16 %v921
        %v954 = vunpack.c.l.b16 %v922
        %v955 = vunpack.c.l.b16 %v923
        %v956 = vunpack.c.l.b16 %v924
        %v957 = vunpack.c.l.b16 %v925
        %v958 = vunpack.c.l.b16 %v926
        %v959 = vunpack.c.l.b16 %v927
        %v960 = vunpack.c.l.b16 %v928
        %v961 = vunpack.c.l.b16 %v929
        %v962 = vunpack.c.l.b16 %v930
        %v963 = vunpack.c.l.b16 %v931
        %v964 = vunpack.c.l.b16 %v932
        %v965 = vunpack.c.l.b16 %v933
        %v966 = vunpack.c.l.b16 %v934
        %v967 = vpack.c.b16 %v952, %v951
        %v968 = vpack.c.b16 %v954, %v953
        %v969 = vpack.c.b16 %v956, %v955
        %v970 = vpack.c.b16 %v958, %v957
        %v971 = vpack.c.b16 %v960, %v959
        %v972 = vpack.c.b16 %v962, %v961
        %v973 = vpack.c.b16 %v964, %v963
        %v974 = vpack.c.b16 %v966, %v965
        %983 = vmatpush.bf16.msra.mxu0 %v974
        %984 = vmatpush.bf16.msra.mxu0 %v973
        %985 = vmatpush.bf16.msra.mxu0 %v972
        %986 = vmatpush.bf16.msra.mxu0 %v971
        %987 = vmatpush.bf16.msra.mxu0 %v970
        %988 = vmatpush.bf16.msra.mxu0 %v969
        %989 = vmatpush.bf16.msra.mxu0 %v968
        %990 = vmatpush.bf16.msra.mxu0 %v967
        %991 = vmatmul.bf16.gmra.mxu0 %v918
        %v992 = vpop.f32.mrf.mxu0
        %v993 = vadd.f32 0.0, %v992
        %v994 = vpop.f32.mrf.mxu0
        %v995 = vadd.f32 0.0, %v994
        %996 = vdwg.mxu0
        %v997 = vadd.f32 %v914, %v993
        %v998 = vadd.f32 %v915, %v995
        %v999 = vld [vmem:[#allocation3 + $0x1] sm:$0xff]
        %v1000 = vld [vmem:[#allocation3 + $0x9] sm:$0xff]
        %v1001 = vpack.c.bf16 %v1000, %v999
        %s1002 = scalar_lea.vmem %s5, 64
        %v1003 = vld [vmem:[%s1002] sm:$0xf]
        %v1004 = vld [vmem:[%s1002 + $0x4] sm:$0xf]
        %v1005 = vld [vmem:[%s1002 + $0x8] sm:$0xf]
        %v1006 = vld [vmem:[%s1002 + $0xc] sm:$0xf]
        %v1007 = vld [vmem:[%s1002 + $0x10] sm:$0xf]
        %v1008 = vld [vmem:[%s1002 + $0x14] sm:$0xf]
        %v1009 = vld [vmem:[%s1002 + $0x18] sm:$0xf]
        %v1010 = vld [vmem:[%s1002 + $0x1c] sm:$0xf]
        %v1011 = vld [vmem:[%s1002 + $0x20] sm:$0xf]
        %v1012 = vld [vmem:[%s1002 + $0x24] sm:$0xf]
        %v1013 = vld [vmem:[%s1002 + $0x28] sm:$0xf]
        %v1014 = vld [vmem:[%s1002 + $0x2c] sm:$0xf]
        %v1015 = vld [vmem:[%s1002 + $0x30] sm:$0xf]
        %v1016 = vld [vmem:[%s1002 + $0x34] sm:$0xf]
        %v1017 = vld [vmem:[%s1002 + $0x38] sm:$0xf]
        %v1018 = vld [vmem:[%s1002 + $0x3c] sm:$0xf]
        %v1035 = vunpack.c.l.b16 %v1003
        %v1036 = vunpack.c.l.b16 %v1004
        %v1037 = vunpack.c.l.b16 %v1005
        %v1038 = vunpack.c.l.b16 %v1006
        %v1039 = vunpack.c.l.b16 %v1007
        %v1040 = vunpack.c.l.b16 %v1008
        %v1041 = vunpack.c.l.b16 %v1009
        %v1042 = vunpack.c.l.b16 %v1010
        %v1043 = vunpack.c.l.b16 %v1011
        %v1044 = vunpack.c.l.b16 %v1012
        %v1045 = vunpack.c.l.b16 %v1013
        %v1046 = vunpack.c.l.b16 %v1014
        %v1047 = vunpack.c.l.b16 %v1015
        %v1048 = vunpack.c.l.b16 %v1016
        %v1049 = vunpack.c.l.b16 %v1017
        %v1050 = vunpack.c.l.b16 %v1018
        %v1051 = vpack.c.b16 %v1036, %v1035
        %v1052 = vpack.c.b16 %v1038, %v1037
        %v1053 = vpack.c.b16 %v1040, %v1039
        %v1054 = vpack.c.b16 %v1042, %v1041
        %v1055 = vpack.c.b16 %v1044, %v1043
        %v1056 = vpack.c.b16 %v1046, %v1045
        %v1057 = vpack.c.b16 %v1048, %v1047
        %v1058 = vpack.c.b16 %v1050, %v1049
        %1067 = vmatpush.bf16.msra.mxu0 %v1058
        %1068 = vmatpush.bf16.msra.mxu0 %v1057
        %1069 = vmatpush.bf16.msra.mxu0 %v1056
        %1070 = vmatpush.bf16.msra.mxu0 %v1055
        %1071 = vmatpush.bf16.msra.mxu0 %v1054
        %1072 = vmatpush.bf16.msra.mxu0 %v1053
        %1073 = vmatpush.bf16.msra.mxu0 %v1052
        %1074 = vmatpush.bf16.msra.mxu0 %v1051
        %1075 = vmatmul.bf16.gmra.mxu0 %v1001
        %v1076 = vpop.f32.mrf.mxu0
        %v1077 = vadd.f32 0.0, %v1076
        %v1078 = vpop.f32.mrf.mxu0
        %v1079 = vadd.f32 0.0, %v1078
        %1080 = vdwg.mxu0
        %v1081 = vadd.f32 %v997, %v1077
        %v1082 = vadd.f32 %v998, %v1079
        %v1083 = vld [vmem:[#allocation3 + $0x2] sm:$0xff]
        %v1084 = vld [vmem:[#allocation3 + $0xa] sm:$0xff]
        %v1085 = vpack.c.bf16 %v1084, %v1083
        %s1086 = scalar_lea.vmem %s5, 128
        %v1087 = vld [vmem:[%s1086] sm:$0xf]
        %v1088 = vld [vmem:[%s1086 + $0x4] sm:$0xf]
        %v1089 = vld [vmem:[%s1086 + $0x8] sm:$0xf]
        %v1090 = vld [vmem:[%s1086 + $0xc] sm:$0xf]
        %v1091 = vld [vmem:[%s1086 + $0x10] sm:$0xf]
        %v1092 = vld [vmem:[%s1086 + $0x14] sm:$0xf]
        %v1093 = vld [vmem:[%s1086 + $0x18] sm:$0xf]
        %v1094 = vld [vmem:[%s1086 + $0x1c] sm:$0xf]
        %v1095 = vld [vmem:[%s1086 + $0x20] sm:$0xf]
        %v1096 = vld [vmem:[%s1086 + $0x24] sm:$0xf]
        %v1097 = vld [vmem:[%s1086 + $0x28] sm:$0xf]
        %v1098 = vld [vmem:[%s1086 + $0x2c] sm:$0xf]
        %v1099 = vld [vmem:[%s1086 + $0x30] sm:$0xf]
        %v1100 = vld [vmem:[%s1086 + $0x34] sm:$0xf]
        %v1101 = vld [vmem:[%s1086 + $0x38] sm:$0xf]
        %v1102 = vld [vmem:[%s1086 + $0x3c] sm:$0xf]
        %v1119 = vunpack.c.l.b16 %v1087
        %v1120 = vunpack.c.l.b16 %v1088
        %v1121 = vunpack.c.l.b16 %v1089
        %v1122 = vunpack.c.l.b16 %v1090
        %v1123 = vunpack.c.l.b16 %v1091
        %v1124 = vunpack.c.l.b16 %v1092
        %v1125 = vunpack.c.l.b16 %v1093
        %v1126 = vunpack.c.l.b16 %v1094
        %v1127 = vunpack.c.l.b16 %v1095
        %v1128 = vunpack.c.l.b16 %v1096
        %v1129 = vunpack.c.l.b16 %v1097
        %v1130 = vunpack.c.l.b16 %v1098
        %v1131 = vunpack.c.l.b16 %v1099
        %v1132 = vunpack.c.l.b16 %v1100
        %v1133 = vunpack.c.l.b16 %v1101
        %v1134 = vunpack.c.l.b16 %v1102
        %v1135 = vpack.c.b16 %v1120, %v1119
        %v1136 = vpack.c.b16 %v1122, %v1121
        %v1137 = vpack.c.b16 %v1124, %v1123
        %v1138 = vpack.c.b16 %v1126, %v1125
        %v1139 = vpack.c.b16 %v1128, %v1127
        %v1140 = vpack.c.b16 %v1130, %v1129
        %v1141 = vpack.c.b16 %v1132, %v1131
        %v1142 = vpack.c.b16 %v1134, %v1133
        %1151 = vmatpush.bf16.msra.mxu0 %v1142
        %1152 = vmatpush.bf16.msra.mxu0 %v1141
        %1153 = vmatpush.bf16.msra.mxu0 %v1140
        %1154 = vmatpush.bf16.msra.mxu0 %v1139
        %1155 = vmatpush.bf16.msra.mxu0 %v1138
        %1156 = vmatpush.bf16.msra.mxu0 %v1137
        %1157 = vmatpush.bf16.msra.mxu0 %v1136
        %1158 = vmatpush.bf16.msra.mxu0 %v1135
        %1159 = vmatmul.bf16.gmra.mxu0 %v1085
        %v1160 = vpop.f32.mrf.mxu0
        %v1161 = vadd.f32 0.0, %v1160
        %v1162 = vpop.f32.mrf.mxu0
        %v1163 = vadd.f32 0.0, %v1162
        %1164 = vdwg.mxu0
        %v1165 = vadd.f32 %v1081, %v1161
        %v1166 = vadd.f32 %v1082, %v1163
        %vm1167 = vcmp.ge.f32.partialorder %v1165, 0.0
        %vm1168 = vcmp.ge.f32.partialorder %v1166, 0.0
        %v1169 = vmul.f32 %v1165, 0.1
        %v1170 = vmul.f32 %v1166, 0.1
        %v1171 = vsel %vm1167, %v1165, %v1169
        %v1172 = vsel %vm1168, %v1166, %v1170
        %1173 = vst [vmem:[#allocation5 + $0x1] sm:$0xff] %v1171
        %1174 = vst [vmem:[#allocation5 + $0x9] sm:$0xff] %v1172
        %v1175 = vld [vmem:[%s8] sm:$0x1]
        %v1176 = vperm.slane %v1175, 0
        %v1177 = vld [vmem:[#allocation5] sm:$0xff]
        %v1178 = vld [vmem:[#allocation5 + $0x8] sm:$0xff]
        %v1179 = vpack.c.bf16 %v1178, %v1177
        %v1180 = vld [vmem:[#allocation6] sm:$0xf]
        %v1181 = vld [vmem:[#allocation6 + $0x4] sm:$0xf]
        %v1182 = vld [vmem:[#allocation6 + $0x8] sm:$0xf]
        %v1183 = vld [vmem:[#allocation6 + $0xc] sm:$0xf]
        %v1184 = vld [vmem:[#allocation6 + $0x10] sm:$0xf]
        %v1185 = vld [vmem:[#allocation6 + $0x14] sm:$0xf]
        %v1186 = vld [vmem:[#allocation6 + $0x18] sm:$0xf]
        %v1187 = vld [vmem:[#allocation6 + $0x1c] sm:$0xf]
        %v1188 = vld [vmem:[#allocation6 + $0x20] sm:$0xf]
        %v1189 = vld [vmem:[#allocation6 + $0x24] sm:$0xf]
        %v1190 = vld [vmem:[#allocation6 + $0x28] sm:$0xf]
        %v1191 = vld [vmem:[#allocation6 + $0x2c] sm:$0xf]
        %v1192 = vld [vmem:[#allocation6 + $0x30] sm:$0xf]
        %v1193 = vld [vmem:[#allocation6 + $0x34] sm:$0xf]
        %v1194 = vld [vmem:[#allocation6 + $0x38] sm:$0xf]
        %v1195 = vld [vmem:[#allocation6 + $0x3c] sm:$0xf]
        %v1212 = vunpack.c.l.b16 %v1180
        %v1213 = vunpack.c.l.b16 %v1181
        %v1214 = vunpack.c.l.b16 %v1182
        %v1215 = vunpack.c.l.b16 %v1183
        %v1216 = vunpack.c.l.b16 %v1184
        %v1217 = vunpack.c.l.b16 %v1185
        %v1218 = vunpack.c.l.b16 %v1186
        %v1219 = vunpack.c.l.b16 %v1187
        %v1220 = vunpack.c.l.b16 %v1188
        %v1221 = vunpack.c.l.b16 %v1189
        %v1222 = vunpack.c.l.b16 %v1190
        %v1223 = vunpack.c.l.b16 %v1191
        %v1224 = vunpack.c.l.b16 %v1192
        %v1225 = vunpack.c.l.b16 %v1193
        %v1226 = vunpack.c.l.b16 %v1194
        %v1227 = vunpack.c.l.b16 %v1195
        %v1228 = vpack.c.b16 %v1213, %v1212
        %v1229 = vpack.c.b16 %v1215, %v1214
        %v1230 = vpack.c.b16 %v1217, %v1216
        %v1231 = vpack.c.b16 %v1219, %v1218
        %v1232 = vpack.c.b16 %v1221, %v1220
        %v1233 = vpack.c.b16 %v1223, %v1222
        %v1234 = vpack.c.b16 %v1225, %v1224
        %v1235 = vpack.c.b16 %v1227, %v1226
        %1244 = vmatpush.bf16.msra.mxu0 %v1235
        %1245 = vmatpush.bf16.msra.mxu0 %v1234
        %1246 = vmatpush.bf16.msra.mxu0 %v1233
        %1247 = vmatpush.bf16.msra.mxu0 %v1232
        %1248 = vmatpush.bf16.msra.mxu0 %v1231
        %1249 = vmatpush.bf16.msra.mxu0 %v1230
        %1250 = vmatpush.bf16.msra.mxu0 %v1229
        %1251 = vmatpush.bf16.msra.mxu0 %v1228
        %1252 = vmatmul.bf16.gmra.mxu0 %v1179
        %v1253 = vpop.f32.mrf.mxu0
        %v1254 = vadd.f32 0.0, %v1253
        %v1255 = vpop.f32.mrf.mxu0
        %v1256 = vadd.f32 0.0, %v1255
        %1257 = vdwg.mxu0
        %v1258 = vadd.f32 %v1176, %v1254
        %v1259 = vadd.f32 %v1176, %v1256
        %v1260 = vld [vmem:[#allocation5 + $0x1] sm:$0xff]
        %v1261 = vld [vmem:[#allocation5 + $0x9] sm:$0xff]
        %v1262 = vpack.c.bf16 %v1261, %v1260
        %s1263 = scalar_lea.vmem [#allocation6], 64
        %v1264 = vld [vmem:[%s1263] sm:$0xf]
        %v1265 = vld [vmem:[%s1263 + $0x4] sm:$0xf]
        %v1266 = vld [vmem:[%s1263 + $0x8] sm:$0xf]
        %v1267 = vld [vmem:[%s1263 + $0xc] sm:$0xf]
        %v1268 = vld [vmem:[%s1263 + $0x10] sm:$0xf]
        %v1269 = vld [vmem:[%s1263 + $0x14] sm:$0xf]
        %v1270 = vld [vmem:[%s1263 + $0x18] sm:$0xf]
        %v1271 = vld [vmem:[%s1263 + $0x1c] sm:$0xf]
        %v1272 = vld [vmem:[%s1263 + $0x20] sm:$0xf]
        %v1273 = vld [vmem:[%s1263 + $0x24] sm:$0xf]
        %v1274 = vld [vmem:[%s1263 + $0x28] sm:$0xf]
        %v1275 = vld [vmem:[%s1263 + $0x2c] sm:$0xf]
        %v1276 = vld [vmem:[%s1263 + $0x30] sm:$0xf]
        %v1277 = vld [vmem:[%s1263 + $0x34] sm:$0xf]
        %v1278 = vld [vmem:[%s1263 + $0x38] sm:$0xf]
        %v1279 = vld [vmem:[%s1263 + $0x3c] sm:$0xf]
        %v1296 = vunpack.c.l.b16 %v1264
        %v1297 = vunpack.c.l.b16 %v1265
        %v1298 = vunpack.c.l.b16 %v1266
        %v1299 = vunpack.c.l.b16 %v1267
        %v1300 = vunpack.c.l.b16 %v1268
        %v1301 = vunpack.c.l.b16 %v1269
        %v1302 = vunpack.c.l.b16 %v1270
        %v1303 = vunpack.c.l.b16 %v1271
        %v1304 = vunpack.c.l.b16 %v1272
        %v1305 = vunpack.c.l.b16 %v1273
        %v1306 = vunpack.c.l.b16 %v1274
        %v1307 = vunpack.c.l.b16 %v1275
        %v1308 = vunpack.c.l.b16 %v1276
        %v1309 = vunpack.c.l.b16 %v1277
        %v1310 = vunpack.c.l.b16 %v1278
        %v1311 = vunpack.c.l.b16 %v1279
        %v1312 = vpack.c.b16 %v1297, %v1296
        %v1313 = vpack.c.b16 %v1299, %v1298
        %v1314 = vpack.c.b16 %v1301, %v1300
        %v1315 = vpack.c.b16 %v1303, %v1302
        %v1316 = vpack.c.b16 %v1305, %v1304
        %v1317 = vpack.c.b16 %v1307, %v1306
        %v1318 = vpack.c.b16 %v1309, %v1308
        %v1319 = vpack.c.b16 %v1311, %v1310
        %1328 = vmatpush.bf16.msra.mxu0 %v1319
        %1329 = vmatpush.bf16.msra.mxu0 %v1318
        %1330 = vmatpush.bf16.msra.mxu0 %v1317
        %1331 = vmatpush.bf16.msra.mxu0 %v1316
        %1332 = vmatpush.bf16.msra.mxu0 %v1315
        %1333 = vmatpush.bf16.msra.mxu0 %v1314
        %1334 = vmatpush.bf16.msra.mxu0 %v1313
        %1335 = vmatpush.bf16.msra.mxu0 %v1312
        %1336 = vmatmul.bf16.gmra.mxu0 %v1262
        %v1337 = vpop.f32.mrf.mxu0
        %v1338 = vadd.f32 0.0, %v1337
        %v1339 = vpop.f32.mrf.mxu0
        %v1340 = vadd.f32 0.0, %v1339
        %1341 = vdwg.mxu0
        %v1342 = vadd.f32 %v1258, %v1338
        %v1343 = vadd.f32 %v1259, %v1340
        %v1344 = vld [vmem:[#allocation5 + $0x2] sm:$0xff]
        %v1345 = vld [vmem:[#allocation5 + $0xa] sm:$0xff]
        %v1346 = vpack.c.bf16 %v1345, %v1344
        %s1347 = scalar_lea.vmem [#allocation6], 128
        %v1348 = vld [vmem:[%s1347] sm:$0xf]
        %v1349 = vld [vmem:[%s1347 + $0x4] sm:$0xf]
        %v1350 = vld [vmem:[%s1347 + $0x8] sm:$0xf]
        %v1351 = vld [vmem:[%s1347 + $0xc] sm:$0xf]
        %v1352 = vld [vmem:[%s1347 + $0x10] sm:$0xf]
        %v1353 = vld [vmem:[%s1347 + $0x14] sm:$0xf]
        %v1354 = vld [vmem:[%s1347 + $0x18] sm:$0xf]
        %v1355 = vld [vmem:[%s1347 + $0x1c] sm:$0xf]
        %v1356 = vld [vmem:[%s1347 + $0x20] sm:$0xf]
        %v1357 = vld [vmem:[%s1347 + $0x24] sm:$0xf]
        %v1358 = vld [vmem:[%s1347 + $0x28] sm:$0xf]
        %v1359 = vld [vmem:[%s1347 + $0x2c] sm:$0xf]
        %v1360 = vld [vmem:[%s1347 + $0x30] sm:$0xf]
        %v1361 = vld [vmem:[%s1347 + $0x34] sm:$0xf]
        %v1362 = vld [vmem:[%s1347 + $0x38] sm:$0xf]
        %v1363 = vld [vmem:[%s1347 + $0x3c] sm:$0xf]
        %v1380 = vunpack.c.l.b16 %v1348
        %v1381 = vunpack.c.l.b16 %v1349
        %v1382 = vunpack.c.l.b16 %v1350
        %v1383 = vunpack.c.l.b16 %v1351
        %v1384 = vunpack.c.l.b16 %v1352
        %v1385 = vunpack.c.l.b16 %v1353
        %v1386 = vunpack.c.l.b16 %v1354
        %v1387 = vunpack.c.l.b16 %v1355
        %v1388 = vunpack.c.l.b16 %v1356
        %v1389 = vunpack.c.l.b16 %v1357
        %v1390 = vunpack.c.l.b16 %v1358
        %v1391 = vunpack.c.l.b16 %v1359
        %v1392 = vunpack.c.l.b16 %v1360
        %v1393 = vunpack.c.l.b16 %v1361
        %v1394 = vunpack.c.l.b16 %v1362
        %v1395 = vunpack.c.l.b16 %v1363
        %v1396 = vpack.c.b16 %v1381, %v1380
        %v1397 = vpack.c.b16 %v1383, %v1382
        %v1398 = vpack.c.b16 %v1385, %v1384
        %v1399 = vpack.c.b16 %v1387, %v1386
        %v1400 = vpack.c.b16 %v1389, %v1388
        %v1401 = vpack.c.b16 %v1391, %v1390
        %v1402 = vpack.c.b16 %v1393, %v1392
        %v1403 = vpack.c.b16 %v1395, %v1394
        %1412 = vmatpush.bf16.msra.mxu0 %v1403
        %1413 = vmatpush.bf16.msra.mxu0 %v1402
        %1414 = vmatpush.bf16.msra.mxu0 %v1401
        %1415 = vmatpush.bf16.msra.mxu0 %v1400
        %1416 = vmatpush.bf16.msra.mxu0 %v1399
        %1417 = vmatpush.bf16.msra.mxu0 %v1398
        %1418 = vmatpush.bf16.msra.mxu0 %v1397
        %1419 = vmatpush.bf16.msra.mxu0 %v1396
        %1420 = vmatmul.bf16.gmra.mxu0 %v1346
        %v1421 = vpop.f32.mrf.mxu0
        %v1422 = vadd.f32 0.0, %v1421
        %v1423 = vpop.f32.mrf.mxu0
        %v1424 = vadd.f32 0.0, %v1423
        %1425 = vdwg.mxu0
        %v1426 = vadd.f32 %v1342, %v1422
        %v1427 = vadd.f32 %v1343, %v1424
        %v1428 = vmax.f32 %v1426, 0.0
        %v1429 = vmax.f32 %v1427, 0.0
        %1430 = vst [vmem:[#allocation4 + $0x1] sm:$0xff] %v1428
        %1431 = vst [vmem:[#allocation4 + $0x9] sm:$0xff] %v1429
        %v1432 = vld [vmem:[%s8 + $0x1] sm:$0x1]
        %v1433 = vperm.slane %v1432, 0
        %v1434 = vld [vmem:[#allocation4] sm:$0xff]
        %v1435 = vld [vmem:[#allocation4 + $0x8] sm:$0xff]
        %v1436 = vpack.c.bf16 %v1435, %v1434
        %s1437 = scalar_lea.vmem [#allocation6], 192
        %v1438 = vld [vmem:[%s1437] sm:$0xf]
        %v1439 = vld [vmem:[%s1437 + $0x4] sm:$0xf]
        %v1440 = vld [vmem:[%s1437 + $0x8] sm:$0xf]
        %v1441 = vld [vmem:[%s1437 + $0xc] sm:$0xf]
        %v1442 = vld [vmem:[%s1437 + $0x10] sm:$0xf]
        %v1443 = vld [vmem:[%s1437 + $0x14] sm:$0xf]
        %v1444 = vld [vmem:[%s1437 + $0x18] sm:$0xf]
        %v1445 = vld [vmem:[%s1437 + $0x1c] sm:$0xf]
        %v1446 = vld [vmem:[%s1437 + $0x20] sm:$0xf]
        %v1447 = vld [vmem:[%s1437 + $0x24] sm:$0xf]
        %v1448 = vld [vmem:[%s1437 + $0x28] sm:$0xf]
        %v1449 = vld [vmem:[%s1437 + $0x2c] sm:$0xf]
        %v1450 = vld [vmem:[%s1437 + $0x30] sm:$0xf]
        %v1451 = vld [vmem:[%s1437 + $0x34] sm:$0xf]
        %v1452 = vld [vmem:[%s1437 + $0x38] sm:$0xf]
        %v1453 = vld [vmem:[%s1437 + $0x3c] sm:$0xf]
        %v1470 = vunpack.c.l.b16 %v1438
        %v1471 = vunpack.c.l.b16 %v1439
        %v1472 = vunpack.c.l.b16 %v1440
        %v1473 = vunpack.c.l.b16 %v1441
        %v1474 = vunpack.c.l.b16 %v1442
        %v1475 = vunpack.c.l.b16 %v1443
        %v1476 = vunpack.c.l.b16 %v1444
        %v1477 = vunpack.c.l.b16 %v1445
        %v1478 = vunpack.c.l.b16 %v1446
        %v1479 = vunpack.c.l.b16 %v1447
        %v1480 = vunpack.c.l.b16 %v1448
        %v1481 = vunpack.c.l.b16 %v1449
        %v1482 = vunpack.c.l.b16 %v1450
        %v1483 = vunpack.c.l.b16 %v1451
        %v1484 = vunpack.c.l.b16 %v1452
        %v1485 = vunpack.c.l.b16 %v1453
        %v1486 = vpack.c.b16 %v1471, %v1470
        %v1487 = vpack.c.b16 %v1473, %v1472
        %v1488 = vpack.c.b16 %v1475, %v1474
        %v1489 = vpack.c.b16 %v1477, %v1476
        %v1490 = vpack.c.b16 %v1479, %v1478
        %v1491 = vpack.c.b16 %v1481, %v1480
        %v1492 = vpack.c.b16 %v1483, %v1482
        %v1493 = vpack.c.b16 %v1485, %v1484
        %1502 = vmatpush.bf16.msra.mxu0 %v1493
        %1503 = vmatpush.bf16.msra.mxu0 %v1492
        %1504 = vmatpush.bf16.msra.mxu0 %v1491
        %1505 = vmatpush.bf16.msra.mxu0 %v1490
        %1506 = vmatpush.bf16.msra.mxu0 %v1489
        %1507 = vmatpush.bf16.msra.mxu0 %v1488
        %1508 = vmatpush.bf16.msra.mxu0 %v1487
        %1509 = vmatpush.bf16.msra.mxu0 %v1486
        %1510 = vmatmul.bf16.gmra.mxu0 %v1436
        %v1511 = vpop.f32.mrf.mxu0
        %v1512 = vadd.f32 0.0, %v1511
        %v1513 = vpop.f32.mrf.mxu0
        %v1514 = vadd.f32 0.0, %v1513
        %1515 = vdwg.mxu0
        %v1516 = vadd.f32 %v1433, %v1512
        %v1517 = vadd.f32 %v1433, %v1514
        %v1518 = vld [vmem:[#allocation4 + $0x1] sm:$0xff]
        %v1519 = vld [vmem:[#allocation4 + $0x9] sm:$0xff]
        %v1520 = vpack.c.bf16 %v1519, %v1518
        %s1521 = scalar_lea.vmem [#allocation6], 256
        %v1522 = vld [vmem:[%s1521] sm:$0xf]
        %v1523 = vld [vmem:[%s1521 + $0x4] sm:$0xf]
        %v1524 = vld [vmem:[%s1521 + $0x8] sm:$0xf]
        %v1525 = vld [vmem:[%s1521 + $0xc] sm:$0xf]
        %v1526 = vld [vmem:[%s1521 + $0x10] sm:$0xf]
        %v1527 = vld [vmem:[%s1521 + $0x14] sm:$0xf]
        %v1528 = vld [vmem:[%s1521 + $0x18] sm:$0xf]
        %v1529 = vld [vmem:[%s1521 + $0x1c] sm:$0xf]
        %v1530 = vld [vmem:[%s1521 + $0x20] sm:$0xf]
        %v1531 = vld [vmem:[%s1521 + $0x24] sm:$0xf]
        %v1532 = vld [vmem:[%s1521 + $0x28] sm:$0xf]
        %v1533 = vld [vmem:[%s1521 + $0x2c] sm:$0xf]
        %v1534 = vld [vmem:[%s1521 + $0x30] sm:$0xf]
        %v1535 = vld [vmem:[%s1521 + $0x34] sm:$0xf]
        %v1536 = vld [vmem:[%s1521 + $0x38] sm:$0xf]
        %v1537 = vld [vmem:[%s1521 + $0x3c] sm:$0xf]
        %v1554 = vunpack.c.l.b16 %v1522
        %v1555 = vunpack.c.l.b16 %v1523
        %v1556 = vunpack.c.l.b16 %v1524
        %v1557 = vunpack.c.l.b16 %v1525
        %v1558 = vunpack.c.l.b16 %v1526
        %v1559 = vunpack.c.l.b16 %v1527
        %v1560 = vunpack.c.l.b16 %v1528
        %v1561 = vunpack.c.l.b16 %v1529
        %v1562 = vunpack.c.l.b16 %v1530
        %v1563 = vunpack.c.l.b16 %v1531
        %v1564 = vunpack.c.l.b16 %v1532
        %v1565 = vunpack.c.l.b16 %v1533
        %v1566 = vunpack.c.l.b16 %v1534
        %v1567 = vunpack.c.l.b16 %v1535
        %v1568 = vunpack.c.l.b16 %v1536
        %v1569 = vunpack.c.l.b16 %v1537
        %v1570 = vpack.c.b16 %v1555, %v1554
        %v1571 = vpack.c.b16 %v1557, %v1556
        %v1572 = vpack.c.b16 %v1559, %v1558
        %v1573 = vpack.c.b16 %v1561, %v1560
        %v1574 = vpack.c.b16 %v1563, %v1562
        %v1575 = vpack.c.b16 %v1565, %v1564
        %v1576 = vpack.c.b16 %v1567, %v1566
        %v1577 = vpack.c.b16 %v1569, %v1568
        %1586 = vmatpush.bf16.msra.mxu0 %v1577
        %1587 = vmatpush.bf16.msra.mxu0 %v1576
        %1588 = vmatpush.bf16.msra.mxu0 %v1575
        %1589 = vmatpush.bf16.msra.mxu0 %v1574
        %1590 = vmatpush.bf16.msra.mxu0 %v1573
        %1591 = vmatpush.bf16.msra.mxu0 %v1572
        %1592 = vmatpush.bf16.msra.mxu0 %v1571
        %1593 = vmatpush.bf16.msra.mxu0 %v1570
        %1594 = vmatmul.bf16.gmra.mxu0 %v1520
        %v1595 = vpop.f32.mrf.mxu0
        %v1596 = vadd.f32 0.0, %v1595
        %v1597 = vpop.f32.mrf.mxu0
        %v1598 = vadd.f32 0.0, %v1597
        %1599 = vdwg.mxu0
        %v1600 = vadd.f32 %v1516, %v1596
        %v1601 = vadd.f32 %v1517, %v1598
        %v1602 = vld [vmem:[#allocation4 + $0x2] sm:$0xff]
        %v1603 = vld [vmem:[#allocation4 + $0xa] sm:$0xff]
        %v1604 = vpack.c.bf16 %v1603, %v1602
        %s1605 = scalar_lea.vmem [#allocation6], 320
        %v1606 = vld [vmem:[%s1605] sm:$0xf]
        %v1607 = vld [vmem:[%s1605 + $0x4] sm:$0xf]
        %v1608 = vld [vmem:[%s1605 + $0x8] sm:$0xf]
        %v1609 = vld [vmem:[%s1605 + $0xc] sm:$0xf]
        %v1610 = vld [vmem:[%s1605 + $0x10] sm:$0xf]
        %v1611 = vld [vmem:[%s1605 + $0x14] sm:$0xf]
        %v1612 = vld [vmem:[%s1605 + $0x18] sm:$0xf]
        %v1613 = vld [vmem:[%s1605 + $0x1c] sm:$0xf]
        %v1614 = vld [vmem:[%s1605 + $0x20] sm:$0xf]
        %v1615 = vld [vmem:[%s1605 + $0x24] sm:$0xf]
        %v1616 = vld [vmem:[%s1605 + $0x28] sm:$0xf]
        %v1617 = vld [vmem:[%s1605 + $0x2c] sm:$0xf]
        %v1618 = vld [vmem:[%s1605 + $0x30] sm:$0xf]
        %v1619 = vld [vmem:[%s1605 + $0x34] sm:$0xf]
        %v1620 = vld [vmem:[%s1605 + $0x38] sm:$0xf]
        %v1621 = vld [vmem:[%s1605 + $0x3c] sm:$0xf]
        %v1638 = vunpack.c.l.b16 %v1606
        %v1639 = vunpack.c.l.b16 %v1607
        %v1640 = vunpack.c.l.b16 %v1608
        %v1641 = vunpack.c.l.b16 %v1609
        %v1642 = vunpack.c.l.b16 %v1610
        %v1643 = vunpack.c.l.b16 %v1611
        %v1644 = vunpack.c.l.b16 %v1612
        %v1645 = vunpack.c.l.b16 %v1613
        %v1646 = vunpack.c.l.b16 %v1614
        %v1647 = vunpack.c.l.b16 %v1615
        %v1648 = vunpack.c.l.b16 %v1616
        %v1649 = vunpack.c.l.b16 %v1617
        %v1650 = vunpack.c.l.b16 %v1618
        %v1651 = vunpack.c.l.b16 %v1619
        %v1652 = vunpack.c.l.b16 %v1620
        %v1653 = vunpack.c.l.b16 %v1621
        %v1654 = vpack.c.b16 %v1639, %v1638
        %v1655 = vpack.c.b16 %v1641, %v1640
        %v1656 = vpack.c.b16 %v1643, %v1642
        %v1657 = vpack.c.b16 %v1645, %v1644
        %v1658 = vpack.c.b16 %v1647, %v1646
        %v1659 = vpack.c.b16 %v1649, %v1648
        %v1660 = vpack.c.b16 %v1651, %v1650
        %v1661 = vpack.c.b16 %v1653, %v1652
        %1670 = vmatpush.bf16.msra.mxu0 %v1661
        %1671 = vmatpush.bf16.msra.mxu0 %v1660
        %1672 = vmatpush.bf16.msra.mxu0 %v1659
        %1673 = vmatpush.bf16.msra.mxu0 %v1658
        %1674 = vmatpush.bf16.msra.mxu0 %v1657
        %1675 = vmatpush.bf16.msra.mxu0 %v1656
        %1676 = vmatpush.bf16.msra.mxu0 %v1655
        %1677 = vmatpush.bf16.msra.mxu0 %v1654
        %1678 = vmatmul.bf16.gmra.mxu0 %v1604
        %v1679 = vpop.f32.mrf.mxu0
        %v1680 = vadd.f32 0.0, %v1679
        %v1681 = vpop.f32.mrf.mxu0
        %v1682 = vadd.f32 0.0, %v1681
        %1683 = vdwg.mxu0
        %v1684 = vadd.f32 %v1600, %v1680
        %v1685 = vadd.f32 %v1601, %v1682
        %v1686 = vadd.f32 %v1171, %v1684
        %v1687 = vadd.f32 %v1172, %v1685
        %1688 = vst [vmem:[#allocation5 + $0x1] sm:$0xff] %v1686
        %1689 = vst [vmem:[#allocation5 + $0x9] sm:$0xff] %v1687
        %v1690 = vld [vmem:[%s8 + $0x2] sm:$0x1]
        %v1691 = vperm.slane %v1690, 0
        %v1692 = vld [vmem:[#allocation5] sm:$0xff]
        %v1693 = vld [vmem:[#allocation5 + $0x8] sm:$0xff]
        %v1694 = vpack.c.bf16 %v1693, %v1692
        %s1695 = scalar_lea.vmem [#allocation6], 384
        %v1696 = vld [vmem:[%s1695] sm:$0xf]
        %v1697 = vld [vmem:[%s1695 + $0x4] sm:$0xf]
        %v1698 = vld [vmem:[%s1695 + $0x8] sm:$0xf]
        %v1699 = vld [vmem:[%s1695 + $0xc] sm:$0xf]
        %v1700 = vld [vmem:[%s1695 + $0x10] sm:$0xf]
        %v1701 = vld [vmem:[%s1695 + $0x14] sm:$0xf]
        %v1702 = vld [vmem:[%s1695 + $0x18] sm:$0xf]
        %v1703 = vld [vmem:[%s1695 + $0x1c] sm:$0xf]
        %v1704 = vld [vmem:[%s1695 + $0x20] sm:$0xf]
        %v1705 = vld [vmem:[%s1695 + $0x24] sm:$0xf]
        %v1706 = vld [vmem:[%s1695 + $0x28] sm:$0xf]
        %v1707 = vld [vmem:[%s1695 + $0x2c] sm:$0xf]
        %v1708 = vld [vmem:[%s1695 + $0x30] sm:$0xf]
        %v1709 = vld [vmem:[%s1695 + $0x34] sm:$0xf]
        %v1710 = vld [vmem:[%s1695 + $0x38] sm:$0xf]
        %v1711 = vld [vmem:[%s1695 + $0x3c] sm:$0xf]
        %v1728 = vunpack.c.l.b16 %v1696
        %v1729 = vunpack.c.l.b16 %v1697
        %v1730 = vunpack.c.l.b16 %v1698
        %v1731 = vunpack.c.l.b16 %v1699
        %v1732 = vunpack.c.l.b16 %v1700
        %v1733 = vunpack.c.l.b16 %v1701
        %v1734 = vunpack.c.l.b16 %v1702
        %v1735 = vunpack.c.l.b16 %v1703
        %v1736 = vunpack.c.l.b16 %v1704
        %v1737 = vunpack.c.l.b16 %v1705
        %v1738 = vunpack.c.l.b16 %v1706
        %v1739 = vunpack.c.l.b16 %v1707
        %v1740 = vunpack.c.l.b16 %v1708
        %v1741 = vunpack.c.l.b16 %v1709
        %v1742 = vunpack.c.l.b16 %v1710
        %v1743 = vunpack.c.l.b16 %v1711
        %v1744 = vpack.c.b16 %v1729, %v1728
        %v1745 = vpack.c.b16 %v1731, %v1730
        %v1746 = vpack.c.b16 %v1733, %v1732
        %v1747 = vpack.c.b16 %v1735, %v1734
        %v1748 = vpack.c.b16 %v1737, %v1736
        %v1749 = vpack.c.b16 %v1739, %v1738
        %v1750 = vpack.c.b16 %v1741, %v1740
        %v1751 = vpack.c.b16 %v1743, %v1742
        %1760 = vmatpush.bf16.msra.mxu0 %v1751
        %1761 = vmatpush.bf16.msra.mxu0 %v1750
        %1762 = vmatpush.bf16.msra.mxu0 %v1749
        %1763 = vmatpush.bf16.msra.mxu0 %v1748
        %1764 = vmatpush.bf16.msra.mxu0 %v1747
        %1765 = vmatpush.bf16.msra.mxu0 %v1746
        %1766 = vmatpush.bf16.msra.mxu0 %v1745
        %1767 = vmatpush.bf16.msra.mxu0 %v1744
        %1768 = vmatmul.bf16.gmra.mxu0 %v1694
        %v1769 = vpop.f32.mrf.mxu0
        %v1770 = vadd.f32 0.0, %v1769
        %v1771 = vpop.f32.mrf.mxu0
        %v1772 = vadd.f32 0.0, %v1771
        %1773 = vdwg.mxu0
        %v1774 = vadd.f32 %v1691, %v1770
        %v1775 = vadd.f32 %v1691, %v1772
        %v1776 = vld [vmem:[#allocation5 + $0x1] sm:$0xff]
        %v1777 = vld [vmem:[#allocation5 + $0x9] sm:$0xff]
        %v1778 = vpack.c.bf16 %v1777, %v1776
        %s1779 = scalar_lea.vmem [#allocation6], 448
        %v1780 = vld [vmem:[%s1779] sm:$0xf]
        %v1781 = vld [vmem:[%s1779 + $0x4] sm:$0xf]
        %v1782 = vld [vmem:[%s1779 + $0x8] sm:$0xf]
        %v1783 = vld [vmem:[%s1779 + $0xc] sm:$0xf]
        %v1784 = vld [vmem:[%s1779 + $0x10] sm:$0xf]
        %v1785 = vld [vmem:[%s1779 + $0x14] sm:$0xf]
        %v1786 = vld [vmem:[%s1779 + $0x18] sm:$0xf]
        %v1787 = vld [vmem:[%s1779 + $0x1c] sm:$0xf]
        %v1788 = vld [vmem:[%s1779 + $0x20] sm:$0xf]
        %v1789 = vld [vmem:[%s1779 + $0x24] sm:$0xf]
        %v1790 = vld [vmem:[%s1779 + $0x28] sm:$0xf]
        %v1791 = vld [vmem:[%s1779 + $0x2c] sm:$0xf]
        %v1792 = vld [vmem:[%s1779 + $0x30] sm:$0xf]
        %v1793 = vld [vmem:[%s1779 + $0x34] sm:$0xf]
        %v1794 = vld [vmem:[%s1779 + $0x38] sm:$0xf]
        %v1795 = vld [vmem:[%s1779 + $0x3c] sm:$0xf]
        %v1812 = vunpack.c.l.b16 %v1780
        %v1813 = vunpack.c.l.b16 %v1781
        %v1814 = vunpack.c.l.b16 %v1782
        %v1815 = vunpack.c.l.b16 %v1783
        %v1816 = vunpack.c.l.b16 %v1784
        %v1817 = vunpack.c.l.b16 %v1785
        %v1818 = vunpack.c.l.b16 %v1786
        %v1819 = vunpack.c.l.b16 %v1787
        %v1820 = vunpack.c.l.b16 %v1788
        %v1821 = vunpack.c.l.b16 %v1789
        %v1822 = vunpack.c.l.b16 %v1790
        %v1823 = vunpack.c.l.b16 %v1791
        %v1824 = vunpack.c.l.b16 %v1792
        %v1825 = vunpack.c.l.b16 %v1793
        %v1826 = vunpack.c.l.b16 %v1794
        %v1827 = vunpack.c.l.b16 %v1795
        %v1828 = vpack.c.b16 %v1813, %v1812
        %v1829 = vpack.c.b16 %v1815, %v1814
        %v1830 = vpack.c.b16 %v1817, %v1816
        %v1831 = vpack.c.b16 %v1819, %v1818
        %v1832 = vpack.c.b16 %v1821, %v1820
        %v1833 = vpack.c.b16 %v1823, %v1822
        %v1834 = vpack.c.b16 %v1825, %v1824
        %v1835 = vpack.c.b16 %v1827, %v1826
        %1844 = vmatpush.bf16.msra.mxu0 %v1835
        %1845 = vmatpush.bf16.msra.mxu0 %v1834
        %1846 = vmatpush.bf16.msra.mxu0 %v1833
        %1847 = vmatpush.bf16.msra.mxu0 %v1832
        %1848 = vmatpush.bf16.msra.mxu0 %v1831
        %1849 = vmatpush.bf16.msra.mxu0 %v1830
        %1850 = vmatpush.bf16.msra.mxu0 %v1829
        %1851 = vmatpush.bf16.msra.mxu0 %v1828
        %1852 = vmatmul.bf16.gmra.mxu0 %v1778
        %v1853 = vpop.f32.mrf.mxu0
        %v1854 = vadd.f32 0.0, %v1853
        %v1855 = vpop.f32.mrf.mxu0
        %v1856 = vadd.f32 0.0, %v1855
        %1857 = vdwg.mxu0
        %v1858 = vadd.f32 %v1774, %v1854
        %v1859 = vadd.f32 %v1775, %v1856
        %v1860 = vld [vmem:[#allocation5 + $0x2] sm:$0xff]
        %v1861 = vld [vmem:[#allocation5 + $0xa] sm:$0xff]
        %v1862 = vpack.c.bf16 %v1861, %v1860
        %s1863 = scalar_lea.vmem [#allocation6], 512
        %v1864 = vld [vmem:[%s1863] sm:$0xf]
        %v1865 = vld [vmem:[%s1863 + $0x4] sm:$0xf]
        %v1866 = vld [vmem:[%s1863 + $0x8] sm:$0xf]
        %v1867 = vld [vmem:[%s1863 + $0xc] sm:$0xf]
        %v1868 = vld [vmem:[%s1863 + $0x10] sm:$0xf]
        %v1869 = vld [vmem:[%s1863 + $0x14] sm:$0xf]
        %v1870 = vld [vmem:[%s1863 + $0x18] sm:$0xf]
        %v1871 = vld [vmem:[%s1863 + $0x1c] sm:$0xf]
        %v1872 = vld [vmem:[%s1863 + $0x20] sm:$0xf]
        %v1873 = vld [vmem:[%s1863 + $0x24] sm:$0xf]
        %v1874 = vld [vmem:[%s1863 + $0x28] sm:$0xf]
        %v1875 = vld [vmem:[%s1863 + $0x2c] sm:$0xf]
        %v1876 = vld [vmem:[%s1863 + $0x30] sm:$0xf]
        %v1877 = vld [vmem:[%s1863 + $0x34] sm:$0xf]
        %v1878 = vld [vmem:[%s1863 + $0x38] sm:$0xf]
        %v1879 = vld [vmem:[%s1863 + $0x3c] sm:$0xf]
        %v1896 = vunpack.c.l.b16 %v1864
        %v1897 = vunpack.c.l.b16 %v1865
        %v1898 = vunpack.c.l.b16 %v1866
        %v1899 = vunpack.c.l.b16 %v1867
        %v1900 = vunpack.c.l.b16 %v1868
        %v1901 = vunpack.c.l.b16 %v1869
        %v1902 = vunpack.c.l.b16 %v1870
        %v1903 = vunpack.c.l.b16 %v1871
        %v1904 = vunpack.c.l.b16 %v1872
        %v1905 = vunpack.c.l.b16 %v1873
        %v1906 = vunpack.c.l.b16 %v1874
        %v1907 = vunpack.c.l.b16 %v1875
        %v1908 = vunpack.c.l.b16 %v1876
        %v1909 = vunpack.c.l.b16 %v1877
        %v1910 = vunpack.c.l.b16 %v1878
        %v1911 = vunpack.c.l.b16 %v1879
        %v1912 = vpack.c.b16 %v1897, %v1896
        %v1913 = vpack.c.b16 %v1899, %v1898
        %v1914 = vpack.c.b16 %v1901, %v1900
        %v1915 = vpack.c.b16 %v1903, %v1902
        %v1916 = vpack.c.b16 %v1905, %v1904
        %v1917 = vpack.c.b16 %v1907, %v1906
        %v1918 = vpack.c.b16 %v1909, %v1908
        %v1919 = vpack.c.b16 %v1911, %v1910
        %1928 = vmatpush.bf16.msra.mxu0 %v1919
        %1929 = vmatpush.bf16.msra.mxu0 %v1918
        %1930 = vmatpush.bf16.msra.mxu0 %v1917
        %1931 = vmatpush.bf16.msra.mxu0 %v1916
        %1932 = vmatpush.bf16.msra.mxu0 %v1915
        %1933 = vmatpush.bf16.msra.mxu0 %v1914
        %1934 = vmatpush.bf16.msra.mxu0 %v1913
        %1935 = vmatpush.bf16.msra.mxu0 %v1912
        %1936 = vmatmul.bf16.gmra.mxu0 %v1862
        %v1937 = vpop.f32.mrf.mxu0
        %v1938 = vadd.f32 0.0, %v1937
        %v1939 = vpop.f32.mrf.mxu0
        %v1940 = vadd.f32 0.0, %v1939
        %1941 = vdwg.mxu0
        %v1942 = vadd.f32 %v1858, %v1938
        %v1943 = vadd.f32 %v1859, %v1940
        %v1944 = vmax.f32 %v1942, 0.0
        %v1945 = vmax.f32 %v1943, 0.0
        %1946 = vst [vmem:[#allocation4 + $0x1] sm:$0xff] %v1944
        %1947 = vst [vmem:[#allocation4 + $0x9] sm:$0xff] %v1945
        %v1948 = vld [vmem:[%s8 + $0x3] sm:$0x1]
        %v1949 = vperm.slane %v1948, 0
        %v1950 = vld [vmem:[#allocation4] sm:$0xff]
        %v1951 = vld [vmem:[#allocation4 + $0x8] sm:$0xff]
        %v1952 = vpack.c.bf16 %v1951, %v1950
        %s1953 = scalar_lea.vmem [#allocation6], 576
        %v1954 = vld [vmem:[%s1953] sm:$0xf]
        %v1955 = vld [vmem:[%s1953 + $0x4] sm:$0xf]
        %v1956 = vld [vmem:[%s1953 + $0x8] sm:$0xf]
        %v1957 = vld [vmem:[%s1953 + $0xc] sm:$0xf]
        %v1958 = vld [vmem:[%s1953 + $0x10] sm:$0xf]
        %v1959 = vld [vmem:[%s1953 + $0x14] sm:$0xf]
        %v1960 = vld [vmem:[%s1953 + $0x18] sm:$0xf]
        %v1961 = vld [vmem:[%s1953 + $0x1c] sm:$0xf]
        %v1962 = vld [vmem:[%s1953 + $0x20] sm:$0xf]
        %v1963 = vld [vmem:[%s1953 + $0x24] sm:$0xf]
        %v1964 = vld [vmem:[%s1953 + $0x28] sm:$0xf]
        %v1965 = vld [vmem:[%s1953 + $0x2c] sm:$0xf]
        %v1966 = vld [vmem:[%s1953 + $0x30] sm:$0xf]
        %v1967 = vld [vmem:[%s1953 + $0x34] sm:$0xf]
        %v1968 = vld [vmem:[%s1953 + $0x38] sm:$0xf]
        %v1969 = vld [vmem:[%s1953 + $0x3c] sm:$0xf]
        %v1986 = vunpack.c.l.b16 %v1954
        %v1987 = vunpack.c.l.b16 %v1955
        %v1988 = vunpack.c.l.b16 %v1956
        %v1989 = vunpack.c.l.b16 %v1957
        %v1990 = vunpack.c.l.b16 %v1958
        %v1991 = vunpack.c.l.b16 %v1959
        %v1992 = vunpack.c.l.b16 %v1960
        %v1993 = vunpack.c.l.b16 %v1961
        %v1994 = vunpack.c.l.b16 %v1962
        %v1995 = vunpack.c.l.b16 %v1963
        %v1996 = vunpack.c.l.b16 %v1964
        %v1997 = vunpack.c.l.b16 %v1965
        %v1998 = vunpack.c.l.b16 %v1966
        %v1999 = vunpack.c.l.b16 %v1967
        %v2000 = vunpack.c.l.b16 %v1968
        %v2001 = vunpack.c.l.b16 %v1969
        %v2002 = vpack.c.b16 %v1987, %v1986
        %v2003 = vpack.c.b16 %v1989, %v1988
        %v2004 = vpack.c.b16 %v1991, %v1990
        %v2005 = vpack.c.b16 %v1993, %v1992
        %v2006 = vpack.c.b16 %v1995, %v1994
        %v2007 = vpack.c.b16 %v1997, %v1996
        %v2008 = vpack.c.b16 %v1999, %v1998
        %v2009 = vpack.c.b16 %v2001, %v2000
        %2018 = vmatpush.bf16.msra.mxu0 %v2009
        %2019 = vmatpush.bf16.msra.mxu0 %v2008
        %2020 = vmatpush.bf16.msra.mxu0 %v2007
        %2021 = vmatpush.bf16.msra.mxu0 %v2006
        %2022 = vmatpush.bf16.msra.mxu0 %v2005
        %2023 = vmatpush.bf16.msra.mxu0 %v2004
        %2024 = vmatpush.bf16.msra.mxu0 %v2003
        %2025 = vmatpush.bf16.msra.mxu0 %v2002
        %2026 = vmatmul.bf16.gmra.mxu0 %v1952
        %v2027 = vpop.f32.mrf.mxu0
        %v2028 = vadd.f32 0.0, %v2027
        %v2029 = vpop.f32.mrf.mxu0
        %v2030 = vadd.f32 0.0, %v2029
        %2031 = vdwg.mxu0
        %v2032 = vadd.f32 %v1949, %v2028
        %v2033 = vadd.f32 %v1949, %v2030
        %v2034 = vld [vmem:[#allocation4 + $0x1] sm:$0xff]
        %v2035 = vld [vmem:[#allocation4 + $0x9] sm:$0xff]
        %v2036 = vpack.c.bf16 %v2035, %v2034
        %s2037 = scalar_lea.vmem [#allocation6], 640
        %v2038 = vld [vmem:[%s2037] sm:$0xf]
        %v2039 = vld [vmem:[%s2037 + $0x4] sm:$0xf]
        %v2040 = vld [vmem:[%s2037 + $0x8] sm:$0xf]
        %v2041 = vld [vmem:[%s2037 + $0xc] sm:$0xf]
        %v2042 = vld [vmem:[%s2037 + $0x10] sm:$0xf]
        %v2043 = vld [vmem:[%s2037 + $0x14] sm:$0xf]
        %v2044 = vld [vmem:[%s2037 + $0x18] sm:$0xf]
        %v2045 = vld [vmem:[%s2037 + $0x1c] sm:$0xf]
        %v2046 = vld [vmem:[%s2037 + $0x20] sm:$0xf]
        %v2047 = vld [vmem:[%s2037 + $0x24] sm:$0xf]
        %v2048 = vld [vmem:[%s2037 + $0x28] sm:$0xf]
        %v2049 = vld [vmem:[%s2037 + $0x2c] sm:$0xf]
        %v2050 = vld [vmem:[%s2037 + $0x30] sm:$0xf]
        %v2051 = vld [vmem:[%s2037 + $0x34] sm:$0xf]
        %v2052 = vld [vmem:[%s2037 + $0x38] sm:$0xf]
        %v2053 = vld [vmem:[%s2037 + $0x3c] sm:$0xf]
        %v2070 = vunpack.c.l.b16 %v2038
        %v2071 = vunpack.c.l.b16 %v2039
        %v2072 = vunpack.c.l.b16 %v2040
        %v2073 = vunpack.c.l.b16 %v2041
        %v2074 = vunpack.c.l.b16 %v2042
        %v2075 = vunpack.c.l.b16 %v2043
        %v2076 = vunpack.c.l.b16 %v2044
        %v2077 = vunpack.c.l.b16 %v2045
        %v2078 = vunpack.c.l.b16 %v2046
        %v2079 = vunpack.c.l.b16 %v2047
        %v2080 = vunpack.c.l.b16 %v2048
        %v2081 = vunpack.c.l.b16 %v2049
        %v2082 = vunpack.c.l.b16 %v2050
        %v2083 = vunpack.c.l.b16 %v2051
        %v2084 = vunpack.c.l.b16 %v2052
        %v2085 = vunpack.c.l.b16 %v2053
        %v2086 = vpack.c.b16 %v2071, %v2070
        %v2087 = vpack.c.b16 %v2073, %v2072
        %v2088 = vpack.c.b16 %v2075, %v2074
        %v2089 = vpack.c.b16 %v2077, %v2076
        %v2090 = vpack.c.b16 %v2079, %v2078
        %v2091 = vpack.c.b16 %v2081, %v2080
        %v2092 = vpack.c.b16 %v2083, %v2082
        %v2093 = vpack.c.b16 %v2085, %v2084
        %2102 = vmatpush.bf16.msra.mxu0 %v2093
        %2103 = vmatpush.bf16.msra.mxu0 %v2092
        %2104 = vmatpush.bf16.msra.mxu0 %v2091
        %2105 = vmatpush.bf16.msra.mxu0 %v2090
        %2106 = vmatpush.bf16.msra.mxu0 %v2089
        %2107 = vmatpush.bf16.msra.mxu0 %v2088
        %2108 = vmatpush.bf16.msra.mxu0 %v2087
        %2109 = vmatpush.bf16.msra.mxu0 %v2086
        %2110 = vmatmul.bf16.gmra.mxu0 %v2036
        %v2111 = vpop.f32.mrf.mxu0
        %v2112 = vadd.f32 0.0, %v2111
        %v2113 = vpop.f32.mrf.mxu0
        %v2114 = vadd.f32 0.0, %v2113
        %2115 = vdwg.mxu0
        %v2116 = vadd.f32 %v2032, %v2112
        %v2117 = vadd.f32 %v2033, %v2114
        %v2118 = vld [vmem:[#allocation4 + $0x2] sm:$0xff]
        %v2119 = vld [vmem:[#allocation4 + $0xa] sm:$0xff]
        %v2120 = vpack.c.bf16 %v2119, %v2118
        %s2121 = scalar_lea.vmem [#allocation6], 704
        %v2122 = vld [vmem:[%s2121] sm:$0xf]
        %v2123 = vld [vmem:[%s2121 + $0x4] sm:$0xf]
        %v2124 = vld [vmem:[%s2121 + $0x8] sm:$0xf]
        %v2125 = vld [vmem:[%s2121 + $0xc] sm:$0xf]
        %v2126 = vld [vmem:[%s2121 + $0x10] sm:$0xf]
        %v2127 = vld [vmem:[%s2121 + $0x14] sm:$0xf]
        %v2128 = vld [vmem:[%s2121 + $0x18] sm:$0xf]
        %v2129 = vld [vmem:[%s2121 + $0x1c] sm:$0xf]
        %v2130 = vld [vmem:[%s2121 + $0x20] sm:$0xf]
        %v2131 = vld [vmem:[%s2121 + $0x24] sm:$0xf]
        %v2132 = vld [vmem:[%s2121 + $0x28] sm:$0xf]
        %v2133 = vld [vmem:[%s2121 + $0x2c] sm:$0xf]
        %v2134 = vld [vmem:[%s2121 + $0x30] sm:$0xf]
        %v2135 = vld [vmem:[%s2121 + $0x34] sm:$0xf]
        %v2136 = vld [vmem:[%s2121 + $0x38] sm:$0xf]
        %v2137 = vld [vmem:[%s2121 + $0x3c] sm:$0xf]
        %v2154 = vunpack.c.l.b16 %v2122
        %v2155 = vunpack.c.l.b16 %v2123
        %v2156 = vunpack.c.l.b16 %v2124
        %v2157 = vunpack.c.l.b16 %v2125
        %v2158 = vunpack.c.l.b16 %v2126
        %v2159 = vunpack.c.l.b16 %v2127
        %v2160 = vunpack.c.l.b16 %v2128
        %v2161 = vunpack.c.l.b16 %v2129
        %v2162 = vunpack.c.l.b16 %v2130
        %v2163 = vunpack.c.l.b16 %v2131
        %v2164 = vunpack.c.l.b16 %v2132
        %v2165 = vunpack.c.l.b16 %v2133
        %v2166 = vunpack.c.l.b16 %v2134
        %v2167 = vunpack.c.l.b16 %v2135
        %v2168 = vunpack.c.l.b16 %v2136
        %v2169 = vunpack.c.l.b16 %v2137
        %v2170 = vpack.c.b16 %v2155, %v2154
        %v2171 = vpack.c.b16 %v2157, %v2156
        %v2172 = vpack.c.b16 %v2159, %v2158
        %v2173 = vpack.c.b16 %v2161, %v2160
        %v2174 = vpack.c.b16 %v2163, %v2162
        %v2175 = vpack.c.b16 %v2165, %v2164
        %v2176 = vpack.c.b16 %v2167, %v2166
        %v2177 = vpack.c.b16 %v2169, %v2168
        %2186 = vmatpush.bf16.msra.mxu0 %v2177
        %2187 = vmatpush.bf16.msra.mxu0 %v2176
        %2188 = vmatpush.bf16.msra.mxu0 %v2175
        %2189 = vmatpush.bf16.msra.mxu0 %v2174
        %2190 = vmatpush.bf16.msra.mxu0 %v2173
        %2191 = vmatpush.bf16.msra.mxu0 %v2172
        %2192 = vmatpush.bf16.msra.mxu0 %v2171
        %2193 = vmatpush.bf16.msra.mxu0 %v2170
        %2194 = vmatmul.bf16.gmra.mxu0 %v2120
        %v2195 = vpop.f32.mrf.mxu0
        %v2196 = vadd.f32 0.0, %v2195
        %v2197 = vpop.f32.mrf.mxu0
        %v2198 = vadd.f32 0.0, %v2197
        %2199 = vdwg.mxu0
        %v2200 = vadd.f32 %v2116, %v2196
        %v2201 = vadd.f32 %v2117, %v2198
        %v2202 = vadd.f32 %v1686, %v2200
        %v2203 = vadd.f32 %v1687, %v2201
        %2204 = vst [vmem:[#allocation5 + $0x1] sm:$0xff] %v2202
        %2205 = vst [vmem:[#allocation5 + $0x9] sm:$0xff] %v2203
        %2206 = vst [vmem:[%s457] sm:$0xff] %v2202
        %2207 = vst [vmem:[%s457 + $0x8] sm:$0xff] %v2203
        %v2208 = vld [vmem:[#allocation5] sm:$0xff]
        %v2209 = vld [vmem:[#allocation5 + $0x8] sm:$0xff]
        %v2210 = vld [vmem:[#allocation5 + $0x10] sm:$0x3]
        %v2211 = vpack.c.bf16 %v2209, %v2208
        %v2212 = vpack.c.bf16 %v2210, %v2210
        %v2213 = vld [vmem:[%s10] sm:$0xf]
        %vm2214 = vcmask 146432
        %v2216 = vsel %vm2214, %v2213, 0
        %vm2218 = vcmask 1040384
        %v2220 = vsel %vm2218, %v2212, 0
        %2222 = vmatpush.bf16.msra.mxu0 0
        %2223 = vmatpush.bf16.msra.mxu0 0
        %2224 = vmatpush.bf16.msra.mxu0 0
        %2225 = vmatpush.bf16.msra.mxu0 0
        %2226 = vmatpush.bf16.msra.mxu0 0
        %2227 = vmatpush.bf16.msra.mxu0 0
        %2228 = vmatpush.bf16.msra.mxu0 %v2220
        %2229 = vmatpush.bf16.msra.mxu0 %v2211
        %2230 = vmatmul.bf16.gmra.mxu0 %v2216
        %v2231 = vpop.f32.mrf.mxu0
        %v2232 = vadd.f32 0.0, %v2231
        %v2233 = vpop.f32.mrf.mxu0
        %2234 = vdwg.mxu0
        %v2235 = vpack.c.bf16 %v2232, %v2232
        %v2236 = vld [vmem:[%s9] sm:$0xf]
        %v2237 = vld [vmem:[%s9 + $0x4] sm:$0xf]
        %v2238 = vld [vmem:[%s9 + $0x8] sm:$0xf]
        %v2239 = vld [vmem:[%s9 + $0xc] sm:$0xf]
        %v2240 = vld [vmem:[%s9 + $0x10] sm:$0xf]
        %v2241 = vld [vmem:[%s9 + $0x14] sm:$0xf]
        %v2242 = vld [vmem:[%s9 + $0x18] sm:$0xf]
        %v2243 = vld [vmem:[%s9 + $0x1c] sm:$0xf]
        %v2244 = vld [vmem:[%s9 + $0x20] sm:$0xf]
        %v2245 = vld [vmem:[%s9 + $0x24] sm:$0xf]
        %v2246 = vld [vmem:[%s9 + $0x28] sm:$0xf]
        %v2247 = vld [vmem:[%s9 + $0x2c] sm:$0xf]
        %v2248 = vld [vmem:[%s9 + $0x30] sm:$0xf]
        %v2249 = vld [vmem:[%s9 + $0x34] sm:$0xf]
        %v2250 = vld [vmem:[%s9 + $0x38] sm:$0xf]
        %v2251 = vld [vmem:[%s9 + $0x3c] sm:$0xf]
        %s2252 = scalar_lea.vmem %s10, 4
        %v2253 = vld [vmem:[%s2252] sm:$0xf]
        %v2255 = vsel %vm2214, %v2253, 0
        %2257 = vmatpush.bf16.msra.mxu0 0
        %2258 = vmatpush.bf16.msra.mxu0 0
        %2259 = vmatpush.bf16.msra.mxu0 0
        %2260 = vmatpush.bf16.msra.mxu0 0
        %2261 = vmatpush.bf16.msra.mxu0 0
        %2262 = vmatpush.bf16.msra.mxu0 0
        %2263 = vmatpush.bf16.msra.mxu0 %v2220
        %2264 = vmatpush.bf16.msra.mxu0 %v2211
        %2265 = vmatmul.bf16.gmra.mxu0 %v2255
        %v2266 = vpop.f32.mrf.mxu0
        %v2267 = vadd.f32 0.0, %v2266
        %v2268 = vpop.f32.mrf.mxu0
        %2269 = vdwg.mxu0
        %v2270 = vpack.c.bf16 %v2267, %v2267
        %s2271 = scalar_lea.vmem %s9, 64
        %v2272 = vld [vmem:[%s2271] sm:$0xf]
        %v2273 = vld [vmem:[%s2271 + $0x4] sm:$0xf]
        %v2274 = vld [vmem:[%s2271 + $0x8] sm:$0xf]
        %v2275 = vld [vmem:[%s2271 + $0xc] sm:$0xf]
        %v2276 = vld [vmem:[%s2271 + $0x10] sm:$0xf]
        %v2277 = vld [vmem:[%s2271 + $0x14] sm:$0xf]
        %v2278 = vld [vmem:[%s2271 + $0x18] sm:$0xf]
        %v2279 = vld [vmem:[%s2271 + $0x1c] sm:$0xf]
        %v2280 = vld [vmem:[%s2271 + $0x20] sm:$0xf]
        %v2281 = vld [vmem:[%s2271 + $0x24] sm:$0xf]
        %v2282 = vld [vmem:[%s2271 + $0x28] sm:$0xf]
        %v2283 = vld [vmem:[%s2271 + $0x2c] sm:$0xf]
        %v2284 = vld [vmem:[%s2271 + $0x30] sm:$0xf]
        %v2285 = vld [vmem:[%s2271 + $0x34] sm:$0xf]
        %v2286 = vld [vmem:[%s2271 + $0x38] sm:$0xf]
        %v2287 = vld [vmem:[%s2271 + $0x3c] sm:$0xf]
        %v2304 = vunpack.c.l.b16 %v2272
        %v2305 = vunpack.c.l.b16 %v2273
        %v2306 = vunpack.c.l.b16 %v2274
        %v2307 = vunpack.c.l.b16 %v2275
        %v2308 = vunpack.c.l.b16 %v2276
        %v2309 = vunpack.c.l.b16 %v2277
        %v2310 = vunpack.c.l.b16 %v2278
        %v2311 = vunpack.c.l.b16 %v2279
        %v2312 = vunpack.c.l.b16 %v2280
        %v2313 = vunpack.c.l.b16 %v2281
        %v2314 = vunpack.c.l.b16 %v2282
        %v2315 = vunpack.c.l.b16 %v2283
        %v2316 = vunpack.c.l.b16 %v2284
        %v2317 = vunpack.c.l.b16 %v2285
        %v2318 = vunpack.c.l.b16 %v2286
        %v2319 = vunpack.c.l.b16 %v2287
        %v2320 = vpack.c.b16 %v2305, %v2304
        %v2321 = vpack.c.b16 %v2307, %v2306
        %v2322 = vpack.c.b16 %v2309, %v2308
        %v2323 = vpack.c.b16 %v2311, %v2310
        %v2324 = vpack.c.b16 %v2313, %v2312
        %v2325 = vpack.c.b16 %v2315, %v2314
        %v2326 = vpack.c.b16 %v2317, %v2316
        %v2327 = vpack.c.b16 %v2319, %v2318
        %2336 = vmatpush.bf16.msra.mxu0 %v2327
        %2337 = vmatpush.bf16.msra.mxu0 %v2326
        %2338 = vmatpush.bf16.msra.mxu0 %v2325
        %2339 = vmatpush.bf16.msra.mxu0 %v2324
        %2340 = vmatpush.bf16.msra.mxu0 %v2323
        %2341 = vmatpush.bf16.msra.mxu0 %v2322
        %2342 = vmatpush.bf16.msra.mxu0 %v2321
        %2343 = vmatpush.bf16.msra.mxu0 %v2320
        %2344 = vmatmul.bf16.gmra.mxu0 %v2270
        %v2345 = vpop.f32.mrf.mxu0
        %v2346 = vadd.f32 0.0, %v2345
        %v2347 = vpop.f32.mrf.mxu0
        %2348 = vdwg.mxu0
        %v2365 = vunpack.c.l.b16 %v2236
        %v2366 = vunpack.c.l.b16 %v2237
        %v2367 = vunpack.c.l.b16 %v2238
        %v2368 = vunpack.c.l.b16 %v2239
        %v2369 = vunpack.c.l.b16 %v2240
        %v2370 = vunpack.c.l.b16 %v2241
        %v2371 = vunpack.c.l.b16 %v2242
        %v2372 = vunpack.c.l.b16 %v2243
        %v2373 = vunpack.c.l.b16 %v2244
        %v2374 = vunpack.c.l.b16 %v2245
        %v2375 = vunpack.c.l.b16 %v2246
        %v2376 = vunpack.c.l.b16 %v2247
        %v2377 = vunpack.c.l.b16 %v2248
        %v2378 = vunpack.c.l.b16 %v2249
        %v2379 = vunpack.c.l.b16 %v2250
        %v2380 = vunpack.c.l.b16 %v2251
        %v2381 = vpack.c.b16 %v2366, %v2365
        %v2382 = vpack.c.b16 %v2368, %v2367
        %v2383 = vpack.c.b16 %v2370, %v2369
        %v2384 = vpack.c.b16 %v2372, %v2371
        %v2385 = vpack.c.b16 %v2374, %v2373
        %v2386 = vpack.c.b16 %v2376, %v2375
        %v2387 = vpack.c.b16 %v2378, %v2377
        %v2388 = vpack.c.b16 %v2380, %v2379
        %2397 = vmatpush.bf16.msra.mxu0 %v2388
        %2398 = vmatpush.bf16.msra.mxu0 %v2387
        %2399 = vmatpush.bf16.msra.mxu0 %v2386
        %2400 = vmatpush.bf16.msra.mxu0 %v2385
        %2401 = vmatpush.bf16.msra.mxu0 %v2384
        %2402 = vmatpush.bf16.msra.mxu0 %v2383
        %2403 = vmatpush.bf16.msra.mxu0 %v2382
        %2404 = vmatpush.bf16.msra.mxu0 %v2381
        %2405 = vmatmul.bf16.gmra.mxu0 %v2235
        %v2406 = vpop.f32.mrf.mxu0
        %v2407 = vadd.f32 %v2346, %v2406
        %v2408 = vpop.f32.mrf.mxu0
        %2409 = vdwg.mxu0
        %s2410 = scalar_lea.vmem %s10, 8
        %v2411 = vld [vmem:[%s2410] sm:$0xf]
        %v2413 = vsel %vm2214, %v2411, 0
        %2415 = vmatpush.bf16.msra.mxu0 0
        %2416 = vmatpush.bf16.msra.mxu0 0
        %2417 = vmatpush.bf16.msra.mxu0 0
        %2418 = vmatpush.bf16.msra.mxu0 0
        %2419 = vmatpush.bf16.msra.mxu0 0
        %2420 = vmatpush.bf16.msra.mxu0 0
        %2421 = vmatpush.bf16.msra.mxu0 %v2220
        %2422 = vmatpush.bf16.msra.mxu0 %v2211
        %2423 = vmatmul.bf16.gmra.mxu0 %v2413
        %v2424 = vpop.f32.mrf.mxu0
        %v2425 = vadd.f32 0.0, %v2424
        %v2426 = vpop.f32.mrf.mxu0
        %2427 = vdwg.mxu0
        %v2428 = vpack.c.bf16 %v2425, %v2425
        %s2429 = scalar_lea.vmem %s9, 128
        %v2430 = vld [vmem:[%s2429] sm:$0xf]
        %v2431 = vld [vmem:[%s2429 + $0x4] sm:$0xf]
        %v2432 = vld [vmem:[%s2429 + $0x8] sm:$0xf]
        %v2433 = vld [vmem:[%s2429 + $0xc] sm:$0xf]
        %v2434 = vld [vmem:[%s2429 + $0x10] sm:$0xf]
        %v2435 = vld [vmem:[%s2429 + $0x14] sm:$0xf]
        %v2436 = vld [vmem:[%s2429 + $0x18] sm:$0xf]
        %v2437 = vld [vmem:[%s2429 + $0x1c] sm:$0xf]
        %v2438 = vld [vmem:[%s2429 + $0x20] sm:$0xf]
        %v2439 = vld [vmem:[%s2429 + $0x24] sm:$0xf]
        %v2440 = vld [vmem:[%s2429 + $0x28] sm:$0xf]
        %v2441 = vld [vmem:[%s2429 + $0x2c] sm:$0xf]
        %v2442 = vld [vmem:[%s2429 + $0x30] sm:$0xf]
        %v2443 = vld [vmem:[%s2429 + $0x34] sm:$0xf]
        %v2444 = vld [vmem:[%s2429 + $0x38] sm:$0xf]
        %v2445 = vld [vmem:[%s2429 + $0x3c] sm:$0xf]
        %v2462 = vunpack.c.l.b16 %v2430
        %v2463 = vunpack.c.l.b16 %v2431
        %v2464 = vunpack.c.l.b16 %v2432
        %v2465 = vunpack.c.l.b16 %v2433
        %v2466 = vunpack.c.l.b16 %v2434
        %v2467 = vunpack.c.l.b16 %v2435
        %v2468 = vunpack.c.l.b16 %v2436
        %v2469 = vunpack.c.l.b16 %v2437
        %v2470 = vunpack.c.l.b16 %v2438
        %v2471 = vunpack.c.l.b16 %v2439
        %v2472 = vunpack.c.l.b16 %v2440
        %v2473 = vunpack.c.l.b16 %v2441
        %v2474 = vunpack.c.l.b16 %v2442
        %v2475 = vunpack.c.l.b16 %v2443
        %v2476 = vunpack.c.l.b16 %v2444
        %v2477 = vunpack.c.l.b16 %v2445
        %v2478 = vpack.c.b16 %v2463, %v2462
        %v2479 = vpack.c.b16 %v2465, %v2464
        %v2480 = vpack.c.b16 %v2467, %v2466
        %v2481 = vpack.c.b16 %v2469, %v2468
        %v2482 = vpack.c.b16 %v2471, %v2470
        %v2483 = vpack.c.b16 %v2473, %v2472
        %v2484 = vpack.c.b16 %v2475, %v2474
        %v2485 = vpack.c.b16 %v2477, %v2476
        %2494 = vmatpush.bf16.msra.mxu0 %v2485
        %2495 = vmatpush.bf16.msra.mxu0 %v2484
        %2496 = vmatpush.bf16.msra.mxu0 %v2483
        %2497 = vmatpush.bf16.msra.mxu0 %v2482
        %2498 = vmatpush.bf16.msra.mxu0 %v2481
        %2499 = vmatpush.bf16.msra.mxu0 %v2480
        %2500 = vmatpush.bf16.msra.mxu0 %v2479
        %2501 = vmatpush.bf16.msra.mxu0 %v2478
        %2502 = vmatmul.bf16.gmra.mxu0 %v2428
        %v2503 = vpop.f32.mrf.mxu0
        %v2504 = vadd.f32 0.0, %v2503
        %v2505 = vpop.f32.mrf.mxu0
        %2506 = vdwg.mxu0
        %v2507 = vadd.f32 %v2407, %v2504
        %s2508 = scalar_lea.vmem %s10, 12
        %v2509 = vld [vmem:[%s2508] sm:$0xf]
        %v2511 = vsel %vm2214, %v2509, 0
        %2513 = vmatpush.bf16.msra.mxu0 0
        %2514 = vmatpush.bf16.msra.mxu0 0
        %2515 = vmatpush.bf16.msra.mxu0 0
        %2516 = vmatpush.bf16.msra.mxu0 0
        %2517 = vmatpush.bf16.msra.mxu0 0
        %2518 = vmatpush.bf16.msra.mxu0 0
        %2519 = vmatpush.bf16.msra.mxu0 %v2220
        %2520 = vmatpush.bf16.msra.mxu0 %v2211
        %2521 = vmatmul.bf16.gmra.mxu0 %v2511
        %v2522 = vpop.f32.mrf.mxu0
        %v2523 = vadd.f32 0.0, %v2522
        %v2524 = vpop.f32.mrf.mxu0
        %2525 = vdwg.mxu0
        %v2526 = vpack.c.bf16 %v2523, %v2523
        %s2527 = scalar_lea.vmem %s9, 192
        %v2528 = vld [vmem:[%s2527] sm:$0xf]
        %v2529 = vld [vmem:[%s2527 + $0x4] sm:$0xf]
        %v2530 = vld [vmem:[%s2527 + $0x8] sm:$0xf]
        %v2531 = vld [vmem:[%s2527 + $0xc] sm:$0xf]
        %v2532 = vld [vmem:[%s2527 + $0x10] sm:$0xf]
        %v2533 = vld [vmem:[%s2527 + $0x14] sm:$0xf]
        %v2534 = vld [vmem:[%s2527 + $0x18] sm:$0xf]
        %v2535 = vld [vmem:[%s2527 + $0x1c] sm:$0xf]
        %v2536 = vld [vmem:[%s2527 + $0x20] sm:$0xf]
        %v2537 = vld [vmem:[%s2527 + $0x24] sm:$0xf]
        %v2538 = vld [vmem:[%s2527 + $0x28] sm:$0xf]
        %v2539 = vld [vmem:[%s2527 + $0x2c] sm:$0xf]
        %v2540 = vld [vmem:[%s2527 + $0x30] sm:$0xf]
        %v2541 = vld [vmem:[%s2527 + $0x34] sm:$0xf]
        %v2542 = vld [vmem:[%s2527 + $0x38] sm:$0xf]
        %v2543 = vld [vmem:[%s2527 + $0x3c] sm:$0xf]
        %v2560 = vunpack.c.l.b16 %v2528
        %v2561 = vunpack.c.l.b16 %v2529
        %v2562 = vunpack.c.l.b16 %v2530
        %v2563 = vunpack.c.l.b16 %v2531
        %v2564 = vunpack.c.l.b16 %v2532
        %v2565 = vunpack.c.l.b16 %v2533
        %v2566 = vunpack.c.l.b16 %v2534
        %v2567 = vunpack.c.l.b16 %v2535
        %v2568 = vunpack.c.l.b16 %v2536
        %v2569 = vunpack.c.l.b16 %v2537
        %v2570 = vunpack.c.l.b16 %v2538
        %v2571 = vunpack.c.l.b16 %v2539
        %v2572 = vunpack.c.l.b16 %v2540
        %v2573 = vunpack.c.l.b16 %v2541
        %v2574 = vunpack.c.l.b16 %v2542
        %v2575 = vunpack.c.l.b16 %v2543
        %v2576 = vpack.c.b16 %v2561, %v2560
        %v2577 = vpack.c.b16 %v2563, %v2562
        %v2578 = vpack.c.b16 %v2565, %v2564
        %v2579 = vpack.c.b16 %v2567, %v2566
        %v2580 = vpack.c.b16 %v2569, %v2568
        %v2581 = vpack.c.b16 %v2571, %v2570
        %v2582 = vpack.c.b16 %v2573, %v2572
        %v2583 = vpack.c.b16 %v2575, %v2574
        %2592 = vmatpush.bf16.msra.mxu0 %v2583
        %2593 = vmatpush.bf16.msra.mxu0 %v2582
        %2594 = vmatpush.bf16.msra.mxu0 %v2581
        %2595 = vmatpush.bf16.msra.mxu0 %v2580
        %2596 = vmatpush.bf16.msra.mxu0 %v2579
        %2597 = vmatpush.bf16.msra.mxu0 %v2578
        %2598 = vmatpush.bf16.msra.mxu0 %v2577
        %2599 = vmatpush.bf16.msra.mxu0 %v2576
        %2600 = vmatmul.bf16.gmra.mxu0 %v2526
        %v2601 = vpop.f32.mrf.mxu0
        %v2602 = vadd.f32 0.0, %v2601
        %v2603 = vpop.f32.mrf.mxu0
        %2604 = vdwg.mxu0
        %v2605 = vadd.f32 %v2507, %v2602
        %2606 = vst.msk [vmem:[%s461] sm:$0xff] %vm463, %v2605
        %p2607 = scmp.lt.s32.totalorder %s25, 1
        %s2608 = scalar_select %p2607, %s25, 1
        %s2609 = smul.addr %s2608, 2
        %s2610 = smul.addr %s2609, 8
        %s2611 = scalar_lea.vmem %s11, %s2610
        %p2612 = scmp.lt.s32.totalorder %s25, 1
        %s2613 = scalar_select %p2612, %s25, 1
        %s2614 = smul.addr %s2613, 8
        %s2615 = scalar_lea.vmem %s12, %s2614
        // Predicated region
        $region69: #{_run.1} parent=63 // pred_check
          %p2616 = pneg %p284
        $region70: #{_run.1} parent=63 // pred_check_branch
          %2618 = sbr.rel (%p2616) target = $region72
        $region71: #{_run.1} parent=63 // pred_region
          _
        $region72: #{_run.1} parent=63 // pred_fallthru
          _
        // Predicated region
        $region73: #{_run.1} parent=63 // pred_check
          %p2619 = pneg %p310
        $region74: #{_run.1} parent=63 // pred_check_branch
          %2621 = sbr.rel (%p2619) target = $region76
        $region75: #{_run.1} parent=63 // pred_region
          _
        $region76: #{_run.1} parent=63 // pred_fallthru
          _
      $region64: #{_run.1} parent=5 // pred_fallthru
        _
      %p2622 = scmp.le.s32.totalorder 2, %s20
      // Predicated region
      $region77: #{_run.1} parent=5 // pred_check
        %p2623 = pneg %p2622
      $region78: #{_run.1} parent=5 // pred_check_branch
        %2625 = sbr.rel (%p2623) target = $region80
      $region79: #{_run.1} parent=5 // pred_region
        %s2626 = ssub.s32 %s20, 2
        // Predicated region
        $region81: #{_run.1} parent=79 // pred_check
          %p2627 = pneg %p290
        $region82: #{_run.1} parent=79 // pred_check_branch
          %2629 = sbr.rel (%p2627) target = $region84
        $region83: #{_run.1} parent=79 // pred_region
          %p2630 = scmp.lt.s32.totalorder %s26, 1
          %s2631 = scalar_select %p2630, %s26, 1
          %s2632 = smul.addr %s2631, 2
          %s2633 = smul.addr %s2632, 8
          %s2634 = scalar_lea.vmem %s11, %s2633
        $region84: #{_run.1} parent=79 // pred_fallthru
          _
        // Predicated region
        $region85: #{_run.1} parent=79 // pred_check
          %p2635 = pneg %p316
        $region86: #{_run.1} parent=79 // pred_check_branch
          %2637 = sbr.rel (%p2635) target = $region88
        $region87: #{_run.1} parent=79 // pred_region
          %p2638 = scmp.lt.s32.totalorder %s26, 1
          %s2639 = scalar_select %p2638, %s26, 1
          %s2640 = smul.addr %s2639, 8
          %s2641 = scalar_lea.vmem %s12, %s2640
        $region88: #{_run.1} parent=79 // pred_fallthru
          _
      $region80: #{_run.1} parent=5 // pred_fallthru
        _
    $region6: #{_run.1} parent=1 // loop_footer
      %s24 = sadd.s32 1, %s20
    $region7: #{_run.1} parent=1 // loop_footer_branch
      %19 = sbr.rel target = $region3
    $region8: #{_run.1} parent=1 // loop_exit
      _
    %2642 = vsyncpa [#allocation7], 1
    %s2643 = scalar_lea.sflag [#allocation7], 1
    %2644 = vsyncpa %s2643, 1

</llo_original>
